<compile_context>
chip_gen: v7x
topology: tpu7x:2x2x1
jax: 0.10.0
libtpu: 0.0.40
codegen_flags: <defaults>
</compile_context>

<pallas_src>
import numpy as np
import jax
import jax.numpy as jnp
from jax import lax
from jax.experimental import pallas as pl
from jax.experimental.pallas import tpu as pltpu

# ------------- configuration (mirrors DnnFull.__init__ arguments) -------------
ATOM_LIST = [0, 1, 0, 1]          # atom_num = 4, atom_type_num = 2
CUT_OFF = 4.5
EMBEDDING_DIM = [8, 16]           # embed net: 3 -> 8 -> 16, LeakyReLU after each
LINEAR_LAYERS = [32, 16]          # fitting net: 48 -> 32 -> 16 -> 3
LATTICE = np.array([[3.0, 0.1, 0.0],
                    [0.0, 3.2, 0.1],
                    [0.1, 0.0, 3.4]], dtype=np.float32)

N = len(ATOM_LIST)
T = len(np.unique(ATOM_LIST))
PAIRS = [(i, j) for i in range(T) for j in range(i, T)]
P = len(PAIRS)
PAIR_IDX = {p: k for k, p in enumerate(PAIRS)}
E0, E1 = EMBEDDING_DIM            # NOTE: kernel is written for this 2-layer embed config
H0, H1 = LINEAR_LAYERS            # and this 2-hidden-layer fitting config
M = 27 * N                        # candidate images per center atom
MPL = 128                         # per-atom candidate axis padded to one lane group
NM = N * MPL                      # total lane extent (candidates of all atoms)
XDIM = 8                          # xyz padded 3 -> 8 for aligned contractions
NEG_SLOPE = 0.01                  # torch nn.LeakyReLU default


def _leaky(x):
    return jnp.where(x >= 0, x, NEG_SLOPE * x)


# --------------------------------- kernel ------------------------------------
def dnn_kernel(xt_ref, selm_ref,
               we0t_ref, be0_ref, we1t_ref, be1_ref,
               wf0s_ref, bf0_ref, wf1_ref, bf1_ref, wf2_ref, bf2_ref,
               out_ref):
    xt = xt_ref[...]          # (XDIM, NM) relative coords, candidates on lanes
    selm = selm_ref[...]      # (P, NM)    one-hot pair selector * keep-mask

    # Fused pair-embedding MLPs over all N*128 candidates in one pass.
    # layer 0: weights of the P nets concatenated along the output dim.
    h0 = _leaky(jnp.dot(we0t_ref[...], xt,
                        preferred_element_type=jnp.float32) + be0_ref[...])   # (P*E0, NM)
    # layer 1: block-diagonal weights keep the P nets independent.
    h1 = _leaky(jnp.dot(we1t_ref[...], h0,
                        preferred_element_type=jnp.float32) + be1_ref[...])   # (P*E1, NM)

    # one-hot select of the per-row pair net (mask already folded into selm)
    g = jnp.zeros((E1, NM), dtype=jnp.float32)
    for p in range(P):        # static, P is tiny
        g = g + selm[p:p + 1, :] * h1[p * E1:(p + 1) * E1, :]                 # (E1, NM)

    # Per-atom: masked g^T @ x reduction (single MXU contraction over the lane
    # axis), then the tiny per-atom fitting MLP.  wf0s[n, c, e, :] == Wf0[3e+c, :]
    # so the d-flatten order of the reference is consumed without reshapes.
    outs = []
    for n in range(N):        # static, N is tiny
        lo = n * MPL
        x_n = xt[:, lo:lo + MPL]   # (XDIM, MPL)
        g_n = g[:, lo:lo + MPL]    # (E1,   MPL)
        # d[c, e] = sum_i x_n[c, i] * g_n[e, i]
        d = lax.dot_general(x_n, g_n, (((1,), (1,)), ((), ())),
                            preferred_element_type=jnp.float32)               # (XDIM, E1)
        h = bf0_ref[n]             # (1, H0)
        for c in range(3):
            h = h + jnp.dot(d[c:c + 1, :], wf0s_ref[n, c],
                            preferred_element_type=jnp.float32)
        h = _leaky(h)
        h = _leaky(jnp.dot(h, wf1_ref[n],
                           preferred_element_type=jnp.float32) + bf1_ref[n])  # (1, H1)
        outs.append(jnp.dot(h, wf2_ref[n],
                            preferred_element_type=jnp.float32) + bf2_ref[n])  # (1, 3)
    out_ref[...] = jnp.concatenate(outs, axis=0)   # (N, 3)


def dnn_forward(xt, selm, params):
    we0t, be0, we1t, be1, wf0s, bf0, wf1, bf1, wf2, bf2 = params
    out = pl.pallas_call(
        dnn_kernel,
        out_shape=jax.ShapeDtypeStruct((N, 3), jnp.float32),
        grid=(1,),
        in_specs=[
            pl.BlockSpec((XDIM, NM), lambda i: (0, 0)),           # xt
            pl.BlockSpec((P, NM), lambda i: (0, 0)),              # selm
            pl.BlockSpec((P * E0, XDIM), lambda i: (0, 0)),       # we0t (fused)
            pl.BlockSpec((P * E0, 1), lambda i: (0, 0)),          # be0
            pl.BlockSpec((P * E1, P * E0), lambda i: (0, 0)),     # we1t (block-diag)
            pl.BlockSpec((P * E1, 1), lambda i: (0, 0)),          # be1
            pl.BlockSpec((N, 3, E1, H0), lambda i: (0, 0, 0, 0)),  # wf0 (split layout)
            pl.BlockSpec((N, 1, H0), lambda i: (0, 0, 0)),        # bf0
            pl.BlockSpec((N, H0, H1), lambda i: (0, 0, 0)),       # wf1
            pl.BlockSpec((N, 1, H1), lambda i: (0, 0, 0)),        # bf1
            pl.BlockSpec((N, H1, 3), lambda i: (0, 0, 0)),        # wf2
            pl.BlockSpec((N, 1, 3), lambda i: (0, 0, 0)),         # bf2
        ],
        out_specs=pl.BlockSpec((N, 3), lambda i: (0, 0)),
        compiler_params=pltpu.CompilerParams(dimension_semantics=("arbitrary",)),
        cost_estimate=pl.CostEstimate(flops=2_000_000, transcendentals=0,
                                      bytes_accessed=70_000),
    )(xt, selm, we0t, be0, we1t, be1, wf0s, bf0, wf1, bf1, wf2, bf2)
    out = out - jnp.mean(out, axis=0, keepdims=True)   # final centering (torch)
    return out.reshape(-1)


# ----------------------------- host-side glue ---------------------------------
# TODO(synk): the data-dependent boolean neighbor filtering (dynamic-shape
# `dist <= cut_off` selection and row drop) has no static-shape Pallas
# equivalent; it is expressed here as static per-candidate selector weights.
def build_inputs(x_np):
    types = np.array(ATOM_LIST, dtype=np.int32)
    types_ext = np.tile(types, 27)
    x_ext = np.concatenate(
        [x_np + i * LATTICE[0] + j * LATTICE[1] + k * LATTICE[2]
         for i in (-1, 0, 1) for j in (-1, 0, 1) for k in (-1, 0, 1)], axis=0)
    xt = np.zeros((XDIM, NM), np.float32)
    selm = np.zeros((P, NM), np.float32)
    for n in range(N):
        x_ext = x_ext - x_ext[n]                       # cumulative, as in torch
        dist = np.sqrt((x_ext * x_ext).sum(axis=1))
        keep = dist <= CUT_OFF
        cum = np.cumsum(keep.astype(np.int64))
        drop = keep & (cum == n + 1)                   # torch drops the n-th kept row
        final = keep & ~drop
        base = n * MPL
        xt[0:3, base:base + M] = x_ext.T
        for m in range(M):
            if final[m]:
                a, b = sorted((int(types[n]), int(types_ext[m])))
                selm[PAIR_IDX[(a, b)], base + m] = 1.0
    return xt, selm


def init_params(key):
    def linear(k, fi, fo):
        kw, kb = jax.random.split(k)
        bound = 1.0 / np.sqrt(fi)
        w = jax.random.uniform(kw, (fi, fo), jnp.float32, -bound, bound)
        b = jax.random.uniform(kb, (fo,), jnp.float32, -bound, bound)
        return np.asarray(w), np.asarray(b)

    keys = iter(jax.random.split(key, 2 * P + 3 * N))
    embed = []
    for _ in range(P):
        W0, b0 = linear(next(keys), 3, E0)
        W1, b1 = linear(next(keys), E0, E1)
        embed.append((W0, b0, W1, b1))
    fit = []
    for _ in range(N):
        Wf0, bf0 = linear(next(keys), 3 * E1, H0)
        Wf1, bf1 = linear(next(keys), H0, H1)
        Wf2, bf2 = linear(next(keys), H1, 3)
        fit.append((Wf0, bf0, Wf1, bf1, Wf2, bf2))
    return embed, fit


def pack_params(embed, fit):
    # Fused + transposed embed weights for the lane-dense (y = W^T x) kernel.
    we0t = np.zeros((P * E0, XDIM), np.float32)        # cols 3..7 stay zero (pad)
    be0 = np.zeros((P * E0, 1), np.float32)
    we1t = np.zeros((P * E1, P * E0), np.float32)      # block-diagonal
    be1 = np.zeros((P * E1, 1), np.float32)
    for p, (W0, b0, W1, b1) in enumerate(embed):
        we0t[p * E0:(p + 1) * E0, 0:3] = W0.T          # (E0, 3)
        be0[p * E0:(p + 1) * E0, 0] = b0
        we1t[p * E1:(p + 1) * E1, p * E0:(p + 1) * E0] = W1.T   # (E1, E0)
        be1[p * E1:(p + 1) * E1, 0] = b1
    # Wf0 row index is 3*e + c  ->  wf0s[n, c, e, :] = Wf0_n[3e+c, :]
    wf0s = np.stack([f[0].reshape(E1, 3, H0).transpose(1, 0, 2) for f in fit])  # (N,3,E1,H0)
    bf0 = np.stack([f[1][None] for f in fit])          # (N,1,H0)
    wf1 = np.stack([f[2] for f in fit])                # (N,H0,H1)
    bf1 = np.stack([f[3][None] for f in fit])          # (N,1,H1)
    wf2 = np.stack([f[4] for f in fit])                # (N,H1,3)
    bf2 = np.stack([f[5][None] for f in fit])          # (N,1,3)
    arrs = (we0t, be0, we1t, be1, wf0s, bf0, wf1, bf1, wf2, bf2)
    return tuple(jnp.asarray(a, dtype=jnp.float32) for a in arrs)


# ------------------------- literal numpy reference ----------------------------
def _leaky_np(x):
    return np.where(x >= 0, x, NEG_SLOPE * x)


def reference_forward(x_np, embed, fit):
    types = np.array(ATOM_LIST, dtype=np.int32)
    types_ext = np.tile(types, 27)
    x_ext = np.concatenate(
        [x_np + i * LATTICE[0] + j * LATTICE[1] + k * LATTICE[2]
         for i in (-1, 0, 1) for j in (-1, 0, 1) for k in (-1, 0, 1)], axis=0)
    outs = []
    for n in range(N):
        x_ext = x_ext - x_ext[n]
        dist = np.sqrt((x_ext * x_ext).sum(axis=1))
        keep = dist <= CUT_OFF
        x_n = x_ext[keep]
        atom_n = types_ext[keep]
        x_n = np.concatenate([x_n[:n], x_n[n + 1:]], axis=0)
        atom_n = np.concatenate([atom_n[:n], atom_n[n + 1:]], axis=0)
        g = []
        for i in range(len(x_n)):
            a, b = sorted((int(types[n]), int(atom_n[i])))
            W0, b0, W1, b1 = embed[PAIR_IDX[(a, b)]]
            h = _leaky_np(x_n[i] @ W0 + b0)
            h = _leaky_np(h @ W1 + b1)
            g.append(h)
        g = np.stack(g, axis=0)
        d = (g.T @ x_n).reshape(-1)
        Wf0, bf0, Wf1, bf1, Wf2, bf2 = fit[n]
        h = _leaky_np(d @ Wf0 + bf0)
        h = _leaky_np(h @ Wf1 + bf1)
        outs.append(h @ Wf2 + bf2)
    out = np.stack(outs, axis=0)
    out = out - out.mean(axis=0)
    return out.reshape(-1).astype(np.float32)


if __name__ == "__main__":
    key = jax.random.PRNGKey(0)
    kx, kp = jax.random.split(key)
    x = jax.random.uniform(kx, (N, 3), jnp.float32, 0.0, 2.5)   # atom positions
    x_np = np.asarray(x)

    embed, fit = init_params(kp)
    params = pack_params(embed, fit)
    xt, selm = build_inputs(x_np)

    out = dnn_forward(jnp.asarray(xt), jnp.asarray(selm), params)
    out = jax.block_until_ready(out)

    ref = reference_forward(x_np, embed, fit)
    out_np = np.asarray(out)
    assert out_np.shape == (3 * N,)
    assert np.isfinite(out_np).all()
    rel_err = np.linalg.norm(out_np - ref) / (np.linalg.norm(ref) + 1e-12)
    assert rel_err < 1e-3, f"relative error too large: {rel_err}"
    print("KERNEL_OK")
</pallas_src>

<mosaic_0001>
module attributes {stable_mosaic.version = 11 : i64} {
  func.func @dnn_kernel(%arg0: i32, %arg1: memref<8x512xf32, #tpu.memory_space<vmem>>, %arg2: memref<3x512xf32, #tpu.memory_space<vmem>>, %arg3: memref<24x8xf32, #tpu.memory_space<vmem>>, %arg4: memref<24x1xf32, #tpu.memory_space<vmem>>, %arg5: memref<48x24xf32, #tpu.memory_space<vmem>>, %arg6: memref<48x1xf32, #tpu.memory_space<vmem>>, %arg7: memref<4x3x16x32xf32, #tpu.memory_space<vmem>>, %arg8: memref<4x1x32xf32, #tpu.memory_space<vmem>>, %arg9: memref<4x32x16xf32, #tpu.memory_space<vmem>>, %arg10: memref<4x1x16xf32, #tpu.memory_space<vmem>>, %arg11: memref<4x16x3xf32, #tpu.memory_space<vmem>>, %arg12: memref<4x1x3xf32, #tpu.memory_space<vmem>>, %arg13: memref<4x3xf32, #tpu.memory_space<vmem>>) attributes {dimension_semantics = [#tpu.dimension_semantics<arbitrary>], iteration_bounds = array<i64: 1>, scalar_prefetch = 0 : i64, scratch_operands = 0 : i64, tpu.core_type = #tpu.core_type<tc>, window_params = [{pipeline_mode = #tpu.pipeline_mode<synchronous>, transform_indices = @transform_0, window_bounds = array<i64: 8, 512>}, {pipeline_mode = #tpu.pipeline_mode<synchronous>, transform_indices = @transform_1, window_bounds = array<i64: 3, 512>}, {pipeline_mode = #tpu.pipeline_mode<synchronous>, transform_indices = @transform_2, window_bounds = array<i64: 24, 8>}, {pipeline_mode = #tpu.pipeline_mode<synchronous>, transform_indices = @transform_3, window_bounds = array<i64: 24, 1>}, {pipeline_mode = #tpu.pipeline_mode<synchronous>, transform_indices = @transform_4, window_bounds = array<i64: 48, 24>}, {pipeline_mode = #tpu.pipeline_mode<synchronous>, transform_indices = @transform_5, window_bounds = array<i64: 48, 1>}, {pipeline_mode = #tpu.pipeline_mode<synchronous>, transform_indices = @transform_6, window_bounds = array<i64: 4, 3, 16, 32>}, {pipeline_mode = #tpu.pipeline_mode<synchronous>, transform_indices = @transform_7, window_bounds = array<i64: 4, 1, 32>}, {pipeline_mode = #tpu.pipeline_mode<synchronous>, transform_indices = @transform_8, window_bounds = array<i64: 4, 32, 16>}, {pipeline_mode = #tpu.pipeline_mode<synchronous>, transform_indices = @transform_9, window_bounds = array<i64: 4, 1, 16>}, {pipeline_mode = #tpu.pipeline_mode<synchronous>, transform_indices = @transform_10, window_bounds = array<i64: 4, 16, 3>}, {pipeline_mode = #tpu.pipeline_mode<synchronous>, transform_indices = @transform_11, window_bounds = array<i64: 4, 1, 3>}, {pipeline_mode = #tpu.pipeline_mode<synchronous>, transform_indices = @transform_12, window_bounds = array<i64: 4, 3>}]} {
    %c0 = arith.constant 0 : index
    %c0_0 = arith.constant 0 : index
    %0 = vector.load %arg1[%c0, %c0_0] : memref<8x512xf32, #tpu.memory_space<vmem>>, vector<8x512xf32>
    %c0_1 = arith.constant 0 : index
    %c0_2 = arith.constant 0 : index
    %1 = vector.load %arg2[%c0_1, %c0_2] : memref<3x512xf32, #tpu.memory_space<vmem>>, vector<3x512xf32>
    %c0_3 = arith.constant 0 : index
    %c0_4 = arith.constant 0 : index
    %2 = vector.load %arg3[%c0_3, %c0_4] : memref<24x8xf32, #tpu.memory_space<vmem>>, vector<24x8xf32>
    %cst = arith.constant dense<0.000000e+00> : vector<24x512xf32>
    %3 = tpu.matmul %2, %0, %cst {dimension_numbers = #tpu.dot_dimension_numbers<[1], [0], [0], [1], [0, 0, 1, 1], [], []>} : vector<24x8xf32>, vector<8x512xf32>, vector<24x512xf32> -> vector<24x512xf32>
    %c0_5 = arith.constant 0 : index
    %c0_6 = arith.constant 0 : index
    %4 = vector.load %arg4[%c0_5, %c0_6] : memref<24x1xf32, #tpu.memory_space<vmem>>, vector<24x1xf32>
    %5 = vector.broadcast %4 : vector<24x1xf32> to vector<24x512xf32>
    %6 = arith.addf %3, %5 : vector<24x512xf32>
    %cst_7 = arith.constant 0.000000e+00 : f32
    %7 = vector.broadcast %cst_7 : f32 to vector<24x512xf32>
    %8 = arith.cmpf oge, %6, %7 : vector<24x512xf32>
    %cst_8 = arith.constant 0.00999999977 : f32
    %9 = vector.broadcast %cst_8 : f32 to vector<24x512xf32>
    %10 = arith.mulf %9, %6 : vector<24x512xf32>
    %11 = arith.select %8, %6, %10 : vector<24x512xi1>, vector<24x512xf32>
    %c0_9 = arith.constant 0 : index
    %c0_10 = arith.constant 0 : index
    %12 = vector.load %arg5[%c0_9, %c0_10] : memref<48x24xf32, #tpu.memory_space<vmem>>, vector<48x24xf32>
    %cst_11 = arith.constant dense<0.000000e+00> : vector<48x512xf32>
    %13 = tpu.matmul %12, %11, %cst_11 {dimension_numbers = #tpu.dot_dimension_numbers<[1], [0], [0], [1], [0, 0, 1, 1], [], []>} : vector<48x24xf32>, vector<24x512xf32>, vector<48x512xf32> -> vector<48x512xf32>
    %c0_12 = arith.constant 0 : index
    %c0_13 = arith.constant 0 : index
    %14 = vector.load %arg6[%c0_12, %c0_13] : memref<48x1xf32, #tpu.memory_space<vmem>>, vector<48x1xf32>
    %15 = vector.broadcast %14 : vector<48x1xf32> to vector<48x512xf32>
    %16 = arith.addf %13, %15 : vector<48x512xf32>
    %cst_14 = arith.constant 0.000000e+00 : f32
    %17 = vector.broadcast %cst_14 : f32 to vector<48x512xf32>
    %18 = arith.cmpf oge, %16, %17 : vector<48x512xf32>
    %cst_15 = arith.constant 0.00999999977 : f32
    %19 = vector.broadcast %cst_15 : f32 to vector<48x512xf32>
    %20 = arith.mulf %19, %16 : vector<48x512xf32>
    %21 = arith.select %18, %16, %20 : vector<48x512xi1>, vector<48x512xf32>
    %cst_16 = arith.constant 0.000000e+00 : f32
    %22 = vector.broadcast %cst_16 : f32 to vector<16x512xf32>
    %23 = vector.extract_strided_slice %1 {offsets = [0, 0], sizes = [1, 512], strides = [1, 1]} : vector<3x512xf32> to vector<1x512xf32>
    %24 = vector.extract_strided_slice %21 {offsets = [0, 0], sizes = [16, 512], strides = [1, 1]} : vector<48x512xf32> to vector<16x512xf32>
    %25 = vector.broadcast %23 : vector<1x512xf32> to vector<16x512xf32>
    %26 = arith.mulf %25, %24 : vector<16x512xf32>
    %27 = arith.addf %22, %26 : vector<16x512xf32>
    %28 = vector.extract_strided_slice %1 {offsets = [1, 0], sizes = [1, 512], strides = [1, 1]} : vector<3x512xf32> to vector<1x512xf32>
    %29 = vector.extract_strided_slice %21 {offsets = [16, 0], sizes = [16, 512], strides = [1, 1]} : vector<48x512xf32> to vector<16x512xf32>
    %30 = vector.broadcast %28 : vector<1x512xf32> to vector<16x512xf32>
    %31 = arith.mulf %30, %29 : vector<16x512xf32>
    %32 = arith.addf %27, %31 : vector<16x512xf32>
    %33 = vector.extract_strided_slice %1 {offsets = [2, 0], sizes = [1, 512], strides = [1, 1]} : vector<3x512xf32> to vector<1x512xf32>
    %34 = vector.extract_strided_slice %21 {offsets = [32, 0], sizes = [16, 512], strides = [1, 1]} : vector<48x512xf32> to vector<16x512xf32>
    %35 = vector.broadcast %33 : vector<1x512xf32> to vector<16x512xf32>
    %36 = arith.mulf %35, %34 : vector<16x512xf32>
    %37 = arith.addf %32, %36 : vector<16x512xf32>
    %38 = vector.extract_strided_slice %0 {offsets = [0, 0], sizes = [8, 128], strides = [1, 1]} : vector<8x512xf32> to vector<8x128xf32>
    %39 = vector.extract_strided_slice %37 {offsets = [0, 0], sizes = [16, 128], strides = [1, 1]} : vector<16x512xf32> to vector<16x128xf32>
    %cst_17 = arith.constant dense<0.000000e+00> : vector<8x16xf32>
    %40 = tpu.matmul %38, %39, %cst_17 {dimension_numbers = #tpu.dot_dimension_numbers<[1], [1], [0], [0], [0, 0, 1, 0], [], []>} : vector<8x128xf32>, vector<16x128xf32>, vector<8x16xf32> -> vector<8x16xf32>
    %c0_18 = arith.constant 0 : index
    %c0_19 = arith.constant 0 : index
    %c0_20 = arith.constant 0 : index
    %41 = vector.load %arg8[%c0_18, %c0_19, %c0_20] : memref<4x1x32xf32, #tpu.memory_space<vmem>>, vector<1x1x32xf32>
    %42 = vector.shape_cast %41 : vector<1x1x32xf32> to vector<1x32xf32>
    %43 = vector.extract_strided_slice %40 {offsets = [0, 0], sizes = [1, 16], strides = [1, 1]} : vector<8x16xf32> to vector<1x16xf32>
    %c0_21 = arith.constant 0 : index
    %c0_22 = arith.constant 0 : index
    %c0_23 = arith.constant 0 : index
    %c0_24 = arith.constant 0 : index
    %44 = vector.load %arg7[%c0_21, %c0_22, %c0_23, %c0_24] : memref<4x3x16x32xf32, #tpu.memory_space<vmem>>, vector<1x1x16x32xf32>
    %45 = vector.shape_cast %44 : vector<1x1x16x32xf32> to vector<16x32xf32>
    %cst_25 = arith.constant dense<0.000000e+00> : vector<1x32xf32>
    %46 = tpu.matmul %43, %45, %cst_25 {dimension_numbers = #tpu.dot_dimension_numbers<[1], [0], [0], [1], [0, 0, 1, 1], [], []>} : vector<1x16xf32>, vector<16x32xf32>, vector<1x32xf32> -> vector<1x32xf32>
    %47 = arith.addf %42, %46 : vector<1x32xf32>
    %48 = vector.extract_strided_slice %40 {offsets = [1, 0], sizes = [1, 16], strides = [1, 1]} : vector<8x16xf32> to vector<1x16xf32>
    %c0_26 = arith.constant 0 : index
    %c1 = arith.constant 1 : index
    %c0_27 = arith.constant 0 : index
    %c0_28 = arith.constant 0 : index
    %49 = vector.load %arg7[%c0_26, %c1, %c0_27, %c0_28] : memref<4x3x16x32xf32, #tpu.memory_space<vmem>>, vector<1x1x16x32xf32>
    %50 = vector.shape_cast %49 : vector<1x1x16x32xf32> to vector<16x32xf32>
    %cst_29 = arith.constant dense<0.000000e+00> : vector<1x32xf32>
    %51 = tpu.matmul %48, %50, %cst_29 {dimension_numbers = #tpu.dot_dimension_numbers<[1], [0], [0], [1], [0, 0, 1, 1], [], []>} : vector<1x16xf32>, vector<16x32xf32>, vector<1x32xf32> -> vector<1x32xf32>
    %52 = arith.addf %47, %51 : vector<1x32xf32>
    %53 = vector.extract_strided_slice %40 {offsets = [2, 0], sizes = [1, 16], strides = [1, 1]} : vector<8x16xf32> to vector<1x16xf32>
    %c0_30 = arith.constant 0 : index
    %c2 = arith.constant 2 : index
    %c0_31 = arith.constant 0 : index
    %c0_32 = arith.constant 0 : index
    %54 = vector.load %arg7[%c0_30, %c2, %c0_31, %c0_32] : memref<4x3x16x32xf32, #tpu.memory_space<vmem>>, vector<1x1x16x32xf32>
    %55 = vector.shape_cast %54 : vector<1x1x16x32xf32> to vector<16x32xf32>
    %cst_33 = arith.constant dense<0.000000e+00> : vector<1x32xf32>
    %56 = tpu.matmul %53, %55, %cst_33 {dimension_numbers = #tpu.dot_dimension_numbers<[1], [0], [0], [1], [0, 0, 1, 1], [], []>} : vector<1x16xf32>, vector<16x32xf32>, vector<1x32xf32> -> vector<1x32xf32>
    %57 = arith.addf %52, %56 : vector<1x32xf32>
    %cst_34 = arith.constant 0.000000e+00 : f32
    %58 = vector.broadcast %cst_34 : f32 to vector<1x32xf32>
    %59 = arith.cmpf oge, %57, %58 : vector<1x32xf32>
    %cst_35 = arith.constant 0.00999999977 : f32
    %60 = vector.broadcast %cst_35 : f32 to vector<1x32xf32>
    %61 = arith.mulf %60, %57 : vector<1x32xf32>
    %62 = arith.select %59, %57, %61 : vector<1x32xi1>, vector<1x32xf32>
    %c0_36 = arith.constant 0 : index
    %c0_37 = arith.constant 0 : index
    %c0_38 = arith.constant 0 : index
    %63 = vector.load %arg9[%c0_36, %c0_37, %c0_38] : memref<4x32x16xf32, #tpu.memory_space<vmem>>, vector<1x32x16xf32>
    %64 = vector.shape_cast %63 : vector<1x32x16xf32> to vector<32x16xf32>
    %cst_39 = arith.constant dense<0.000000e+00> : vector<1x16xf32>
    %65 = tpu.matmul %62, %64, %cst_39 {dimension_numbers = #tpu.dot_dimension_numbers<[1], [0], [0], [1], [0, 0, 1, 1], [], []>} : vector<1x32xf32>, vector<32x16xf32>, vector<1x16xf32> -> vector<1x16xf32>
    %c0_40 = arith.constant 0 : index
    %c0_41 = arith.constant 0 : index
    %c0_42 = arith.constant 0 : index
    %66 = vector.load %arg10[%c0_40, %c0_41, %c0_42] : memref<4x1x16xf32, #tpu.memory_space<vmem>>, vector<1x1x16xf32>
    %67 = vector.shape_cast %66 : vector<1x1x16xf32> to vector<1x16xf32>
    %68 = arith.addf %65, %67 : vector<1x16xf32>
    %cst_43 = arith.constant 0.000000e+00 : f32
    %69 = vector.broadcast %cst_43 : f32 to vector<1x16xf32>
    %70 = arith.cmpf oge, %68, %69 : vector<1x16xf32>
    %cst_44 = arith.constant 0.00999999977 : f32
    %71 = vector.broadcast %cst_44 : f32 to vector<1x16xf32>
    %72 = arith.mulf %71, %68 : vector<1x16xf32>
    %73 = arith.select %70, %68, %72 : vector<1x16xi1>, vector<1x16xf32>
    %c0_45 = arith.constant 0 : index
    %c0_46 = arith.constant 0 : index
    %c0_47 = arith.constant 0 : index
    %74 = vector.load %arg11[%c0_45, %c0_46, %c0_47] : memref<4x16x3xf32, #tpu.memory_space<vmem>>, vector<1x16x3xf32>
    %75 = vector.shape_cast %74 : vector<1x16x3xf32> to vector<16x3xf32>
    %cst_48 = arith.constant dense<0.000000e+00> : vector<1x3xf32>
    %76 = tpu.matmul %73, %75, %cst_48 {dimension_numbers = #tpu.dot_dimension_numbers<[1], [0], [0], [1], [0, 0, 1, 1], [], []>} : vector<1x16xf32>, vector<16x3xf32>, vector<1x3xf32> -> vector<1x3xf32>
    %c0_49 = arith.constant 0 : index
    %c0_50 = arith.constant 0 : index
    %c0_51 = arith.constant 0 : index
    %77 = vector.load %arg12[%c0_49, %c0_50, %c0_51] : memref<4x1x3xf32, #tpu.memory_space<vmem>>, vector<1x1x3xf32>
    %78 = vector.shape_cast %77 : vector<1x1x3xf32> to vector<1x3xf32>
    %79 = arith.addf %76, %78 : vector<1x3xf32>
    %80 = vector.extract_strided_slice %0 {offsets = [0, 128], sizes = [8, 128], strides = [1, 1]} : vector<8x512xf32> to vector<8x128xf32>
    %81 = vector.extract_strided_slice %37 {offsets = [0, 128], sizes = [16, 128], strides = [1, 1]} : vector<16x512xf32> to vector<16x128xf32>
    %cst_52 = arith.constant dense<0.000000e+00> : vector<8x16xf32>
    %82 = tpu.matmul %80, %81, %cst_52 {dimension_numbers = #tpu.dot_dimension_numbers<[1], [1], [0], [0], [0, 0, 1, 0], [], []>} : vector<8x128xf32>, vector<16x128xf32>, vector<8x16xf32> -> vector<8x16xf32>
    %c1_53 = arith.constant 1 : index
    %c0_54 = arith.constant 0 : index
    %c0_55 = arith.constant 0 : index
    %83 = vector.load %arg8[%c1_53, %c0_54, %c0_55] : memref<4x1x32xf32, #tpu.memory_space<vmem>>, vector<1x1x32xf32>
    %84 = vector.shape_cast %83 : vector<1x1x32xf32> to vector<1x32xf32>
    %85 = vector.extract_strided_slice %82 {offsets = [0, 0], sizes = [1, 16], strides = [1, 1]} : vector<8x16xf32> to vector<1x16xf32>
    %c1_56 = arith.constant 1 : index
    %c0_57 = arith.constant 0 : index
    %c0_58 = arith.constant 0 : index
    %c0_59 = arith.constant 0 : index
    %86 = vector.load %arg7[%c1_56, %c0_57, %c0_58, %c0_59] : memref<4x3x16x32xf32, #tpu.memory_space<vmem>>, vector<1x1x16x32xf32>
    %87 = vector.shape_cast %86 : vector<1x1x16x32xf32> to vector<16x32xf32>
    %cst_60 = arith.constant dense<0.000000e+00> : vector<1x32xf32>
    %88 = tpu.matmul %85, %87, %cst_60 {dimension_numbers = #tpu.dot_dimension_numbers<[1], [0], [0], [1], [0, 0, 1, 1], [], []>} : vector<1x16xf32>, vector<16x32xf32>, vector<1x32xf32> -> vector<1x32xf32>
    %89 = arith.addf %84, %88 : vector<1x32xf32>
    %90 = vector.extract_strided_slice %82 {offsets = [1, 0], sizes = [1, 16], strides = [1, 1]} : vector<8x16xf32> to vector<1x16xf32>
    %c1_61 = arith.constant 1 : index
    %c1_62 = arith.constant 1 : index
    %c0_63 = arith.constant 0 : index
    %c0_64 = arith.constant 0 : index
    %91 = vector.load %arg7[%c1_61, %c1_62, %c0_63, %c0_64] : memref<4x3x16x32xf32, #tpu.memory_space<vmem>>, vector<1x1x16x32xf32>
    %92 = vector.shape_cast %91 : vector<1x1x16x32xf32> to vector<16x32xf32>
    %cst_65 = arith.constant dense<0.000000e+00> : vector<1x32xf32>
    %93 = tpu.matmul %90, %92, %cst_65 {dimension_numbers = #tpu.dot_dimension_numbers<[1], [0], [0], [1], [0, 0, 1, 1], [], []>} : vector<1x16xf32>, vector<16x32xf32>, vector<1x32xf32> -> vector<1x32xf32>
    %94 = arith.addf %89, %93 : vector<1x32xf32>
    %95 = vector.extract_strided_slice %82 {offsets = [2, 0], sizes = [1, 16], strides = [1, 1]} : vector<8x16xf32> to vector<1x16xf32>
    %c1_66 = arith.constant 1 : index
    %c2_67 = arith.constant 2 : index
    %c0_68 = arith.constant 0 : index
    %c0_69 = arith.constant 0 : index
    %96 = vector.load %arg7[%c1_66, %c2_67, %c0_68, %c0_69] : memref<4x3x16x32xf32, #tpu.memory_space<vmem>>, vector<1x1x16x32xf32>
    %97 = vector.shape_cast %96 : vector<1x1x16x32xf32> to vector<16x32xf32>
    %cst_70 = arith.constant dense<0.000000e+00> : vector<1x32xf32>
    %98 = tpu.matmul %95, %97, %cst_70 {dimension_numbers = #tpu.dot_dimension_numbers<[1], [0], [0], [1], [0, 0, 1, 1], [], []>} : vector<1x16xf32>, vector<16x32xf32>, vector<1x32xf32> -> vector<1x32xf32>
    %99 = arith.addf %94, %98 : vector<1x32xf32>
    %cst_71 = arith.constant 0.000000e+00 : f32
    %100 = vector.broadcast %cst_71 : f32 to vector<1x32xf32>
    %101 = arith.cmpf oge, %99, %100 : vector<1x32xf32>
    %cst_72 = arith.constant 0.00999999977 : f32
    %102 = vector.broadcast %cst_72 : f32 to vector<1x32xf32>
    %103 = arith.mulf %102, %99 : vector<1x32xf32>
    %104 = arith.select %101, %99, %103 : vector<1x32xi1>, vector<1x32xf32>
    %c1_73 = arith.constant 1 : index
    %c0_74 = arith.constant 0 : index
    %c0_75 = arith.constant 0 : index
    %105 = vector.load %arg9[%c1_73, %c0_74, %c0_75] : memref<4x32x16xf32, #tpu.memory_space<vmem>>, vector<1x32x16xf32>
    %106 = vector.shape_cast %105 : vector<1x32x16xf32> to vector<32x16xf32>
    %cst_76 = arith.constant dense<0.000000e+00> : vector<1x16xf32>
    %107 = tpu.matmul %104, %106, %cst_76 {dimension_numbers = #tpu.dot_dimension_numbers<[1], [0], [0], [1], [0, 0, 1, 1], [], []>} : vector<1x32xf32>, vector<32x16xf32>, vector<1x16xf32> -> vector<1x16xf32>
    %c1_77 = arith.constant 1 : index
    %c0_78 = arith.constant 0 : index
    %c0_79 = arith.constant 0 : index
    %108 = vector.load %arg10[%c1_77, %c0_78, %c0_79] : memref<4x1x16xf32, #tpu.memory_space<vmem>>, vector<1x1x16xf32>
    %109 = vector.shape_cast %108 : vector<1x1x16xf32> to vector<1x16xf32>
    %110 = arith.addf %107, %109 : vector<1x16xf32>
    %cst_80 = arith.constant 0.000000e+00 : f32
    %111 = vector.broadcast %cst_80 : f32 to vector<1x16xf32>
    %112 = arith.cmpf oge, %110, %111 : vector<1x16xf32>
    %cst_81 = arith.constant 0.00999999977 : f32
    %113 = vector.broadcast %cst_81 : f32 to vector<1x16xf32>
    %114 = arith.mulf %113, %110 : vector<1x16xf32>
    %115 = arith.select %112, %110, %114 : vector<1x16xi1>, vector<1x16xf32>
    %c1_82 = arith.constant 1 : index
    %c0_83 = arith.constant 0 : index
    %c0_84 = arith.constant 0 : index
    %116 = vector.load %arg11[%c1_82, %c0_83, %c0_84] : memref<4x16x3xf32, #tpu.memory_space<vmem>>, vector<1x16x3xf32>
    %117 = vector.shape_cast %116 : vector<1x16x3xf32> to vector<16x3xf32>
    %cst_85 = arith.constant dense<0.000000e+00> : vector<1x3xf32>
    %118 = tpu.matmul %115, %117, %cst_85 {dimension_numbers = #tpu.dot_dimension_numbers<[1], [0], [0], [1], [0, 0, 1, 1], [], []>} : vector<1x16xf32>, vector<16x3xf32>, vector<1x3xf32> -> vector<1x3xf32>
    %c1_86 = arith.constant 1 : index
    %c0_87 = arith.constant 0 : index
    %c0_88 = arith.constant 0 : index
    %119 = vector.load %arg12[%c1_86, %c0_87, %c0_88] : memref<4x1x3xf32, #tpu.memory_space<vmem>>, vector<1x1x3xf32>
    %120 = vector.shape_cast %119 : vector<1x1x3xf32> to vector<1x3xf32>
    %121 = arith.addf %118, %120 : vector<1x3xf32>
    %122 = vector.extract_strided_slice %0 {offsets = [0, 256], sizes = [8, 128], strides = [1, 1]} : vector<8x512xf32> to vector<8x128xf32>
    %123 = vector.extract_strided_slice %37 {offsets = [0, 256], sizes = [16, 128], strides = [1, 1]} : vector<16x512xf32> to vector<16x128xf32>
    %cst_89 = arith.constant dense<0.000000e+00> : vector<8x16xf32>
    %124 = tpu.matmul %122, %123, %cst_89 {dimension_numbers = #tpu.dot_dimension_numbers<[1], [1], [0], [0], [0, 0, 1, 0], [], []>} : vector<8x128xf32>, vector<16x128xf32>, vector<8x16xf32> -> vector<8x16xf32>
    %c2_90 = arith.constant 2 : index
    %c0_91 = arith.constant 0 : index
    %c0_92 = arith.constant 0 : index
    %125 = vector.load %arg8[%c2_90, %c0_91, %c0_92] : memref<4x1x32xf32, #tpu.memory_space<vmem>>, vector<1x1x32xf32>
    %126 = vector.shape_cast %125 : vector<1x1x32xf32> to vector<1x32xf32>
    %127 = vector.extract_strided_slice %124 {offsets = [0, 0], sizes = [1, 16], strides = [1, 1]} : vector<8x16xf32> to vector<1x16xf32>
    %c2_93 = arith.constant 2 : index
    %c0_94 = arith.constant 0 : index
    %c0_95 = arith.constant 0 : index
    %c0_96 = arith.constant 0 : index
    %128 = vector.load %arg7[%c2_93, %c0_94, %c0_95, %c0_96] : memref<4x3x16x32xf32, #tpu.memory_space<vmem>>, vector<1x1x16x32xf32>
    %129 = vector.shape_cast %128 : vector<1x1x16x32xf32> to vector<16x32xf32>
    %cst_97 = arith.constant dense<0.000000e+00> : vector<1x32xf32>
    %130 = tpu.matmul %127, %129, %cst_97 {dimension_numbers = #tpu.dot_dimension_numbers<[1], [0], [0], [1], [0, 0, 1, 1], [], []>} : vector<1x16xf32>, vector<16x32xf32>, vector<1x32xf32> -> vector<1x32xf32>
    %131 = arith.addf %126, %130 : vector<1x32xf32>
    %132 = vector.extract_strided_slice %124 {offsets = [1, 0], sizes = [1, 16], strides = [1, 1]} : vector<8x16xf32> to vector<1x16xf32>
    %c2_98 = arith.constant 2 : index
    %c1_99 = arith.constant 1 : index
    %c0_100 = arith.constant 0 : index
    %c0_101 = arith.constant 0 : index
    %133 = vector.load %arg7[%c2_98, %c1_99, %c0_100, %c0_101] : memref<4x3x16x32xf32, #tpu.memory_space<vmem>>, vector<1x1x16x32xf32>
    %134 = vector.shape_cast %133 : vector<1x1x16x32xf32> to vector<16x32xf32>
    %cst_102 = arith.constant dense<0.000000e+00> : vector<1x32xf32>
    %135 = tpu.matmul %132, %134, %cst_102 {dimension_numbers = #tpu.dot_dimension_numbers<[1], [0], [0], [1], [0, 0, 1, 1], [], []>} : vector<1x16xf32>, vector<16x32xf32>, vector<1x32xf32> -> vector<1x32xf32>
    %136 = arith.addf %131, %135 : vector<1x32xf32>
    %137 = vector.extract_strided_slice %124 {offsets = [2, 0], sizes = [1, 16], strides = [1, 1]} : vector<8x16xf32> to vector<1x16xf32>
    %c2_103 = arith.constant 2 : index
    %c2_104 = arith.constant 2 : index
    %c0_105 = arith.constant 0 : index
    %c0_106 = arith.constant 0 : index
    %138 = vector.load %arg7[%c2_103, %c2_104, %c0_105, %c0_106] : memref<4x3x16x32xf32, #tpu.memory_space<vmem>>, vector<1x1x16x32xf32>
    %139 = vector.shape_cast %138 : vector<1x1x16x32xf32> to vector<16x32xf32>
    %cst_107 = arith.constant dense<0.000000e+00> : vector<1x32xf32>
    %140 = tpu.matmul %137, %139, %cst_107 {dimension_numbers = #tpu.dot_dimension_numbers<[1], [0], [0], [1], [0, 0, 1, 1], [], []>} : vector<1x16xf32>, vector<16x32xf32>, vector<1x32xf32> -> vector<1x32xf32>
    %141 = arith.addf %136, %140 : vector<1x32xf32>
    %cst_108 = arith.constant 0.000000e+00 : f32
    %142 = vector.broadcast %cst_108 : f32 to vector<1x32xf32>
    %143 = arith.cmpf oge, %141, %142 : vector<1x32xf32>
    %cst_109 = arith.constant 0.00999999977 : f32
    %144 = vector.broadcast %cst_109 : f32 to vector<1x32xf32>
    %145 = arith.mulf %144, %141 : vector<1x32xf32>
    %146 = arith.select %143, %141, %145 : vector<1x32xi1>, vector<1x32xf32>
    %c2_110 = arith.constant 2 : index
    %c0_111 = arith.constant 0 : index
    %c0_112 = arith.constant 0 : index
    %147 = vector.load %arg9[%c2_110, %c0_111, %c0_112] : memref<4x32x16xf32, #tpu.memory_space<vmem>>, vector<1x32x16xf32>
    %148 = vector.shape_cast %147 : vector<1x32x16xf32> to vector<32x16xf32>
    %cst_113 = arith.constant dense<0.000000e+00> : vector<1x16xf32>
    %149 = tpu.matmul %146, %148, %cst_113 {dimension_numbers = #tpu.dot_dimension_numbers<[1], [0], [0], [1], [0, 0, 1, 1], [], []>} : vector<1x32xf32>, vector<32x16xf32>, vector<1x16xf32> -> vector<1x16xf32>
    %c2_114 = arith.constant 2 : index
    %c0_115 = arith.constant 0 : index
    %c0_116 = arith.constant 0 : index
    %150 = vector.load %arg10[%c2_114, %c0_115, %c0_116] : memref<4x1x16xf32, #tpu.memory_space<vmem>>, vector<1x1x16xf32>
    %151 = vector.shape_cast %150 : vector<1x1x16xf32> to vector<1x16xf32>
    %152 = arith.addf %149, %151 : vector<1x16xf32>
    %cst_117 = arith.constant 0.000000e+00 : f32
    %153 = vector.broadcast %cst_117 : f32 to vector<1x16xf32>
    %154 = arith.cmpf oge, %152, %153 : vector<1x16xf32>
    %cst_118 = arith.constant 0.00999999977 : f32
    %155 = vector.broadcast %cst_118 : f32 to vector<1x16xf32>
    %156 = arith.mulf %155, %152 : vector<1x16xf32>
    %157 = arith.select %154, %152, %156 : vector<1x16xi1>, vector<1x16xf32>
    %c2_119 = arith.constant 2 : index
    %c0_120 = arith.constant 0 : index
    %c0_121 = arith.constant 0 : index
    %158 = vector.load %arg11[%c2_119, %c0_120, %c0_121] : memref<4x16x3xf32, #tpu.memory_space<vmem>>, vector<1x16x3xf32>
    %159 = vector.shape_cast %158 : vector<1x16x3xf32> to vector<16x3xf32>
    %cst_122 = arith.constant dense<0.000000e+00> : vector<1x3xf32>
    %160 = tpu.matmul %157, %159, %cst_122 {dimension_numbers = #tpu.dot_dimension_numbers<[1], [0], [0], [1], [0, 0, 1, 1], [], []>} : vector<1x16xf32>, vector<16x3xf32>, vector<1x3xf32> -> vector<1x3xf32>
    %c2_123 = arith.constant 2 : index
    %c0_124 = arith.constant 0 : index
    %c0_125 = arith.constant 0 : index
    %161 = vector.load %arg12[%c2_123, %c0_124, %c0_125] : memref<4x1x3xf32, #tpu.memory_space<vmem>>, vector<1x1x3xf32>
    %162 = vector.shape_cast %161 : vector<1x1x3xf32> to vector<1x3xf32>
    %163 = arith.addf %160, %162 : vector<1x3xf32>
    %164 = vector.extract_strided_slice %0 {offsets = [0, 384], sizes = [8, 128], strides = [1, 1]} : vector<8x512xf32> to vector<8x128xf32>
    %165 = vector.extract_strided_slice %37 {offsets = [0, 384], sizes = [16, 128], strides = [1, 1]} : vector<16x512xf32> to vector<16x128xf32>
    %cst_126 = arith.constant dense<0.000000e+00> : vector<8x16xf32>
    %166 = tpu.matmul %164, %165, %cst_126 {dimension_numbers = #tpu.dot_dimension_numbers<[1], [1], [0], [0], [0, 0, 1, 0], [], []>} : vector<8x128xf32>, vector<16x128xf32>, vector<8x16xf32> -> vector<8x16xf32>
    %c3 = arith.constant 3 : index
    %c0_127 = arith.constant 0 : index
    %c0_128 = arith.constant 0 : index
    %167 = vector.load %arg8[%c3, %c0_127, %c0_128] : memref<4x1x32xf32, #tpu.memory_space<vmem>>, vector<1x1x32xf32>
    %168 = vector.shape_cast %167 : vector<1x1x32xf32> to vector<1x32xf32>
    %169 = vector.extract_strided_slice %166 {offsets = [0, 0], sizes = [1, 16], strides = [1, 1]} : vector<8x16xf32> to vector<1x16xf32>
    %c3_129 = arith.constant 3 : index
    %c0_130 = arith.constant 0 : index
    %c0_131 = arith.constant 0 : index
    %c0_132 = arith.constant 0 : index
    %170 = vector.load %arg7[%c3_129, %c0_130, %c0_131, %c0_132] : memref<4x3x16x32xf32, #tpu.memory_space<vmem>>, vector<1x1x16x32xf32>
    %171 = vector.shape_cast %170 : vector<1x1x16x32xf32> to vector<16x32xf32>
    %cst_133 = arith.constant dense<0.000000e+00> : vector<1x32xf32>
    %172 = tpu.matmul %169, %171, %cst_133 {dimension_numbers = #tpu.dot_dimension_numbers<[1], [0], [0], [1], [0, 0, 1, 1], [], []>} : vector<1x16xf32>, vector<16x32xf32>, vector<1x32xf32> -> vector<1x32xf32>
    %173 = arith.addf %168, %172 : vector<1x32xf32>
    %174 = vector.extract_strided_slice %166 {offsets = [1, 0], sizes = [1, 16], strides = [1, 1]} : vector<8x16xf32> to vector<1x16xf32>
    %c3_134 = arith.constant 3 : index
    %c1_135 = arith.constant 1 : index
    %c0_136 = arith.constant 0 : index
    %c0_137 = arith.constant 0 : index
    %175 = vector.load %arg7[%c3_134, %c1_135, %c0_136, %c0_137] : memref<4x3x16x32xf32, #tpu.memory_space<vmem>>, vector<1x1x16x32xf32>
    %176 = vector.shape_cast %175 : vector<1x1x16x32xf32> to vector<16x32xf32>
    %cst_138 = arith.constant dense<0.000000e+00> : vector<1x32xf32>
    %177 = tpu.matmul %174, %176, %cst_138 {dimension_numbers = #tpu.dot_dimension_numbers<[1], [0], [0], [1], [0, 0, 1, 1], [], []>} : vector<1x16xf32>, vector<16x32xf32>, vector<1x32xf32> -> vector<1x32xf32>
    %178 = arith.addf %173, %177 : vector<1x32xf32>
    %179 = vector.extract_strided_slice %166 {offsets = [2, 0], sizes = [1, 16], strides = [1, 1]} : vector<8x16xf32> to vector<1x16xf32>
    %c3_139 = arith.constant 3 : index
    %c2_140 = arith.constant 2 : index
    %c0_141 = arith.constant 0 : index
    %c0_142 = arith.constant 0 : index
    %180 = vector.load %arg7[%c3_139, %c2_140, %c0_141, %c0_142] : memref<4x3x16x32xf32, #tpu.memory_space<vmem>>, vector<1x1x16x32xf32>
    %181 = vector.shape_cast %180 : vector<1x1x16x32xf32> to vector<16x32xf32>
    %cst_143 = arith.constant dense<0.000000e+00> : vector<1x32xf32>
    %182 = tpu.matmul %179, %181, %cst_143 {dimension_numbers = #tpu.dot_dimension_numbers<[1], [0], [0], [1], [0, 0, 1, 1], [], []>} : vector<1x16xf32>, vector<16x32xf32>, vector<1x32xf32> -> vector<1x32xf32>
    %183 = arith.addf %178, %182 : vector<1x32xf32>
    %cst_144 = arith.constant 0.000000e+00 : f32
    %184 = vector.broadcast %cst_144 : f32 to vector<1x32xf32>
    %185 = arith.cmpf oge, %183, %184 : vector<1x32xf32>
    %cst_145 = arith.constant 0.00999999977 : f32
    %186 = vector.broadcast %cst_145 : f32 to vector<1x32xf32>
    %187 = arith.mulf %186, %183 : vector<1x32xf32>
    %188 = arith.select %185, %183, %187 : vector<1x32xi1>, vector<1x32xf32>
    %c3_146 = arith.constant 3 : index
    %c0_147 = arith.constant 0 : index
    %c0_148 = arith.constant 0 : index
    %189 = vector.load %arg9[%c3_146, %c0_147, %c0_148] : memref<4x32x16xf32, #tpu.memory_space<vmem>>, vector<1x32x16xf32>
    %190 = vector.shape_cast %189 : vector<1x32x16xf32> to vector<32x16xf32>
    %cst_149 = arith.constant dense<0.000000e+00> : vector<1x16xf32>
    %191 = tpu.matmul %188, %190, %cst_149 {dimension_numbers = #tpu.dot_dimension_numbers<[1], [0], [0], [1], [0, 0, 1, 1], [], []>} : vector<1x32xf32>, vector<32x16xf32>, vector<1x16xf32> -> vector<1x16xf32>
    %c3_150 = arith.constant 3 : index
    %c0_151 = arith.constant 0 : index
    %c0_152 = arith.constant 0 : index
    %192 = vector.load %arg10[%c3_150, %c0_151, %c0_152] : memref<4x1x16xf32, #tpu.memory_space<vmem>>, vector<1x1x16xf32>
    %193 = vector.shape_cast %192 : vector<1x1x16xf32> to vector<1x16xf32>
    %194 = arith.addf %191, %193 : vector<1x16xf32>
    %cst_153 = arith.constant 0.000000e+00 : f32
    %195 = vector.broadcast %cst_153 : f32 to vector<1x16xf32>
    %196 = arith.cmpf oge, %194, %195 : vector<1x16xf32>
    %cst_154 = arith.constant 0.00999999977 : f32
    %197 = vector.broadcast %cst_154 : f32 to vector<1x16xf32>
    %198 = arith.mulf %197, %194 : vector<1x16xf32>
    %199 = arith.select %196, %194, %198 : vector<1x16xi1>, vector<1x16xf32>
    %c3_155 = arith.constant 3 : index
    %c0_156 = arith.constant 0 : index
    %c0_157 = arith.constant 0 : index
    %200 = vector.load %arg11[%c3_155, %c0_156, %c0_157] : memref<4x16x3xf32, #tpu.memory_space<vmem>>, vector<1x16x3xf32>
    %201 = vector.shape_cast %200 : vector<1x16x3xf32> to vector<16x3xf32>
    %cst_158 = arith.constant dense<0.000000e+00> : vector<1x3xf32>
    %202 = tpu.matmul %199, %201, %cst_158 {dimension_numbers = #tpu.dot_dimension_numbers<[1], [0], [0], [1], [0, 0, 1, 1], [], []>} : vector<1x16xf32>, vector<16x3xf32>, vector<1x3xf32> -> vector<1x3xf32>
    %c3_159 = arith.constant 3 : index
    %c0_160 = arith.constant 0 : index
    %c0_161 = arith.constant 0 : index
    %203 = vector.load %arg12[%c3_159, %c0_160, %c0_161] : memref<4x1x3xf32, #tpu.memory_space<vmem>>, vector<1x1x3xf32>
    %204 = vector.shape_cast %203 : vector<1x1x3xf32> to vector<1x3xf32>
    %205 = arith.addf %202, %204 : vector<1x3xf32>
    %206 = tpu.concatenate %79, %121, %163, %205 in 0 : vector<1x3xf32>, vector<1x3xf32>, vector<1x3xf32>, vector<1x3xf32> -> vector<4x3xf32>
    %c0_162 = arith.constant 0 : index
    %c0_163 = arith.constant 0 : index
    %207 = vector.load %arg13[%c0_162, %c0_163] : memref<4x3xf32, #tpu.memory_space<vmem>>, vector<4x3xf32>
    tpu.vector_store %arg13[%c0_162, %c0_163], %206 {strides = array<i32>} : memref<4x3xf32, #tpu.memory_space<vmem>>, vector<4x3xf32>,
    return
  }
  func.func @transform_0(%arg0: i32) -> (i32, i32) {
    %c0_i32 = arith.constant 0 : i32
    %c0_i32_0 = arith.constant 0 : i32
    %c0_i32_1 = arith.constant 0 : i32
    return %c0_i32, %c0_i32_0 : i32, i32
  }
  func.func @transform_1(%arg0: i32) -> (i32, i32) {
    %c0_i32 = arith.constant 0 : i32
    %c0_i32_0 = arith.constant 0 : i32
    %c0_i32_1 = arith.constant 0 : i32
    return %c0_i32, %c0_i32_0 : i32, i32
  }
  func.func @transform_2(%arg0: i32) -> (i32, i32) {
    %c0_i32 = arith.constant 0 : i32
    %c0_i32_0 = arith.constant 0 : i32
    %c0_i32_1 = arith.constant 0 : i32
    return %c0_i32, %c0_i32_0 : i32, i32
  }
  func.func @transform_3(%arg0: i32) -> (i32, i32) {
    %c0_i32 = arith.constant 0 : i32
    %c0_i32_0 = arith.constant 0 : i32
    %c0_i32_1 = arith.constant 0 : i32
    return %c0_i32, %c0_i32_0 : i32, i32
  }
  func.func @transform_4(%arg0: i32) -> (i32, i32) {
    %c0_i32 = arith.constant 0 : i32
    %c0_i32_0 = arith.constant 0 : i32
    %c0_i32_1 = arith.constant 0 : i32
    return %c0_i32, %c0_i32_0 : i32, i32
  }
  func.func @transform_5(%arg0: i32) -> (i32, i32) {
    %c0_i32 = arith.constant 0 : i32
    %c0_i32_0 = arith.constant 0 : i32
    %c0_i32_1 = arith.constant 0 : i32
    return %c0_i32, %c0_i32_0 : i32, i32
  }
  func.func @transform_6(%arg0: i32) -> (i32, i32, i32, i32) {
    %c0_i32 = arith.constant 0 : i32
    %c0_i32_0 = arith.constant 0 : i32
    %c0_i32_1 = arith.constant 0 : i32
    %c0_i32_2 = arith.constant 0 : i32
    %c0_i32_3 = arith.constant 0 : i32
    return %c0_i32, %c0_i32_0, %c0_i32_1, %c0_i32_2 : i32, i32, i32, i32
  }
  func.func @transform_7(%arg0: i32) -> (i32, i32, i32) {
    %c0_i32 = arith.constant 0 : i32
    %c0_i32_0 = arith.constant 0 : i32
    %c0_i32_1 = arith.constant 0 : i32
    %c0_i32_2 = arith.constant 0 : i32
    return %c0_i32, %c0_i32_0, %c0_i32_1 : i32, i32, i32
  }
  func.func @transform_8(%arg0: i32) -> (i32, i32, i32) {
    %c0_i32 = arith.constant 0 : i32
    %c0_i32_0 = arith.constant 0 : i32
    %c0_i32_1 = arith.constant 0 : i32
    %c0_i32_2 = arith.constant 0 : i32
    return %c0_i32, %c0_i32_0, %c0_i32_1 : i32, i32, i32
  }
  func.func @transform_9(%arg0: i32) -> (i32, i32, i32) {
    %c0_i32 = arith.constant 0 : i32
    %c0_i32_0 = arith.constant 0 : i32
    %c0_i32_1 = arith.constant 0 : i32
    %c0_i32_2 = arith.constant 0 : i32
    return %c0_i32, %c0_i32_0, %c0_i32_1 : i32, i32, i32
  }
  func.func @transform_10(%arg0: i32) -> (i32, i32, i32) {
    %c0_i32 = arith.constant 0 : i32
    %c0_i32_0 = arith.constant 0 : i32
    %c0_i32_1 = arith.constant 0 : i32
    %c0_i32_2 = arith.constant 0 : i32
    return %c0_i32, %c0_i32_0, %c0_i32_1 : i32, i32, i32
  }
  func.func @transform_11(%arg0: i32) -> (i32, i32, i32) {
    %c0_i32 = arith.constant 0 : i32
    %c0_i32_0 = arith.constant 0 : i32
    %c0_i32_1 = arith.constant 0 : i32
    %c0_i32_2 = arith.constant 0 : i32
    return %c0_i32, %c0_i32_0, %c0_i32_1 : i32, i32, i32
  }
  func.func @transform_12(%arg0: i32) -> (i32, i32) {
    %c0_i32 = arith.constant 0 : i32
    %c0_i32_0 = arith.constant 0 : i32
    %c0_i32_1 = arith.constant 0 : i32
    return %c0_i32, %c0_i32_0 : i32, i32
  }
}

</mosaic_0001>

<llo_original>
// kernel: tpu_custom_call.1
$region0: #{tpu_custom_call.1}
  #allocation0 [shape = 'u32[]', space=smem, size = 0x4, offset = 0x4, fixed_abs, tag = 'smem constant byte address 0x4 - core index']
  #allocation1 [shape = 'u32[144,128]{1,0:T(1,128)}', space=vmem, size = 0x12000, scoped, tag = 'internal scratch']
  %s0 = inlined_call_operand.vmem [shape: f32[8,512], index: 0, kind: input, shape index: {}]
  %s1 = inlined_call_operand.vmem [shape: f32[3,512], index: 1, kind: input, shape index: {}]
  %s2 = inlined_call_operand.vmem [shape: f32[24,8], index: 2, kind: input, shape index: {}]
  %s3 = inlined_call_operand.vmem [shape: f32[24,1], index: 3, kind: input, shape index: {}]
  %s4 = inlined_call_operand.vmem [shape: f32[48,24], index: 4, kind: input, shape index: {}]
  %s5 = inlined_call_operand.vmem [shape: f32[48,1], index: 5, kind: input, shape index: {}]
  %s6 = inlined_call_operand.vmem [shape: f32[4,3,16,32], index: 6, kind: input, shape index: {}]
  %s7 = inlined_call_operand.vmem [shape: f32[4,1,32], index: 7, kind: input, shape index: {}]
  %s8 = inlined_call_operand.vmem [shape: f32[4,32,16], index: 8, kind: input, shape index: {}]
  %s9 = inlined_call_operand.vmem [shape: f32[4,1,16], index: 9, kind: input, shape index: {}]
  %s10 = inlined_call_operand.vmem [shape: f32[4,16,3], index: 10, kind: input, shape index: {}]
  %s11 = inlined_call_operand.vmem [shape: f32[4,1,3], index: 11, kind: input, shape index: {}]
  %s12 = inlined_call_operand.hbm [shape: f32[4,3], index: 12, kind: output, shape index: {}]
  %s13 = sld [smem:[#allocation0]]
  $region58: #{tpu_custom_call.1} parent=0
    _
  %s15 = ssub.s32 1, %s13
  %s16 = scalar_select 0, %s15, %s13
  $region1: #{tpu_custom_call.1} parent=0
    #allocation2 [shape = 'u8[2048]{0}', space=vmem, size = 0x800, scoped, tag = 'output window, operand 0, single buffered']
    #allocation3 [shape = 's32[1]{0}', space=sflag, size = 0x4, scoped, tag = 'scoped memory for tpu_custom_call.1']
    %17 = vsyncpa [#allocation3], 0
    // Predicated region
    $region2: #{tpu_custom_call.1} parent=1 // pred_check
      _
    $region3: #{tpu_custom_call.1} parent=1 // pred_check_branch
      %19 = sbr.rel (0) target = $region5
    $region4: #{tpu_custom_call.1} parent=1 // pred_region
      _
    $region5: #{tpu_custom_call.1} parent=1 // pred_fallthru
      _
    // Predicated region
    $region6: #{tpu_custom_call.1} parent=1 // pred_check
      _
    $region7: #{tpu_custom_call.1} parent=1 // pred_check_branch
      %21 = sbr.rel (0) target = $region9
    $region8: #{tpu_custom_call.1} parent=1 // pred_region
      _
    $region9: #{tpu_custom_call.1} parent=1 // pred_fallthru
      _
    // Predicated region
    $region10: #{tpu_custom_call.1} parent=1 // pred_check
      _
    $region11: #{tpu_custom_call.1} parent=1 // pred_check_branch
      %23 = sbr.rel (0) target = $region13
    $region12: #{tpu_custom_call.1} parent=1 // pred_region
      _
    $region13: #{tpu_custom_call.1} parent=1 // pred_fallthru
      _
    // Predicated region
    $region14: #{tpu_custom_call.1} parent=1 // pred_check
      _
    $region15: #{tpu_custom_call.1} parent=1 // pred_check_branch
      %25 = sbr.rel (0) target = $region17
    $region16: #{tpu_custom_call.1} parent=1 // pred_region
      _
    $region17: #{tpu_custom_call.1} parent=1 // pred_fallthru
      _
    // Predicated region
    $region18: #{tpu_custom_call.1} parent=1 // pred_check
      _
    $region19: #{tpu_custom_call.1} parent=1 // pred_check_branch
      %27 = sbr.rel (0) target = $region21
    $region20: #{tpu_custom_call.1} parent=1 // pred_region
      _
    $region21: #{tpu_custom_call.1} parent=1 // pred_fallthru
      _
    // Predicated region
    $region22: #{tpu_custom_call.1} parent=1 // pred_check
      _
    $region23: #{tpu_custom_call.1} parent=1 // pred_check_branch
      %29 = sbr.rel (0) target = $region25
    $region24: #{tpu_custom_call.1} parent=1 // pred_region
      _
    $region25: #{tpu_custom_call.1} parent=1 // pred_fallthru
      _
    // Predicated region
    $region26: #{tpu_custom_call.1} parent=1 // pred_check
      _
    $region27: #{tpu_custom_call.1} parent=1 // pred_check_branch
      %31 = sbr.rel (0) target = $region29
    $region28: #{tpu_custom_call.1} parent=1 // pred_region
      _
    $region29: #{tpu_custom_call.1} parent=1 // pred_fallthru
      _
    // Predicated region
    $region30: #{tpu_custom_call.1} parent=1 // pred_check
      _
    $region31: #{tpu_custom_call.1} parent=1 // pred_check_branch
      %33 = sbr.rel (0) target = $region33
    $region32: #{tpu_custom_call.1} parent=1 // pred_region
      _
    $region33: #{tpu_custom_call.1} parent=1 // pred_fallthru
      _
    // Predicated region
    $region34: #{tpu_custom_call.1} parent=1 // pred_check
      _
    $region35: #{tpu_custom_call.1} parent=1 // pred_check_branch
      %35 = sbr.rel (0) target = $region37
    $region36: #{tpu_custom_call.1} parent=1 // pred_region
      _
    $region37: #{tpu_custom_call.1} parent=1 // pred_fallthru
      _
    // Predicated region
    $region38: #{tpu_custom_call.1} parent=1 // pred_check
      _
    $region39: #{tpu_custom_call.1} parent=1 // pred_check_branch
      %37 = sbr.rel (0) target = $region41
    $region40: #{tpu_custom_call.1} parent=1 // pred_region
      _
    $region41: #{tpu_custom_call.1} parent=1 // pred_fallthru
      _
    // Predicated region
    $region42: #{tpu_custom_call.1} parent=1 // pred_check
      _
    $region43: #{tpu_custom_call.1} parent=1 // pred_check_branch
      %39 = sbr.rel (0) target = $region45
    $region44: #{tpu_custom_call.1} parent=1 // pred_region
      _
    $region45: #{tpu_custom_call.1} parent=1 // pred_fallthru
      _
    // Predicated region
    $region46: #{tpu_custom_call.1} parent=1 // pred_check
      _
    $region47: #{tpu_custom_call.1} parent=1 // pred_check_branch
      %41 = sbr.rel (0) target = $region49
    $region48: #{tpu_custom_call.1} parent=1 // pred_region
      _
    $region49: #{tpu_custom_call.1} parent=1 // pred_fallthru
      _
    %v42 = vld [vmem:[%s0] sm:$0xff]
    %v43 = vld [vmem:[%s0 + $0x8] sm:$0xff]
    %v44 = vld [vmem:[%s0 + $0x10] sm:$0xff]
    %v45 = vld [vmem:[%s0 + $0x18] sm:$0xff]
    %v46 = vld [vmem:[%s1] sm:$0x77]
    %v47 = vld [vmem:[%s1 + $0x8] sm:$0x77]
    %v48 = vld [vmem:[%s2] sm:$0xff]
    %v49 = vld [vmem:[%s2 + $0x8] sm:$0xff]
    %v50 = vld [vmem:[%s2 + $0x10] sm:$0xff]
    %v51 = vld [vmem:[%s3] sm:$0xff]
    %v52 = vld [vmem:[%s3 + $0x8] sm:$0xff]
    %v53 = vld [vmem:[%s3 + $0x10] sm:$0xff]
    %55 = vset.pattern.permute.xlu0 0
    %56 = vperm.xlu0 %55, %v51
    %v57 = vpop.permute.xlu0 %56
    %60 = vset.pattern.permute.xlu0 0
    %61 = vperm.xlu0 %60, %v52
    %v62 = vpop.permute.xlu0 %61
    %65 = vset.pattern.permute.xlu0 0
    %66 = vperm.xlu0 %65, %v53
    %v67 = vpop.permute.xlu0 %66
    %vm69 = vcmask 64512
    %v71 = vsel %vm69, %v48, 0
    %v74 = vsel %vm69, %v49, 0
    %v77 = vsel %vm69, %v50, 0
    %79 = vmatprep.subr.mxu0 %v43
    %80 = vmatpush1.msra.mxu0 %v42
    %81 = vmatprep.subr.mxu0 0.0
    %82 = vmatpush1.msra.mxu0 0.0
    %83 = vmatprep.subr.mxu0 0.0
    %84 = vmatpush1.msra.mxu0 0.0
    %85 = vmatprep.subr.mxu0 0.0
    %86 = vmatpush1.msra.mxu0 0.0
    %87 = vmatprep.subr.mxu0 0.0
    %88 = vmatpush1.msra.mxu0 0.0
    %89 = vmatprep.subr.mxu0 0.0
    %90 = vmatpush1.msra.mxu0 0.0
    %91 = vmatprep.subr.mxu0 0.0
    %92 = vmatpush1.msra.mxu0 0.0
    %93 = vmatprep.subr.mxu0 0.0
    %94 = vmatpush1.msra.mxu0 0.0
    %95 = vmatprep.subr.mxu0 0.0
    %96 = vmatpush1.msra.mxu0 0.0
    %97 = vmatprep.subr.mxu0 0.0
    %98 = vmatpush1.msra.mxu0 0.0
    %99 = vmatprep.subr.mxu0 0.0
    %100 = vmatpush1.msra.mxu0 0.0
    %101 = vmatprep.subr.mxu0 0.0
    %102 = vmatpush1.msra.mxu0 0.0
    %103 = vmatprep.subr.mxu0 0.0
    %104 = vmatpush1.msra.mxu0 0.0
    %105 = vmatprep.subr.mxu0 0.0
    %106 = vmatpush1.msra.mxu0 0.0
    %107 = vmatprep.subr.mxu0 0.0
    %108 = vmatpush1.msra.mxu0 0.0
    %109 = vmatprep.subr.mxu0 0.0
    %110 = vmatpush1.msra.mxu0 0.0
    %111 = vmatprep.subr.mxu0 0.0
    %112 = vmatpush1.msra.mxu0 0.0
    %113 = vmatprep.subr.mxu0 0.0
    %114 = vmatpush1.msra.mxu0 0.0
    %115 = vmatprep.subr.mxu0 0.0
    %116 = vmatpush1.msra.mxu0 0.0
    %117 = vmatprep.subr.mxu0 0.0
    %118 = vmatpush1.msra.mxu0 0.0
    %119 = vmatprep.subr.mxu0 0.0
    %120 = vmatpush1.msra.mxu0 0.0
    %121 = vmatprep.subr.mxu0 0.0
    %122 = vmatpush1.msra.mxu0 0.0
    %123 = vmatprep.subr.mxu0 0.0
    %124 = vmatpush1.msra.mxu0 0.0
    %125 = vmatprep.subr.mxu0 0.0
    %126 = vmatpush1.msra.mxu0 0.0
    %127 = vmatprep.subr.mxu0 0.0
    %128 = vmatpush1.msra.mxu0 0.0
    %129 = vmatprep.subr.mxu0 0.0
    %130 = vmatpush1.msra.mxu0 0.0
    %131 = vmatprep.subr.mxu0 0.0
    %132 = vmatpush1.msra.mxu0 0.0
    %133 = vmatprep.subr.mxu0 0.0
    %134 = vmatpush1.msra.mxu0 0.0
    %135 = vmatprep.subr.mxu0 0.0
    %136 = vmatpush1.msra.mxu0 0.0
    %137 = vmatprep.subr.mxu0 0.0
    %138 = vmatpush1.msra.mxu0 0.0
    %139 = vmatprep.subr.mxu0 0.0
    %140 = vmatpush1.msra.mxu0 0.0
    %141 = vmatprep.subr.mxu0 0.0
    %142 = vmatpush1.msra.mxu0 0.0
    %143 = vmatprep.mubr.f32.mxu0 0.0
    %144 = vmatmul.mubr.f32.gmra.mrb[0].mxu0 %v71
    %v145 = vpop.f32.mrb[0].mxu0
    %v146 = vadd.f32 %v57, %v145
    %v147 = vpop.f32.mrb[0].mxu0
    %v148 = vadd.f32 %v57, %v147
    %149 = vmatprep.mubr.f32.mxu0 0.0
    %150 = vmatmul.mubr.f32.gmra.mrb[0].mxu0 %v74
    %v151 = vpop.f32.mrb[0].mxu0
    %v152 = vadd.f32 %v62, %v151
    %v153 = vpop.f32.mrb[0].mxu0
    %v154 = vadd.f32 %v62, %v153
    %155 = vmatprep.mubr.f32.mxu0 0.0
    %156 = vmatmul.mubr.f32.gmra.mrb[0].mxu0 %v77
    %v157 = vpop.f32.mrb[0].mxu0
    %v158 = vadd.f32 %v67, %v157
    %v159 = vpop.f32.mrb[0].mxu0
    %v160 = vadd.f32 %v67, %v159
    %161 = vdwg.mxu0
    %162 = vmatprep.subr.mxu0 %v45
    %163 = vmatpush1.msra.mxu0 %v44
    %164 = vmatprep.subr.mxu0 0.0
    %165 = vmatpush1.msra.mxu0 0.0
    %166 = vmatprep.subr.mxu0 0.0
    %167 = vmatpush1.msra.mxu0 0.0
    %168 = vmatprep.subr.mxu0 0.0
    %169 = vmatpush1.msra.mxu0 0.0
    %170 = vmatprep.subr.mxu0 0.0
    %171 = vmatpush1.msra.mxu0 0.0
    %172 = vmatprep.subr.mxu0 0.0
    %173 = vmatpush1.msra.mxu0 0.0
    %174 = vmatprep.subr.mxu0 0.0
    %175 = vmatpush1.msra.mxu0 0.0
    %176 = vmatprep.subr.mxu0 0.0
    %177 = vmatpush1.msra.mxu0 0.0
    %178 = vmatprep.subr.mxu0 0.0
    %179 = vmatpush1.msra.mxu0 0.0
    %180 = vmatprep.subr.mxu0 0.0
    %181 = vmatpush1.msra.mxu0 0.0
    %182 = vmatprep.subr.mxu0 0.0
    %183 = vmatpush1.msra.mxu0 0.0
    %184 = vmatprep.subr.mxu0 0.0
    %185 = vmatpush1.msra.mxu0 0.0
    %186 = vmatprep.subr.mxu0 0.0
    %187 = vmatpush1.msra.mxu0 0.0
    %188 = vmatprep.subr.mxu0 0.0
    %189 = vmatpush1.msra.mxu0 0.0
    %190 = vmatprep.subr.mxu0 0.0
    %191 = vmatpush1.msra.mxu0 0.0
    %192 = vmatprep.subr.mxu0 0.0
    %193 = vmatpush1.msra.mxu0 0.0
    %194 = vmatprep.subr.mxu0 0.0
    %195 = vmatpush1.msra.mxu0 0.0
    %196 = vmatprep.subr.mxu0 0.0
    %197 = vmatpush1.msra.mxu0 0.0
    %198 = vmatprep.subr.mxu0 0.0
    %199 = vmatpush1.msra.mxu0 0.0
    %200 = vmatprep.subr.mxu0 0.0
    %201 = vmatpush1.msra.mxu0 0.0
    %202 = vmatprep.subr.mxu0 0.0
    %203 = vmatpush1.msra.mxu0 0.0
    %204 = vmatprep.subr.mxu0 0.0
    %205 = vmatpush1.msra.mxu0 0.0
    %206 = vmatprep.subr.mxu0 0.0
    %207 = vmatpush1.msra.mxu0 0.0
    %208 = vmatprep.subr.mxu0 0.0
    %209 = vmatpush1.msra.mxu0 0.0
    %210 = vmatprep.subr.mxu0 0.0
    %211 = vmatpush1.msra.mxu0 0.0
    %212 = vmatprep.subr.mxu0 0.0
    %213 = vmatpush1.msra.mxu0 0.0
    %214 = vmatprep.subr.mxu0 0.0
    %215 = vmatpush1.msra.mxu0 0.0
    %216 = vmatprep.subr.mxu0 0.0
    %217 = vmatpush1.msra.mxu0 0.0
    %218 = vmatprep.subr.mxu0 0.0
    %219 = vmatpush1.msra.mxu0 0.0
    %220 = vmatprep.subr.mxu0 0.0
    %221 = vmatpush1.msra.mxu0 0.0
    %222 = vmatprep.subr.mxu0 0.0
    %223 = vmatpush1.msra.mxu0 0.0
    %224 = vmatprep.subr.mxu0 0.0
    %225 = vmatpush1.msra.mxu0 0.0
    %226 = vmatprep.mubr.f32.mxu0 0.0
    %227 = vmatmul.mubr.f32.gmra.mrb[0].mxu0 %v71
    %v228 = vpop.f32.mrb[0].mxu0
    %v229 = vadd.f32 %v57, %v228
    %v230 = vpop.f32.mrb[0].mxu0
    %v231 = vadd.f32 %v57, %v230
    %232 = vmatprep.mubr.f32.mxu0 0.0
    %233 = vmatmul.mubr.f32.gmra.mrb[0].mxu0 %v74
    %v234 = vpop.f32.mrb[0].mxu0
    %v235 = vadd.f32 %v62, %v234
    %v236 = vpop.f32.mrb[0].mxu0
    %v237 = vadd.f32 %v62, %v236
    %238 = vmatprep.mubr.f32.mxu0 0.0
    %239 = vmatmul.mubr.f32.gmra.mrb[0].mxu0 %v77
    %v240 = vpop.f32.mrb[0].mxu0
    %v241 = vadd.f32 %v67, %v240
    %v242 = vpop.f32.mrb[0].mxu0
    %v243 = vadd.f32 %v67, %v242
    %244 = vdwg.mxu0
    %vm245 = vcmp.ge.f32.partialorder %v146, 0.0
    %vm246 = vcmp.ge.f32.partialorder %v148, 0.0
    %vm247 = vcmp.ge.f32.partialorder %v229, 0.0
    %vm248 = vcmp.ge.f32.partialorder %v231, 0.0
    %vm249 = vcmp.ge.f32.partialorder %v152, 0.0
    %vm250 = vcmp.ge.f32.partialorder %v154, 0.0
    %vm251 = vcmp.ge.f32.partialorder %v235, 0.0
    %vm252 = vcmp.ge.f32.partialorder %v237, 0.0
    %vm253 = vcmp.ge.f32.partialorder %v158, 0.0
    %vm254 = vcmp.ge.f32.partialorder %v160, 0.0
    %vm255 = vcmp.ge.f32.partialorder %v241, 0.0
    %vm256 = vcmp.ge.f32.partialorder %v243, 0.0
    %v257 = vmul.f32 %v146, 0.01
    %v258 = vmul.f32 %v148, 0.01
    %v259 = vmul.f32 %v229, 0.01
    %v260 = vmul.f32 %v231, 0.01
    %v261 = vmul.f32 %v152, 0.01
    %v262 = vmul.f32 %v154, 0.01
    %v263 = vmul.f32 %v235, 0.01
    %v264 = vmul.f32 %v237, 0.01
    %v265 = vmul.f32 %v158, 0.01
    %v266 = vmul.f32 %v160, 0.01
    %v267 = vmul.f32 %v241, 0.01
    %v268 = vmul.f32 %v243, 0.01
    %v269 = vsel %vm245, %v146, %v257
    %v270 = vsel %vm246, %v148, %v258
    %v271 = vsel %vm247, %v229, %v259
    %v272 = vsel %vm248, %v231, %v260
    %v273 = vsel %vm249, %v152, %v261
    %v274 = vsel %vm250, %v154, %v262
    %v275 = vsel %vm251, %v235, %v263
    %v276 = vsel %vm252, %v237, %v264
    %v277 = vsel %vm253, %v158, %v265
    %v278 = vsel %vm254, %v160, %v266
    %v279 = vsel %vm255, %v241, %v267
    %v280 = vsel %vm256, %v243, %v268
    %v281 = vld [vmem:[%s4] sm:$0xff]
    %v282 = vld [vmem:[%s4 + $0x8] sm:$0xff]
    %v283 = vld [vmem:[%s4 + $0x10] sm:$0xff]
    %v284 = vld [vmem:[%s4 + $0x18] sm:$0xff]
    %v285 = vld [vmem:[%s4 + $0x20] sm:$0xff]
    %v286 = vld [vmem:[%s4 + $0x28] sm:$0xff]
    %v287 = vld [vmem:[%s5] sm:$0xff]
    %v288 = vld [vmem:[%s5 + $0x8] sm:$0xff]
    %v289 = vld [vmem:[%s5 + $0x10] sm:$0xff]
    %v290 = vld [vmem:[%s5 + $0x18] sm:$0xff]
    %v291 = vld [vmem:[%s5 + $0x20] sm:$0xff]
    %v292 = vld [vmem:[%s5 + $0x28] sm:$0xff]
    %294 = vset.pattern.permute.xlu0 0
    %295 = vperm.xlu0 %294, %v287
    %v296 = vpop.permute.xlu0 %295
    %299 = vset.pattern.permute.xlu0 0
    %300 = vperm.xlu0 %299, %v288
    %v301 = vpop.permute.xlu0 %300
    %304 = vset.pattern.permute.xlu0 0
    %305 = vperm.xlu0 %304, %v289
    %v306 = vpop.permute.xlu0 %305
    %309 = vset.pattern.permute.xlu0 0
    %310 = vperm.xlu0 %309, %v290
    %v311 = vpop.permute.xlu0 %310
    %314 = vset.pattern.permute.xlu0 0
    %315 = vperm.xlu0 %314, %v291
    %v316 = vpop.permute.xlu0 %315
    %319 = vset.pattern.permute.xlu0 0
    %320 = vperm.xlu0 %319, %v292
    %v321 = vpop.permute.xlu0 %320
    %vm323 = vcmask 195584
    %v325 = vsel %vm323, %v281, 0
    %v328 = vsel %vm323, %v282, 0
    %v331 = vsel %vm323, %v283, 0
    %v334 = vsel %vm323, %v284, 0
    %v337 = vsel %vm323, %v285, 0
    %v340 = vsel %vm323, %v286, 0
    %342 = vmatprep.subr.mxu0 %v270
    %343 = vmatpush1.msra.mxu0 %v269
    %344 = vmatprep.subr.mxu0 %v274
    %345 = vmatpush1.msra.mxu0 %v273
    %346 = vmatprep.subr.mxu0 %v278
    %347 = vmatpush1.msra.mxu0 %v277
    %348 = vmatprep.subr.mxu0 0.0
    %349 = vmatpush1.msra.mxu0 0.0
    %350 = vmatprep.subr.mxu0 0.0
    %351 = vmatpush1.msra.mxu0 0.0
    %352 = vmatprep.subr.mxu0 0.0
    %353 = vmatpush1.msra.mxu0 0.0
    %354 = vmatprep.subr.mxu0 0.0
    %355 = vmatpush1.msra.mxu0 0.0
    %356 = vmatprep.subr.mxu0 0.0
    %357 = vmatpush1.msra.mxu0 0.0
    %358 = vmatprep.subr.mxu0 0.0
    %359 = vmatpush1.msra.mxu0 0.0
    %360 = vmatprep.subr.mxu0 0.0
    %361 = vmatpush1.msra.mxu0 0.0
    %362 = vmatprep.subr.mxu0 0.0
    %363 = vmatpush1.msra.mxu0 0.0
    %364 = vmatprep.subr.mxu0 0.0
    %365 = vmatpush1.msra.mxu0 0.0
    %366 = vmatprep.subr.mxu0 0.0
    %367 = vmatpush1.msra.mxu0 0.0
    %368 = vmatprep.subr.mxu0 0.0
    %369 = vmatpush1.msra.mxu0 0.0
    %370 = vmatprep.subr.mxu0 0.0
    %371 = vmatpush1.msra.mxu0 0.0
    %372 = vmatprep.subr.mxu0 0.0
    %373 = vmatpush1.msra.mxu0 0.0
    %374 = vmatprep.subr.mxu0 0.0
    %375 = vmatpush1.msra.mxu0 0.0
    %376 = vmatprep.subr.mxu0 0.0
    %377 = vmatpush1.msra.mxu0 0.0
    %378 = vmatprep.subr.mxu0 0.0
    %379 = vmatpush1.msra.mxu0 0.0
    %380 = vmatprep.subr.mxu0 0.0
    %381 = vmatpush1.msra.mxu0 0.0
    %382 = vmatprep.subr.mxu0 0.0
    %383 = vmatpush1.msra.mxu0 0.0
    %384 = vmatprep.subr.mxu0 0.0
    %385 = vmatpush1.msra.mxu0 0.0
    %386 = vmatprep.subr.mxu0 0.0
    %387 = vmatpush1.msra.mxu0 0.0
    %388 = vmatprep.subr.mxu0 0.0
    %389 = vmatpush1.msra.mxu0 0.0
    %390 = vmatprep.subr.mxu0 0.0
    %391 = vmatpush1.msra.mxu0 0.0
    %392 = vmatprep.subr.mxu0 0.0
    %393 = vmatpush1.msra.mxu0 0.0
    %394 = vmatprep.subr.mxu0 0.0
    %395 = vmatpush1.msra.mxu0 0.0
    %396 = vmatprep.subr.mxu0 0.0
    %397 = vmatpush1.msra.mxu0 0.0
    %398 = vmatprep.subr.mxu0 0.0
    %399 = vmatpush1.msra.mxu0 0.0
    %400 = vmatprep.subr.mxu0 0.0
    %401 = vmatpush1.msra.mxu0 0.0
    %402 = vmatprep.subr.mxu0 0.0
    %403 = vmatpush1.msra.mxu0 0.0
    %404 = vmatprep.subr.mxu0 0.0
    %405 = vmatpush1.msra.mxu0 0.0
    %406 = vmatprep.mubr.f32.mxu0 0.0
    %407 = vmatmul.mubr.f32.gmra.mrb[0].mxu0 %v325
    %v408 = vpop.f32.mrb[0].mxu0
    %v409 = vadd.f32 %v296, %v408
    %v410 = vpop.f32.mrb[0].mxu0
    %v411 = vadd.f32 %v296, %v410
    %412 = vmatprep.mubr.f32.mxu0 0.0
    %413 = vmatmul.mubr.f32.gmra.mrb[0].mxu0 %v328
    %v414 = vpop.f32.mrb[0].mxu0
    %v415 = vadd.f32 %v301, %v414
    %v416 = vpop.f32.mrb[0].mxu0
    %v417 = vadd.f32 %v301, %v416
    %418 = vmatprep.mubr.f32.mxu0 0.0
    %419 = vmatmul.mubr.f32.gmra.mrb[0].mxu0 %v331
    %v420 = vpop.f32.mrb[0].mxu0
    %v421 = vadd.f32 %v306, %v420
    %v422 = vpop.f32.mrb[0].mxu0
    %v423 = vadd.f32 %v306, %v422
    %424 = vmatprep.mubr.f32.mxu0 0.0
    %425 = vmatmul.mubr.f32.gmra.mrb[0].mxu0 %v334
    %v426 = vpop.f32.mrb[0].mxu0
    %v427 = vadd.f32 %v311, %v426
    %v428 = vpop.f32.mrb[0].mxu0
    %v429 = vadd.f32 %v311, %v428
    %430 = vmatprep.mubr.f32.mxu0 0.0
    %431 = vmatmul.mubr.f32.gmra.mrb[0].mxu0 %v337
    %v432 = vpop.f32.mrb[0].mxu0
    %v433 = vadd.f32 %v316, %v432
    %v434 = vpop.f32.mrb[0].mxu0
    %v435 = vadd.f32 %v316, %v434
    %436 = vmatprep.mubr.f32.mxu0 0.0
    %437 = vmatmul.mubr.f32.gmra.mrb[0].mxu0 %v340
    %v438 = vpop.f32.mrb[0].mxu0
    %v439 = vadd.f32 %v321, %v438
    %v440 = vpop.f32.mrb[0].mxu0
    %v441 = vadd.f32 %v321, %v440
    %442 = vdwg.mxu0
    %443 = vmatprep.subr.mxu0 %v272
    %444 = vmatpush1.msra.mxu0 %v271
    %445 = vmatprep.subr.mxu0 %v276
    %446 = vmatpush1.msra.mxu0 %v275
    %447 = vmatprep.subr.mxu0 %v280
    %448 = vmatpush1.msra.mxu0 %v279
    %449 = vmatprep.subr.mxu0 0.0
    %450 = vmatpush1.msra.mxu0 0.0
    %451 = vmatprep.subr.mxu0 0.0
    %452 = vmatpush1.msra.mxu0 0.0
    %453 = vmatprep.subr.mxu0 0.0
    %454 = vmatpush1.msra.mxu0 0.0
    %455 = vmatprep.subr.mxu0 0.0
    %456 = vmatpush1.msra.mxu0 0.0
    %457 = vmatprep.subr.mxu0 0.0
    %458 = vmatpush1.msra.mxu0 0.0
    %459 = vmatprep.subr.mxu0 0.0
    %460 = vmatpush1.msra.mxu0 0.0
    %461 = vmatprep.subr.mxu0 0.0
    %462 = vmatpush1.msra.mxu0 0.0
    %463 = vmatprep.subr.mxu0 0.0
    %464 = vmatpush1.msra.mxu0 0.0
    %465 = vmatprep.subr.mxu0 0.0
    %466 = vmatpush1.msra.mxu0 0.0
    %467 = vmatprep.subr.mxu0 0.0
    %468 = vmatpush1.msra.mxu0 0.0
    %469 = vmatprep.subr.mxu0 0.0
    %470 = vmatpush1.msra.mxu0 0.0
    %471 = vmatprep.subr.mxu0 0.0
    %472 = vmatpush1.msra.mxu0 0.0
    %473 = vmatprep.subr.mxu0 0.0
    %474 = vmatpush1.msra.mxu0 0.0
    %475 = vmatprep.subr.mxu0 0.0
    %476 = vmatpush1.msra.mxu0 0.0
    %477 = vmatprep.subr.mxu0 0.0
    %478 = vmatpush1.msra.mxu0 0.0
    %479 = vmatprep.subr.mxu0 0.0
    %480 = vmatpush1.msra.mxu0 0.0
    %481 = vmatprep.subr.mxu0 0.0
    %482 = vmatpush1.msra.mxu0 0.0
    %483 = vmatprep.subr.mxu0 0.0
    %484 = vmatpush1.msra.mxu0 0.0
    %485 = vmatprep.subr.mxu0 0.0
    %486 = vmatpush1.msra.mxu0 0.0
    %487 = vmatprep.subr.mxu0 0.0
    %488 = vmatpush1.msra.mxu0 0.0
    %489 = vmatprep.subr.mxu0 0.0
    %490 = vmatpush1.msra.mxu0 0.0
    %491 = vmatprep.subr.mxu0 0.0
    %492 = vmatpush1.msra.mxu0 0.0
    %493 = vmatprep.subr.mxu0 0.0
    %494 = vmatpush1.msra.mxu0 0.0
    %495 = vmatprep.subr.mxu0 0.0
    %496 = vmatpush1.msra.mxu0 0.0
    %497 = vmatprep.subr.mxu0 0.0
    %498 = vmatpush1.msra.mxu0 0.0
    %499 = vmatprep.subr.mxu0 0.0
    %500 = vmatpush1.msra.mxu0 0.0
    %501 = vmatprep.subr.mxu0 0.0
    %502 = vmatpush1.msra.mxu0 0.0
    %503 = vmatprep.subr.mxu0 0.0
    %504 = vmatpush1.msra.mxu0 0.0
    %505 = vmatprep.subr.mxu0 0.0
    %506 = vmatpush1.msra.mxu0 0.0
    %507 = vmatprep.mubr.f32.mxu0 0.0
    %508 = vmatmul.mubr.f32.gmra.mrb[0].mxu0 %v325
    %v509 = vpop.f32.mrb[0].mxu0
    %v510 = vadd.f32 %v296, %v509
    %v511 = vpop.f32.mrb[0].mxu0
    %v512 = vadd.f32 %v296, %v511
    %513 = vmatprep.mubr.f32.mxu0 0.0
    %514 = vmatmul.mubr.f32.gmra.mrb[0].mxu0 %v328
    %v515 = vpop.f32.mrb[0].mxu0
    %v516 = vadd.f32 %v301, %v515
    %v517 = vpop.f32.mrb[0].mxu0
    %v518 = vadd.f32 %v301, %v517
    %519 = vmatprep.mubr.f32.mxu0 0.0
    %520 = vmatmul.mubr.f32.gmra.mrb[0].mxu0 %v331
    %v521 = vpop.f32.mrb[0].mxu0
    %v522 = vadd.f32 %v306, %v521
    %v523 = vpop.f32.mrb[0].mxu0
    %v524 = vadd.f32 %v306, %v523
    %525 = vmatprep.mubr.f32.mxu0 0.0
    %526 = vmatmul.mubr.f32.gmra.mrb[0].mxu0 %v334
    %v527 = vpop.f32.mrb[0].mxu0
    %v528 = vadd.f32 %v311, %v527
    %v529 = vpop.f32.mrb[0].mxu0
    %v530 = vadd.f32 %v311, %v529
    %531 = vmatprep.mubr.f32.mxu0 0.0
    %532 = vmatmul.mubr.f32.gmra.mrb[0].mxu0 %v337
    %v533 = vpop.f32.mrb[0].mxu0
    %v534 = vadd.f32 %v316, %v533
    %v535 = vpop.f32.mrb[0].mxu0
    %v536 = vadd.f32 %v316, %v535
    %537 = vmatprep.mubr.f32.mxu0 0.0
    %538 = vmatmul.mubr.f32.gmra.mrb[0].mxu0 %v340
    %v539 = vpop.f32.mrb[0].mxu0
    %v540 = vadd.f32 %v321, %v539
    %v541 = vpop.f32.mrb[0].mxu0
    %v542 = vadd.f32 %v321, %v541
    %543 = vdwg.mxu0
    %vm544 = vcmp.ge.f32.partialorder %v409, 0.0
    %vm545 = vcmp.ge.f32.partialorder %v411, 0.0
    %vm546 = vcmp.ge.f32.partialorder %v510, 0.0
    %vm547 = vcmp.ge.f32.partialorder %v512, 0.0
    %vm548 = vcmp.ge.f32.partialorder %v415, 0.0
    %vm549 = vcmp.ge.f32.partialorder %v417, 0.0
    %vm550 = vcmp.ge.f32.partialorder %v516, 0.0
    %vm551 = vcmp.ge.f32.partialorder %v518, 0.0
    %vm552 = vcmp.ge.f32.partialorder %v421, 0.0
    %vm553 = vcmp.ge.f32.partialorder %v423, 0.0
    %vm554 = vcmp.ge.f32.partialorder %v522, 0.0
    %vm555 = vcmp.ge.f32.partialorder %v524, 0.0
    %vm556 = vcmp.ge.f32.partialorder %v427, 0.0
    %vm557 = vcmp.ge.f32.partialorder %v429, 0.0
    %vm558 = vcmp.ge.f32.partialorder %v528, 0.0
    %vm559 = vcmp.ge.f32.partialorder %v530, 0.0
    %vm560 = vcmp.ge.f32.partialorder %v433, 0.0
    %vm561 = vcmp.ge.f32.partialorder %v435, 0.0
    %vm562 = vcmp.ge.f32.partialorder %v534, 0.0
    %vm563 = vcmp.ge.f32.partialorder %v536, 0.0
    %vm564 = vcmp.ge.f32.partialorder %v439, 0.0
    %vm565 = vcmp.ge.f32.partialorder %v441, 0.0
    %vm566 = vcmp.ge.f32.partialorder %v540, 0.0
    %vm567 = vcmp.ge.f32.partialorder %v542, 0.0
    %v568 = vmul.f32 %v409, 0.01
    %v569 = vmul.f32 %v411, 0.01
    %v570 = vmul.f32 %v510, 0.01
    %v571 = vmul.f32 %v512, 0.01
    %v572 = vmul.f32 %v415, 0.01
    %v573 = vmul.f32 %v417, 0.01
    %v574 = vmul.f32 %v516, 0.01
    %v575 = vmul.f32 %v518, 0.01
    %v576 = vmul.f32 %v421, 0.01
    %v577 = vmul.f32 %v423, 0.01
    %v578 = vmul.f32 %v522, 0.01
    %v579 = vmul.f32 %v524, 0.01
    %v580 = vmul.f32 %v427, 0.01
    %v581 = vmul.f32 %v429, 0.01
    %v582 = vmul.f32 %v528, 0.01
    %v583 = vmul.f32 %v530, 0.01
    %v584 = vmul.f32 %v433, 0.01
    %v585 = vmul.f32 %v435, 0.01
    %v586 = vmul.f32 %v534, 0.01
    %v587 = vmul.f32 %v536, 0.01
    %v588 = vmul.f32 %v439, 0.01
    %v589 = vmul.f32 %v441, 0.01
    %v590 = vmul.f32 %v540, 0.01
    %v591 = vmul.f32 %v542, 0.01
    %v592 = vsel %vm544, %v409, %v568
    %v593 = vsel %vm545, %v411, %v569
    %v594 = vsel %vm546, %v510, %v570
    %v595 = vsel %vm547, %v512, %v571
    %v596 = vsel %vm548, %v415, %v572
    %v597 = vsel %vm549, %v417, %v573
    %v598 = vsel %vm550, %v516, %v574
    %v599 = vsel %vm551, %v518, %v575
    %v600 = vsel %vm552, %v421, %v576
    %v601 = vsel %vm553, %v423, %v577
    %v602 = vsel %vm554, %v522, %v578
    %v603 = vsel %vm555, %v524, %v579
    %v604 = vsel %vm556, %v427, %v580
    %v605 = vsel %vm557, %v429, %v581
    %v606 = vsel %vm558, %v528, %v582
    %v607 = vsel %vm559, %v530, %v583
    %v608 = vsel %vm560, %v433, %v584
    %v609 = vsel %vm561, %v435, %v585
    %v610 = vsel %vm562, %v534, %v586
    %v611 = vsel %vm563, %v536, %v587
    %v612 = vsel %vm564, %v439, %v588
    %v613 = vsel %vm565, %v441, %v589
    %v614 = vsel %vm566, %v540, %v590
    %v615 = vsel %vm567, %v542, %v591
    %v618 = vlaneseq
    %v619 = vshrl.u32 %v618, 7
    %v620 = vsub.s32 0, %v619
    %v621 = vrot.slane %v46, %v620
    %v622 = vlaneseq
    %v623 = vshrl.u32 %v622, 7
    %v624 = vsub.s32 4, %v623
    %v625 = vrot.slane %v46, %v624
    %v626 = vlaneseq
    %v627 = vshrl.u32 %v626, 7
    %v628 = vsub.s32 0, %v627
    %v629 = vrot.slane %v47, %v628
    %v630 = vlaneseq
    %v631 = vshrl.u32 %v630, 7
    %v632 = vsub.s32 4, %v631
    %v633 = vrot.slane %v47, %v632
    %v638 = vlaneseq
    %v639 = vshrl.u32 %v638, 7
    %v640 = vsub.s32 0, %v639
    %v641 = vrot.slane %v621, %v640
    %v642 = vlaneseq
    %v643 = vshrl.u32 %v642, 7
    %v644 = vsub.s32 0, %v643
    %v645 = vrot.slane %v625, %v644
    %v646 = vlaneseq
    %v647 = vshrl.u32 %v646, 7
    %v648 = vsub.s32 0, %v647
    %v649 = vrot.slane %v629, %v648
    %v650 = vlaneseq
    %v651 = vshrl.u32 %v650, 7
    %v652 = vsub.s32 0, %v651
    %v653 = vrot.slane %v633, %v652
    %v654 = vmul.f32 %v641, %v592
    %v655 = vmul.f32 %v645, %v593
    %v656 = vmul.f32 %v649, %v594
    %v657 = vmul.f32 %v653, %v595
    %v658 = vmul.f32 %v641, %v596
    %v659 = vmul.f32 %v645, %v597
    %v660 = vmul.f32 %v649, %v598
    %v661 = vmul.f32 %v653, %v599
    %v662 = vadd.f32 %v654, 0.0
    %v663 = vadd.f32 %v655, 0.0
    %v664 = vadd.f32 %v656, 0.0
    %v665 = vadd.f32 %v657, 0.0
    %v666 = vadd.f32 %v658, 0.0
    %v667 = vadd.f32 %v659, 0.0
    %v668 = vadd.f32 %v660, 0.0
    %v669 = vadd.f32 %v661, 0.0
    %v670 = vlaneseq
    %v671 = vshrl.u32 %v670, 7
    %v672 = vsub.s32 1, %v671
    %v673 = vrot.slane %v46, %v672
    %v674 = vlaneseq
    %v675 = vshrl.u32 %v674, 7
    %v676 = vsub.s32 5, %v675
    %v677 = vrot.slane %v46, %v676
    %v678 = vlaneseq
    %v679 = vshrl.u32 %v678, 7
    %v680 = vsub.s32 1, %v679
    %v681 = vrot.slane %v47, %v680
    %v682 = vlaneseq
    %v683 = vshrl.u32 %v682, 7
    %v684 = vsub.s32 5, %v683
    %v685 = vrot.slane %v47, %v684
    %v690 = vlaneseq
    %v691 = vshrl.u32 %v690, 7
    %v692 = vsub.s32 1, %v691
    %v693 = vrot.slane %v673, %v692
    %v694 = vlaneseq
    %v695 = vshrl.u32 %v694, 7
    %v696 = vsub.s32 1, %v695
    %v697 = vrot.slane %v677, %v696
    %v698 = vlaneseq
    %v699 = vshrl.u32 %v698, 7
    %v700 = vsub.s32 1, %v699
    %v701 = vrot.slane %v681, %v700
    %v702 = vlaneseq
    %v703 = vshrl.u32 %v702, 7
    %v704 = vsub.s32 1, %v703
    %v705 = vrot.slane %v685, %v704
    %v706 = vmul.f32 %v693, %v600
    %v707 = vmul.f32 %v697, %v601
    %v708 = vmul.f32 %v701, %v602
    %v709 = vmul.f32 %v705, %v603
    %v710 = vmul.f32 %v693, %v604
    %v711 = vmul.f32 %v697, %v605
    %v712 = vmul.f32 %v701, %v606
    %v713 = vmul.f32 %v705, %v607
    %v714 = vadd.f32 %v662, %v706
    %v715 = vadd.f32 %v663, %v707
    %v716 = vadd.f32 %v664, %v708
    %v717 = vadd.f32 %v665, %v709
    %v718 = vadd.f32 %v666, %v710
    %v719 = vadd.f32 %v667, %v711
    %v720 = vadd.f32 %v668, %v712
    %v721 = vadd.f32 %v669, %v713
    %v722 = vlaneseq
    %v723 = vshrl.u32 %v722, 7
    %v724 = vsub.s32 2, %v723
    %v725 = vrot.slane %v46, %v724
    %v726 = vlaneseq
    %v727 = vshrl.u32 %v726, 7
    %v728 = vsub.s32 6, %v727
    %v729 = vrot.slane %v46, %v728
    %v730 = vlaneseq
    %v731 = vshrl.u32 %v730, 7
    %v732 = vsub.s32 2, %v731
    %v733 = vrot.slane %v47, %v732
    %v734 = vlaneseq
    %v735 = vshrl.u32 %v734, 7
    %v736 = vsub.s32 6, %v735
    %v737 = vrot.slane %v47, %v736
    %v742 = vlaneseq
    %v743 = vshrl.u32 %v742, 7
    %v744 = vsub.s32 2, %v743
    %v745 = vrot.slane %v725, %v744
    %v746 = vlaneseq
    %v747 = vshrl.u32 %v746, 7
    %v748 = vsub.s32 2, %v747
    %v749 = vrot.slane %v729, %v748
    %v750 = vlaneseq
    %v751 = vshrl.u32 %v750, 7
    %v752 = vsub.s32 2, %v751
    %v753 = vrot.slane %v733, %v752
    %v754 = vlaneseq
    %v755 = vshrl.u32 %v754, 7
    %v756 = vsub.s32 2, %v755
    %v757 = vrot.slane %v737, %v756
    %v758 = vmul.f32 %v745, %v608
    %v759 = vmul.f32 %v749, %v609
    %v760 = vmul.f32 %v753, %v610
    %v761 = vmul.f32 %v757, %v611
    %v762 = vmul.f32 %v745, %v612
    %v763 = vmul.f32 %v749, %v613
    %v764 = vmul.f32 %v753, %v614
    %v765 = vmul.f32 %v757, %v615
    %v766 = vadd.f32 %v714, %v758
    %v767 = vadd.f32 %v715, %v759
    %v768 = vadd.f32 %v716, %v760
    %v769 = vadd.f32 %v717, %v761
    %v770 = vadd.f32 %v718, %v762
    %v771 = vadd.f32 %v719, %v763
    %v772 = vadd.f32 %v720, %v764
    %v773 = vadd.f32 %v721, %v765
    %774 = vmatprep.subr.mxu0 0.0
    %775 = vmatpush1.xpose.msra.mxu0 %v766
    %776 = vmatprep.subr.mxu0 0.0
    %777 = vmatpush1.xpose.msra.mxu0 %v770
    %778 = vmatprep.subr.mxu0 0.0
    %779 = vmatpush1.xpose.msra.mxu0 0.0
    %780 = vmatprep.subr.mxu0 0.0
    %781 = vmatpush1.xpose.msra.mxu0 0.0
    %782 = vmatprep.subr.mxu0 0.0
    %783 = vmatpush1.xpose.msra.mxu0 0.0
    %784 = vmatprep.subr.mxu0 0.0
    %785 = vmatpush1.xpose.msra.mxu0 0.0
    %786 = vmatprep.subr.mxu0 0.0
    %787 = vmatpush1.xpose.msra.mxu0 0.0
    %788 = vmatprep.subr.mxu0 0.0
    %789 = vmatpush1.xpose.msra.mxu0 0.0
    %790 = vmatprep.subr.mxu0 0.0
    %791 = vmatpush1.xpose.msra.mxu0 0.0
    %792 = vmatprep.subr.mxu0 0.0
    %793 = vmatpush1.xpose.msra.mxu0 0.0
    %794 = vmatprep.subr.mxu0 0.0
    %795 = vmatpush1.xpose.msra.mxu0 0.0
    %796 = vmatprep.subr.mxu0 0.0
    %797 = vmatpush1.xpose.msra.mxu0 0.0
    %798 = vmatprep.subr.mxu0 0.0
    %799 = vmatpush1.xpose.msra.mxu0 0.0
    %800 = vmatprep.subr.mxu0 0.0
    %801 = vmatpush1.xpose.msra.mxu0 0.0
    %802 = vmatprep.subr.mxu0 0.0
    %803 = vmatpush1.xpose.msra.mxu0 0.0
    %804 = vmatprep.subr.mxu0 0.0
    %805 = vmatpush1.xpose.msra.mxu0 0.0
    %806 = vmatprep.subr.mxu0 0.0
    %807 = vmatpush1.xpose.msra.mxu0 0.0
    %808 = vmatprep.subr.mxu0 0.0
    %809 = vmatpush1.xpose.msra.mxu0 0.0
    %810 = vmatprep.subr.mxu0 0.0
    %811 = vmatpush1.xpose.msra.mxu0 0.0
    %812 = vmatprep.subr.mxu0 0.0
    %813 = vmatpush1.xpose.msra.mxu0 0.0
    %814 = vmatprep.subr.mxu0 0.0
    %815 = vmatpush1.xpose.msra.mxu0 0.0
    %816 = vmatprep.subr.mxu0 0.0
    %817 = vmatpush1.xpose.msra.mxu0 0.0
    %818 = vmatprep.subr.mxu0 0.0
    %819 = vmatpush1.xpose.msra.mxu0 0.0
    %820 = vmatprep.subr.mxu0 0.0
    %821 = vmatpush1.xpose.msra.mxu0 0.0
    %822 = vmatprep.subr.mxu0 0.0
    %823 = vmatpush1.xpose.msra.mxu0 0.0
    %824 = vmatprep.subr.mxu0 0.0
    %825 = vmatpush1.xpose.msra.mxu0 0.0
    %826 = vmatprep.subr.mxu0 0.0
    %827 = vmatpush1.xpose.msra.mxu0 0.0
    %828 = vmatprep.subr.mxu0 0.0
    %829 = vmatpush1.xpose.msra.mxu0 0.0
    %830 = vmatprep.subr.mxu0 0.0
    %831 = vmatpush1.xpose.msra.mxu0 0.0
    %832 = vmatprep.subr.mxu0 0.0
    %833 = vmatpush1.xpose.msra.mxu0 0.0
    %834 = vmatprep.subr.mxu0 0.0
    %835 = vmatpush1.xpose.msra.mxu0 0.0
    %836 = vmatprep.subr.mxu0 0.0
    %837 = vmatpush1.xpose.msra.mxu0 0.0
    %838 = vmatprep.mubr.f32.mxu0 0.0
    %839 = vmatmul.mubr.f32.gmra.mrb[0].mxu0 %v42
    %v840 = vpop.f32.mrb[0].mxu0
    %v841 = vadd.f32 0.0, %v840
    %v842 = vpop.f32.mrb[0].mxu0
    %843 = vdwg.mxu0
    %v844 = vld [vmem:[%s7] sm:$0x1]
    %v845 = vld [vmem:[%s6] sm:$0xff]
    %v846 = vld [vmem:[%s6 + $0x8] sm:$0xff]
    %vm847 = vcmask 130048
    %v849 = vsel %vm847, %v841, 0
    %851 = vmatprep.subr.mxu0 0.0
    %852 = vmatpush1.msra.mxu0 %v845
    %853 = vmatprep.subr.mxu0 0.0
    %854 = vmatpush1.msra.mxu0 %v846
    %855 = vmatprep.subr.mxu0 0.0
    %856 = vmatpush1.msra.mxu0 0.0
    %857 = vmatprep.subr.mxu0 0.0
    %858 = vmatpush1.msra.mxu0 0.0
    %859 = vmatprep.subr.mxu0 0.0
    %860 = vmatpush1.msra.mxu0 0.0
    %861 = vmatprep.subr.mxu0 0.0
    %862 = vmatpush1.msra.mxu0 0.0
    %863 = vmatprep.subr.mxu0 0.0
    %864 = vmatpush1.msra.mxu0 0.0
    %865 = vmatprep.subr.mxu0 0.0
    %866 = vmatpush1.msra.mxu0 0.0
    %867 = vmatprep.subr.mxu0 0.0
    %868 = vmatpush1.msra.mxu0 0.0
    %869 = vmatprep.subr.mxu0 0.0
    %870 = vmatpush1.msra.mxu0 0.0
    %871 = vmatprep.subr.mxu0 0.0
    %872 = vmatpush1.msra.mxu0 0.0
    %873 = vmatprep.subr.mxu0 0.0
    %874 = vmatpush1.msra.mxu0 0.0
    %875 = vmatprep.subr.mxu0 0.0
    %876 = vmatpush1.msra.mxu0 0.0
    %877 = vmatprep.subr.mxu0 0.0
    %878 = vmatpush1.msra.mxu0 0.0
    %879 = vmatprep.subr.mxu0 0.0
    %880 = vmatpush1.msra.mxu0 0.0
    %881 = vmatprep.subr.mxu0 0.0
    %882 = vmatpush1.msra.mxu0 0.0
    %883 = vmatprep.subr.mxu0 0.0
    %884 = vmatpush1.msra.mxu0 0.0
    %885 = vmatprep.subr.mxu0 0.0
    %886 = vmatpush1.msra.mxu0 0.0
    %887 = vmatprep.subr.mxu0 0.0
    %888 = vmatpush1.msra.mxu0 0.0
    %889 = vmatprep.subr.mxu0 0.0
    %890 = vmatpush1.msra.mxu0 0.0
    %891 = vmatprep.subr.mxu0 0.0
    %892 = vmatpush1.msra.mxu0 0.0
    %893 = vmatprep.subr.mxu0 0.0
    %894 = vmatpush1.msra.mxu0 0.0
    %895 = vmatprep.subr.mxu0 0.0
    %896 = vmatpush1.msra.mxu0 0.0
    %897 = vmatprep.subr.mxu0 0.0
    %898 = vmatpush1.msra.mxu0 0.0
    %899 = vmatprep.subr.mxu0 0.0
    %900 = vmatpush1.msra.mxu0 0.0
    %901 = vmatprep.subr.mxu0 0.0
    %902 = vmatpush1.msra.mxu0 0.0
    %903 = vmatprep.subr.mxu0 0.0
    %904 = vmatpush1.msra.mxu0 0.0
    %905 = vmatprep.subr.mxu0 0.0
    %906 = vmatpush1.msra.mxu0 0.0
    %907 = vmatprep.subr.mxu0 0.0
    %908 = vmatpush1.msra.mxu0 0.0
    %909 = vmatprep.subr.mxu0 0.0
    %910 = vmatpush1.msra.mxu0 0.0
    %911 = vmatprep.subr.mxu0 0.0
    %912 = vmatpush1.msra.mxu0 0.0
    %913 = vmatprep.subr.mxu0 0.0
    %914 = vmatpush1.msra.mxu0 0.0
    %915 = vmatprep.mubr.f32.mxu0 0.0
    %916 = vmatmul.mubr.f32.gmra.mrb[0].mxu0 %v849
    %v917 = vpop.f32.mrb[0].mxu0
    %v918 = vadd.f32 0.0, %v917
    %v919 = vpop.f32.mrb[0].mxu0
    %920 = vdwg.mxu0
    %v921 = vadd.f32 %v844, %v918
    %s922 = scalar_lea.vmem %s6, 16
    %v923 = vld [vmem:[%s922] sm:$0xff]
    %v924 = vld [vmem:[%s922 + $0x8] sm:$0xff]
    %v925 = vrot.slane %v841, 1
    %v926 = vsel %vm847, %v925, 0
    %928 = vmatprep.subr.mxu0 0.0
    %929 = vmatpush1.msra.mxu0 %v923
    %930 = vmatprep.subr.mxu0 0.0
    %931 = vmatpush1.msra.mxu0 %v924
    %932 = vmatprep.subr.mxu0 0.0
    %933 = vmatpush1.msra.mxu0 0.0
    %934 = vmatprep.subr.mxu0 0.0
    %935 = vmatpush1.msra.mxu0 0.0
    %936 = vmatprep.subr.mxu0 0.0
    %937 = vmatpush1.msra.mxu0 0.0
    %938 = vmatprep.subr.mxu0 0.0
    %939 = vmatpush1.msra.mxu0 0.0
    %940 = vmatprep.subr.mxu0 0.0
    %941 = vmatpush1.msra.mxu0 0.0
    %942 = vmatprep.subr.mxu0 0.0
    %943 = vmatpush1.msra.mxu0 0.0
    %944 = vmatprep.subr.mxu0 0.0
    %945 = vmatpush1.msra.mxu0 0.0
    %946 = vmatprep.subr.mxu0 0.0
    %947 = vmatpush1.msra.mxu0 0.0
    %948 = vmatprep.subr.mxu0 0.0
    %949 = vmatpush1.msra.mxu0 0.0
    %950 = vmatprep.subr.mxu0 0.0
    %951 = vmatpush1.msra.mxu0 0.0
    %952 = vmatprep.subr.mxu0 0.0
    %953 = vmatpush1.msra.mxu0 0.0
    %954 = vmatprep.subr.mxu0 0.0
    %955 = vmatpush1.msra.mxu0 0.0
    %956 = vmatprep.subr.mxu0 0.0
    %957 = vmatpush1.msra.mxu0 0.0
    %958 = vmatprep.subr.mxu0 0.0
    %959 = vmatpush1.msra.mxu0 0.0
    %960 = vmatprep.subr.mxu0 0.0
    %961 = vmatpush1.msra.mxu0 0.0
    %962 = vmatprep.subr.mxu0 0.0
    %963 = vmatpush1.msra.mxu0 0.0
    %964 = vmatprep.subr.mxu0 0.0
    %965 = vmatpush1.msra.mxu0 0.0
    %966 = vmatprep.subr.mxu0 0.0
    %967 = vmatpush1.msra.mxu0 0.0
    %968 = vmatprep.subr.mxu0 0.0
    %969 = vmatpush1.msra.mxu0 0.0
    %970 = vmatprep.subr.mxu0 0.0
    %971 = vmatpush1.msra.mxu0 0.0
    %972 = vmatprep.subr.mxu0 0.0
    %973 = vmatpush1.msra.mxu0 0.0
    %974 = vmatprep.subr.mxu0 0.0
    %975 = vmatpush1.msra.mxu0 0.0
    %976 = vmatprep.subr.mxu0 0.0
    %977 = vmatpush1.msra.mxu0 0.0
    %978 = vmatprep.subr.mxu0 0.0
    %979 = vmatpush1.msra.mxu0 0.0
    %980 = vmatprep.subr.mxu0 0.0
    %981 = vmatpush1.msra.mxu0 0.0
    %982 = vmatprep.subr.mxu0 0.0
    %983 = vmatpush1.msra.mxu0 0.0
    %984 = vmatprep.subr.mxu0 0.0
    %985 = vmatpush1.msra.mxu0 0.0
    %986 = vmatprep.subr.mxu0 0.0
    %987 = vmatpush1.msra.mxu0 0.0
    %988 = vmatprep.subr.mxu0 0.0
    %989 = vmatpush1.msra.mxu0 0.0
    %990 = vmatprep.subr.mxu0 0.0
    %991 = vmatpush1.msra.mxu0 0.0
    %992 = vmatprep.mubr.f32.mxu0 0.0
    %993 = vmatmul.mubr.f32.gmra.mrb[0].mxu0 %v926
    %v994 = vpop.f32.mrb[0].mxu0
    %v995 = vadd.f32 0.0, %v994
    %v996 = vpop.f32.mrb[0].mxu0
    %997 = vdwg.mxu0
    %v998 = vadd.f32 %v921, %v995
    %s999 = scalar_lea.vmem %s6, 32
    %v1000 = vld [vmem:[%s999] sm:$0xff]
    %v1001 = vld [vmem:[%s999 + $0x8] sm:$0xff]
    %v1002 = vrot.slane %v841, 2
    %v1003 = vsel %vm847, %v1002, 0
    %1005 = vmatprep.subr.mxu0 0.0
    %1006 = vmatpush1.msra.mxu0 %v1000
    %1007 = vmatprep.subr.mxu0 0.0
    %1008 = vmatpush1.msra.mxu0 %v1001
    %1009 = vmatprep.subr.mxu0 0.0
    %1010 = vmatpush1.msra.mxu0 0.0
    %1011 = vmatprep.subr.mxu0 0.0
    %1012 = vmatpush1.msra.mxu0 0.0
    %1013 = vmatprep.subr.mxu0 0.0
    %1014 = vmatpush1.msra.mxu0 0.0
    %1015 = vmatprep.subr.mxu0 0.0
    %1016 = vmatpush1.msra.mxu0 0.0
    %1017 = vmatprep.subr.mxu0 0.0
    %1018 = vmatpush1.msra.mxu0 0.0
    %1019 = vmatprep.subr.mxu0 0.0
    %1020 = vmatpush1.msra.mxu0 0.0
    %1021 = vmatprep.subr.mxu0 0.0
    %1022 = vmatpush1.msra.mxu0 0.0
    %1023 = vmatprep.subr.mxu0 0.0
    %1024 = vmatpush1.msra.mxu0 0.0
    %1025 = vmatprep.subr.mxu0 0.0
    %1026 = vmatpush1.msra.mxu0 0.0
    %1027 = vmatprep.subr.mxu0 0.0
    %1028 = vmatpush1.msra.mxu0 0.0
    %1029 = vmatprep.subr.mxu0 0.0
    %1030 = vmatpush1.msra.mxu0 0.0
    %1031 = vmatprep.subr.mxu0 0.0
    %1032 = vmatpush1.msra.mxu0 0.0
    %1033 = vmatprep.subr.mxu0 0.0
    %1034 = vmatpush1.msra.mxu0 0.0
    %1035 = vmatprep.subr.mxu0 0.0
    %1036 = vmatpush1.msra.mxu0 0.0
    %1037 = vmatprep.subr.mxu0 0.0
    %1038 = vmatpush1.msra.mxu0 0.0
    %1039 = vmatprep.subr.mxu0 0.0
    %1040 = vmatpush1.msra.mxu0 0.0
    %1041 = vmatprep.subr.mxu0 0.0
    %1042 = vmatpush1.msra.mxu0 0.0
    %1043 = vmatprep.subr.mxu0 0.0
    %1044 = vmatpush1.msra.mxu0 0.0
    %1045 = vmatprep.subr.mxu0 0.0
    %1046 = vmatpush1.msra.mxu0 0.0
    %1047 = vmatprep.subr.mxu0 0.0
    %1048 = vmatpush1.msra.mxu0 0.0
    %1049 = vmatprep.subr.mxu0 0.0
    %1050 = vmatpush1.msra.mxu0 0.0
    %1051 = vmatprep.subr.mxu0 0.0
    %1052 = vmatpush1.msra.mxu0 0.0
    %1053 = vmatprep.subr.mxu0 0.0
    %1054 = vmatpush1.msra.mxu0 0.0
    %1055 = vmatprep.subr.mxu0 0.0
    %1056 = vmatpush1.msra.mxu0 0.0
    %1057 = vmatprep.subr.mxu0 0.0
    %1058 = vmatpush1.msra.mxu0 0.0
    %1059 = vmatprep.subr.mxu0 0.0
    %1060 = vmatpush1.msra.mxu0 0.0
    %1061 = vmatprep.subr.mxu0 0.0
    %1062 = vmatpush1.msra.mxu0 0.0
    %1063 = vmatprep.subr.mxu0 0.0
    %1064 = vmatpush1.msra.mxu0 0.0
    %1065 = vmatprep.subr.mxu0 0.0
    %1066 = vmatpush1.msra.mxu0 0.0
    %1067 = vmatprep.subr.mxu0 0.0
    %1068 = vmatpush1.msra.mxu0 0.0
    %1069 = vmatprep.mubr.f32.mxu0 0.0
    %1070 = vmatmul.mubr.f32.gmra.mrb[0].mxu0 %v1003
    %v1071 = vpop.f32.mrb[0].mxu0
    %v1072 = vadd.f32 0.0, %v1071
    %v1073 = vpop.f32.mrb[0].mxu0
    %1074 = vdwg.mxu0
    %v1075 = vadd.f32 %v998, %v1072
    %vm1076 = vcmp.ge.f32.partialorder %v1075, 0.0
    %v1077 = vmul.f32 %v1075, 0.01
    %v1078 = vsel %vm1076, %v1075, %v1077
    %v1079 = vld [vmem:[%s8] sm:$0xff]
    %v1080 = vld [vmem:[%s8 + $0x8] sm:$0xff]
    %v1081 = vld [vmem:[%s8 + $0x10] sm:$0xff]
    %v1082 = vld [vmem:[%s8 + $0x18] sm:$0xff]
    %v1083 = vld [vmem:[%s9] sm:$0x1]
    %vm1084 = vcmask 261120
    %v1086 = vsel %vm1084, %v1078, 0
    %1088 = vmatprep.subr.mxu0 0.0
    %1089 = vmatpush1.msra.mxu0 %v1079
    %1090 = vmatprep.subr.mxu0 0.0
    %1091 = vmatpush1.msra.mxu0 %v1080
    %1092 = vmatprep.subr.mxu0 0.0
    %1093 = vmatpush1.msra.mxu0 %v1081
    %1094 = vmatprep.subr.mxu0 0.0
    %1095 = vmatpush1.msra.mxu0 %v1082
    %1096 = vmatprep.subr.mxu0 0.0
    %1097 = vmatpush1.msra.mxu0 0.0
    %1098 = vmatprep.subr.mxu0 0.0
    %1099 = vmatpush1.msra.mxu0 0.0
    %1100 = vmatprep.subr.mxu0 0.0
    %1101 = vmatpush1.msra.mxu0 0.0
    %1102 = vmatprep.subr.mxu0 0.0
    %1103 = vmatpush1.msra.mxu0 0.0
    %1104 = vmatprep.subr.mxu0 0.0
    %1105 = vmatpush1.msra.mxu0 0.0
    %1106 = vmatprep.subr.mxu0 0.0
    %1107 = vmatpush1.msra.mxu0 0.0
    %1108 = vmatprep.subr.mxu0 0.0
    %1109 = vmatpush1.msra.mxu0 0.0
    %1110 = vmatprep.subr.mxu0 0.0
    %1111 = vmatpush1.msra.mxu0 0.0
    %1112 = vmatprep.subr.mxu0 0.0
    %1113 = vmatpush1.msra.mxu0 0.0
    %1114 = vmatprep.subr.mxu0 0.0
    %1115 = vmatpush1.msra.mxu0 0.0
    %1116 = vmatprep.subr.mxu0 0.0
    %1117 = vmatpush1.msra.mxu0 0.0
    %1118 = vmatprep.subr.mxu0 0.0
    %1119 = vmatpush1.msra.mxu0 0.0
    %1120 = vmatprep.subr.mxu0 0.0
    %1121 = vmatpush1.msra.mxu0 0.0
    %1122 = vmatprep.subr.mxu0 0.0
    %1123 = vmatpush1.msra.mxu0 0.0
    %1124 = vmatprep.subr.mxu0 0.0
    %1125 = vmatpush1.msra.mxu0 0.0
    %1126 = vmatprep.subr.mxu0 0.0
    %1127 = vmatpush1.msra.mxu0 0.0
    %1128 = vmatprep.subr.mxu0 0.0
    %1129 = vmatpush1.msra.mxu0 0.0
    %1130 = vmatprep.subr.mxu0 0.0
    %1131 = vmatpush1.msra.mxu0 0.0
    %1132 = vmatprep.subr.mxu0 0.0
    %1133 = vmatpush1.msra.mxu0 0.0
    %1134 = vmatprep.subr.mxu0 0.0
    %1135 = vmatpush1.msra.mxu0 0.0
    %1136 = vmatprep.subr.mxu0 0.0
    %1137 = vmatpush1.msra.mxu0 0.0
    %1138 = vmatprep.subr.mxu0 0.0
    %1139 = vmatpush1.msra.mxu0 0.0
    %1140 = vmatprep.subr.mxu0 0.0
    %1141 = vmatpush1.msra.mxu0 0.0
    %1142 = vmatprep.subr.mxu0 0.0
    %1143 = vmatpush1.msra.mxu0 0.0
    %1144 = vmatprep.subr.mxu0 0.0
    %1145 = vmatpush1.msra.mxu0 0.0
    %1146 = vmatprep.subr.mxu0 0.0
    %1147 = vmatpush1.msra.mxu0 0.0
    %1148 = vmatprep.subr.mxu0 0.0
    %1149 = vmatpush1.msra.mxu0 0.0
    %1150 = vmatprep.subr.mxu0 0.0
    %1151 = vmatpush1.msra.mxu0 0.0
    %1152 = vmatprep.mubr.f32.mxu0 0.0
    %1153 = vmatmul.mubr.f32.gmra.mrb[0].mxu0 %v1086
    %v1154 = vpop.f32.mrb[0].mxu0
    %v1155 = vadd.f32 %v1083, %v1154
    %v1156 = vpop.f32.mrb[0].mxu0
    %1157 = vdwg.mxu0
    %vm1158 = vcmp.ge.f32.partialorder %v1155, 0.0
    %v1159 = vmul.f32 %v1155, 0.01
    %v1160 = vsel %vm1158, %v1155, %v1159
    %v1161 = vld [vmem:[%s10] sm:$0xff]
    %v1162 = vld [vmem:[%s10 + $0x8] sm:$0xff]
    %v1163 = vld [vmem:[%s11] sm:$0x1]
    %v1165 = vsel %vm847, %v1160, 0
    %1167 = vmatprep.subr.mxu0 0.0
    %1168 = vmatpush1.msra.mxu0 %v1161
    %1169 = vmatprep.subr.mxu0 0.0
    %1170 = vmatpush1.msra.mxu0 %v1162
    %1171 = vmatprep.subr.mxu0 0.0
    %1172 = vmatpush1.msra.mxu0 0.0
    %1173 = vmatprep.subr.mxu0 0.0
    %1174 = vmatpush1.msra.mxu0 0.0
    %1175 = vmatprep.subr.mxu0 0.0
    %1176 = vmatpush1.msra.mxu0 0.0
    %1177 = vmatprep.subr.mxu0 0.0
    %1178 = vmatpush1.msra.mxu0 0.0
    %1179 = vmatprep.subr.mxu0 0.0
    %1180 = vmatpush1.msra.mxu0 0.0
    %1181 = vmatprep.subr.mxu0 0.0
    %1182 = vmatpush1.msra.mxu0 0.0
    %1183 = vmatprep.subr.mxu0 0.0
    %1184 = vmatpush1.msra.mxu0 0.0
    %1185 = vmatprep.subr.mxu0 0.0
    %1186 = vmatpush1.msra.mxu0 0.0
    %1187 = vmatprep.subr.mxu0 0.0
    %1188 = vmatpush1.msra.mxu0 0.0
    %1189 = vmatprep.subr.mxu0 0.0
    %1190 = vmatpush1.msra.mxu0 0.0
    %1191 = vmatprep.subr.mxu0 0.0
    %1192 = vmatpush1.msra.mxu0 0.0
    %1193 = vmatprep.subr.mxu0 0.0
    %1194 = vmatpush1.msra.mxu0 0.0
    %1195 = vmatprep.subr.mxu0 0.0
    %1196 = vmatpush1.msra.mxu0 0.0
    %1197 = vmatprep.subr.mxu0 0.0
    %1198 = vmatpush1.msra.mxu0 0.0
    %1199 = vmatprep.subr.mxu0 0.0
    %1200 = vmatpush1.msra.mxu0 0.0
    %1201 = vmatprep.subr.mxu0 0.0
    %1202 = vmatpush1.msra.mxu0 0.0
    %1203 = vmatprep.subr.mxu0 0.0
    %1204 = vmatpush1.msra.mxu0 0.0
    %1205 = vmatprep.subr.mxu0 0.0
    %1206 = vmatpush1.msra.mxu0 0.0
    %1207 = vmatprep.subr.mxu0 0.0
    %1208 = vmatpush1.msra.mxu0 0.0
    %1209 = vmatprep.subr.mxu0 0.0
    %1210 = vmatpush1.msra.mxu0 0.0
    %1211 = vmatprep.subr.mxu0 0.0
    %1212 = vmatpush1.msra.mxu0 0.0
    %1213 = vmatprep.subr.mxu0 0.0
    %1214 = vmatpush1.msra.mxu0 0.0
    %1215 = vmatprep.subr.mxu0 0.0
    %1216 = vmatpush1.msra.mxu0 0.0
    %1217 = vmatprep.subr.mxu0 0.0
    %1218 = vmatpush1.msra.mxu0 0.0
    %1219 = vmatprep.subr.mxu0 0.0
    %1220 = vmatpush1.msra.mxu0 0.0
    %1221 = vmatprep.subr.mxu0 0.0
    %1222 = vmatpush1.msra.mxu0 0.0
    %1223 = vmatprep.subr.mxu0 0.0
    %1224 = vmatpush1.msra.mxu0 0.0
    %1225 = vmatprep.subr.mxu0 0.0
    %1226 = vmatpush1.msra.mxu0 0.0
    %1227 = vmatprep.subr.mxu0 0.0
    %1228 = vmatpush1.msra.mxu0 0.0
    %1229 = vmatprep.subr.mxu0 0.0
    %1230 = vmatpush1.msra.mxu0 0.0
    %1231 = vmatprep.mubr.f32.mxu0 0.0
    %1232 = vmatmul.mubr.f32.gmra.mrb[0].mxu0 %v1165
    %v1233 = vpop.f32.mrb[0].mxu0
    %v1234 = vadd.f32 %v1163, %v1233
    %v1235 = vpop.f32.mrb[0].mxu0
    %1236 = vdwg.mxu0
    %1237 = vmatprep.subr.mxu0 0.0
    %1238 = vmatpush1.xpose.msra.mxu0 %v767
    %1239 = vmatprep.subr.mxu0 0.0
    %1240 = vmatpush1.xpose.msra.mxu0 %v771
    %1241 = vmatprep.subr.mxu0 0.0
    %1242 = vmatpush1.xpose.msra.mxu0 0.0
    %1243 = vmatprep.subr.mxu0 0.0
    %1244 = vmatpush1.xpose.msra.mxu0 0.0
    %1245 = vmatprep.subr.mxu0 0.0
    %1246 = vmatpush1.xpose.msra.mxu0 0.0
    %1247 = vmatprep.subr.mxu0 0.0
    %1248 = vmatpush1.xpose.msra.mxu0 0.0
    %1249 = vmatprep.subr.mxu0 0.0
    %1250 = vmatpush1.xpose.msra.mxu0 0.0
    %1251 = vmatprep.subr.mxu0 0.0
    %1252 = vmatpush1.xpose.msra.mxu0 0.0
    %1253 = vmatprep.subr.mxu0 0.0
    %1254 = vmatpush1.xpose.msra.mxu0 0.0
    %1255 = vmatprep.subr.mxu0 0.0
    %1256 = vmatpush1.xpose.msra.mxu0 0.0
    %1257 = vmatprep.subr.mxu0 0.0
    %1258 = vmatpush1.xpose.msra.mxu0 0.0
    %1259 = vmatprep.subr.mxu0 0.0
    %1260 = vmatpush1.xpose.msra.mxu0 0.0
    %1261 = vmatprep.subr.mxu0 0.0
    %1262 = vmatpush1.xpose.msra.mxu0 0.0
    %1263 = vmatprep.subr.mxu0 0.0
    %1264 = vmatpush1.xpose.msra.mxu0 0.0
    %1265 = vmatprep.subr.mxu0 0.0
    %1266 = vmatpush1.xpose.msra.mxu0 0.0
    %1267 = vmatprep.subr.mxu0 0.0
    %1268 = vmatpush1.xpose.msra.mxu0 0.0
    %1269 = vmatprep.subr.mxu0 0.0
    %1270 = vmatpush1.xpose.msra.mxu0 0.0
    %1271 = vmatprep.subr.mxu0 0.0
    %1272 = vmatpush1.xpose.msra.mxu0 0.0
    %1273 = vmatprep.subr.mxu0 0.0
    %1274 = vmatpush1.xpose.msra.mxu0 0.0
    %1275 = vmatprep.subr.mxu0 0.0
    %1276 = vmatpush1.xpose.msra.mxu0 0.0
    %1277 = vmatprep.subr.mxu0 0.0
    %1278 = vmatpush1.xpose.msra.mxu0 0.0
    %1279 = vmatprep.subr.mxu0 0.0
    %1280 = vmatpush1.xpose.msra.mxu0 0.0
    %1281 = vmatprep.subr.mxu0 0.0
    %1282 = vmatpush1.xpose.msra.mxu0 0.0
    %1283 = vmatprep.subr.mxu0 0.0
    %1284 = vmatpush1.xpose.msra.mxu0 0.0
    %1285 = vmatprep.subr.mxu0 0.0
    %1286 = vmatpush1.xpose.msra.mxu0 0.0
    %1287 = vmatprep.subr.mxu0 0.0
    %1288 = vmatpush1.xpose.msra.mxu0 0.0
    %1289 = vmatprep.subr.mxu0 0.0
    %1290 = vmatpush1.xpose.msra.mxu0 0.0
    %1291 = vmatprep.subr.mxu0 0.0
    %1292 = vmatpush1.xpose.msra.mxu0 0.0
    %1293 = vmatprep.subr.mxu0 0.0
    %1294 = vmatpush1.xpose.msra.mxu0 0.0
    %1295 = vmatprep.subr.mxu0 0.0
    %1296 = vmatpush1.xpose.msra.mxu0 0.0
    %1297 = vmatprep.subr.mxu0 0.0
    %1298 = vmatpush1.xpose.msra.mxu0 0.0
    %1299 = vmatprep.subr.mxu0 0.0
    %1300 = vmatpush1.xpose.msra.mxu0 0.0
    %1301 = vmatprep.mubr.f32.mxu0 0.0
    %1302 = vmatmul.mubr.f32.gmra.mrb[0].mxu0 %v43
    %v1303 = vpop.f32.mrb[0].mxu0
    %v1304 = vadd.f32 0.0, %v1303
    %v1305 = vpop.f32.mrb[0].mxu0
    %1306 = vdwg.mxu0
    %s1307 = scalar_lea.vmem %s7, 1
    %v1308 = vld [vmem:[%s1307] sm:$0x1]
    %s1309 = scalar_lea.vmem %s6, 48
    %v1310 = vld [vmem:[%s1309] sm:$0xff]
    %v1311 = vld [vmem:[%s1309 + $0x8] sm:$0xff]
    %v1313 = vsel %vm847, %v1304, 0
    %1315 = vmatprep.subr.mxu0 0.0
    %1316 = vmatpush1.msra.mxu0 %v1310
    %1317 = vmatprep.subr.mxu0 0.0
    %1318 = vmatpush1.msra.mxu0 %v1311
    %1319 = vmatprep.subr.mxu0 0.0
    %1320 = vmatpush1.msra.mxu0 0.0
    %1321 = vmatprep.subr.mxu0 0.0
    %1322 = vmatpush1.msra.mxu0 0.0
    %1323 = vmatprep.subr.mxu0 0.0
    %1324 = vmatpush1.msra.mxu0 0.0
    %1325 = vmatprep.subr.mxu0 0.0
    %1326 = vmatpush1.msra.mxu0 0.0
    %1327 = vmatprep.subr.mxu0 0.0
    %1328 = vmatpush1.msra.mxu0 0.0
    %1329 = vmatprep.subr.mxu0 0.0
    %1330 = vmatpush1.msra.mxu0 0.0
    %1331 = vmatprep.subr.mxu0 0.0
    %1332 = vmatpush1.msra.mxu0 0.0
    %1333 = vmatprep.subr.mxu0 0.0
    %1334 = vmatpush1.msra.mxu0 0.0
    %1335 = vmatprep.subr.mxu0 0.0
    %1336 = vmatpush1.msra.mxu0 0.0
    %1337 = vmatprep.subr.mxu0 0.0
    %1338 = vmatpush1.msra.mxu0 0.0
    %1339 = vmatprep.subr.mxu0 0.0
    %1340 = vmatpush1.msra.mxu0 0.0
    %1341 = vmatprep.subr.mxu0 0.0
    %1342 = vmatpush1.msra.mxu0 0.0
    %1343 = vmatprep.subr.mxu0 0.0
    %1344 = vmatpush1.msra.mxu0 0.0
    %1345 = vmatprep.subr.mxu0 0.0
    %1346 = vmatpush1.msra.mxu0 0.0
    %1347 = vmatprep.subr.mxu0 0.0
    %1348 = vmatpush1.msra.mxu0 0.0
    %1349 = vmatprep.subr.mxu0 0.0
    %1350 = vmatpush1.msra.mxu0 0.0
    %1351 = vmatprep.subr.mxu0 0.0
    %1352 = vmatpush1.msra.mxu0 0.0
    %1353 = vmatprep.subr.mxu0 0.0
    %1354 = vmatpush1.msra.mxu0 0.0
    %1355 = vmatprep.subr.mxu0 0.0
    %1356 = vmatpush1.msra.mxu0 0.0
    %1357 = vmatprep.subr.mxu0 0.0
    %1358 = vmatpush1.msra.mxu0 0.0
    %1359 = vmatprep.subr.mxu0 0.0
    %1360 = vmatpush1.msra.mxu0 0.0
    %1361 = vmatprep.subr.mxu0 0.0
    %1362 = vmatpush1.msra.mxu0 0.0
    %1363 = vmatprep.subr.mxu0 0.0
    %1364 = vmatpush1.msra.mxu0 0.0
    %1365 = vmatprep.subr.mxu0 0.0
    %1366 = vmatpush1.msra.mxu0 0.0
    %1367 = vmatprep.subr.mxu0 0.0
    %1368 = vmatpush1.msra.mxu0 0.0
    %1369 = vmatprep.subr.mxu0 0.0
    %1370 = vmatpush1.msra.mxu0 0.0
    %1371 = vmatprep.subr.mxu0 0.0
    %1372 = vmatpush1.msra.mxu0 0.0
    %1373 = vmatprep.subr.mxu0 0.0
    %1374 = vmatpush1.msra.mxu0 0.0
    %1375 = vmatprep.subr.mxu0 0.0
    %1376 = vmatpush1.msra.mxu0 0.0
    %1377 = vmatprep.subr.mxu0 0.0
    %1378 = vmatpush1.msra.mxu0 0.0
    %1379 = vmatprep.mubr.f32.mxu0 0.0
    %1380 = vmatmul.mubr.f32.gmra.mrb[0].mxu0 %v1313
    %v1381 = vpop.f32.mrb[0].mxu0
    %v1382 = vadd.f32 0.0, %v1381
    %v1383 = vpop.f32.mrb[0].mxu0
    %1384 = vdwg.mxu0
    %v1385 = vadd.f32 %v1308, %v1382
    %s1386 = scalar_lea.vmem %s6, 64
    %v1387 = vld [vmem:[%s1386] sm:$0xff]
    %v1388 = vld [vmem:[%s1386 + $0x8] sm:$0xff]
    %v1389 = vrot.slane %v1304, 1
    %v1390 = vsel %vm847, %v1389, 0
    %1392 = vmatprep.subr.mxu0 0.0
    %1393 = vmatpush1.msra.mxu0 %v1387
    %1394 = vmatprep.subr.mxu0 0.0
    %1395 = vmatpush1.msra.mxu0 %v1388
    %1396 = vmatprep.subr.mxu0 0.0
    %1397 = vmatpush1.msra.mxu0 0.0
    %1398 = vmatprep.subr.mxu0 0.0
    %1399 = vmatpush1.msra.mxu0 0.0
    %1400 = vmatprep.subr.mxu0 0.0
    %1401 = vmatpush1.msra.mxu0 0.0
    %1402 = vmatprep.subr.mxu0 0.0
    %1403 = vmatpush1.msra.mxu0 0.0
    %1404 = vmatprep.subr.mxu0 0.0
    %1405 = vmatpush1.msra.mxu0 0.0
    %1406 = vmatprep.subr.mxu0 0.0
    %1407 = vmatpush1.msra.mxu0 0.0
    %1408 = vmatprep.subr.mxu0 0.0
    %1409 = vmatpush1.msra.mxu0 0.0
    %1410 = vmatprep.subr.mxu0 0.0
    %1411 = vmatpush1.msra.mxu0 0.0
    %1412 = vmatprep.subr.mxu0 0.0
    %1413 = vmatpush1.msra.mxu0 0.0
    %1414 = vmatprep.subr.mxu0 0.0
    %1415 = vmatpush1.msra.mxu0 0.0
    %1416 = vmatprep.subr.mxu0 0.0
    %1417 = vmatpush1.msra.mxu0 0.0
    %1418 = vmatprep.subr.mxu0 0.0
    %1419 = vmatpush1.msra.mxu0 0.0
    %1420 = vmatprep.subr.mxu0 0.0
    %1421 = vmatpush1.msra.mxu0 0.0
    %1422 = vmatprep.subr.mxu0 0.0
    %1423 = vmatpush1.msra.mxu0 0.0
    %1424 = vmatprep.subr.mxu0 0.0
    %1425 = vmatpush1.msra.mxu0 0.0
    %1426 = vmatprep.subr.mxu0 0.0
    %1427 = vmatpush1.msra.mxu0 0.0
    %1428 = vmatprep.subr.mxu0 0.0
    %1429 = vmatpush1.msra.mxu0 0.0
    %1430 = vmatprep.subr.mxu0 0.0
    %1431 = vmatpush1.msra.mxu0 0.0
    %1432 = vmatprep.subr.mxu0 0.0
    %1433 = vmatpush1.msra.mxu0 0.0
    %1434 = vmatprep.subr.mxu0 0.0
    %1435 = vmatpush1.msra.mxu0 0.0
    %1436 = vmatprep.subr.mxu0 0.0
    %1437 = vmatpush1.msra.mxu0 0.0
    %1438 = vmatprep.subr.mxu0 0.0
    %1439 = vmatpush1.msra.mxu0 0.0
    %1440 = vmatprep.subr.mxu0 0.0
    %1441 = vmatpush1.msra.mxu0 0.0
    %1442 = vmatprep.subr.mxu0 0.0
    %1443 = vmatpush1.msra.mxu0 0.0
    %1444 = vmatprep.subr.mxu0 0.0
    %1445 = vmatpush1.msra.mxu0 0.0
    %1446 = vmatprep.subr.mxu0 0.0
    %1447 = vmatpush1.msra.mxu0 0.0
    %1448 = vmatprep.subr.mxu0 0.0
    %1449 = vmatpush1.msra.mxu0 0.0
    %1450 = vmatprep.subr.mxu0 0.0
    %1451 = vmatpush1.msra.mxu0 0.0
    %1452 = vmatprep.subr.mxu0 0.0
    %1453 = vmatpush1.msra.mxu0 0.0
    %1454 = vmatprep.subr.mxu0 0.0
    %1455 = vmatpush1.msra.mxu0 0.0
    %1456 = vmatprep.mubr.f32.mxu0 0.0
    %1457 = vmatmul.mubr.f32.gmra.mrb[0].mxu0 %v1390
    %v1458 = vpop.f32.mrb[0].mxu0
    %v1459 = vadd.f32 0.0, %v1458
    %v1460 = vpop.f32.mrb[0].mxu0
    %1461 = vdwg.mxu0
    %v1462 = vadd.f32 %v1385, %v1459
    %s1463 = scalar_lea.vmem %s6, 80
    %v1464 = vld [vmem:[%s1463] sm:$0xff]
    %v1465 = vld [vmem:[%s1463 + $0x8] sm:$0xff]
    %v1466 = vrot.slane %v1304, 2
    %v1467 = vsel %vm847, %v1466, 0
    %1469 = vmatprep.subr.mxu0 0.0
    %1470 = vmatpush1.msra.mxu0 %v1464
    %1471 = vmatprep.subr.mxu0 0.0
    %1472 = vmatpush1.msra.mxu0 %v1465
    %1473 = vmatprep.subr.mxu0 0.0
    %1474 = vmatpush1.msra.mxu0 0.0
    %1475 = vmatprep.subr.mxu0 0.0
    %1476 = vmatpush1.msra.mxu0 0.0
    %1477 = vmatprep.subr.mxu0 0.0
    %1478 = vmatpush1.msra.mxu0 0.0
    %1479 = vmatprep.subr.mxu0 0.0
    %1480 = vmatpush1.msra.mxu0 0.0
    %1481 = vmatprep.subr.mxu0 0.0
    %1482 = vmatpush1.msra.mxu0 0.0
    %1483 = vmatprep.subr.mxu0 0.0
    %1484 = vmatpush1.msra.mxu0 0.0
    %1485 = vmatprep.subr.mxu0 0.0
    %1486 = vmatpush1.msra.mxu0 0.0
    %1487 = vmatprep.subr.mxu0 0.0
    %1488 = vmatpush1.msra.mxu0 0.0
    %1489 = vmatprep.subr.mxu0 0.0
    %1490 = vmatpush1.msra.mxu0 0.0
    %1491 = vmatprep.subr.mxu0 0.0
    %1492 = vmatpush1.msra.mxu0 0.0
    %1493 = vmatprep.subr.mxu0 0.0
    %1494 = vmatpush1.msra.mxu0 0.0
    %1495 = vmatprep.subr.mxu0 0.0
    %1496 = vmatpush1.msra.mxu0 0.0
    %1497 = vmatprep.subr.mxu0 0.0
    %1498 = vmatpush1.msra.mxu0 0.0
    %1499 = vmatprep.subr.mxu0 0.0
    %1500 = vmatpush1.msra.mxu0 0.0
    %1501 = vmatprep.subr.mxu0 0.0
    %1502 = vmatpush1.msra.mxu0 0.0
    %1503 = vmatprep.subr.mxu0 0.0
    %1504 = vmatpush1.msra.mxu0 0.0
    %1505 = vmatprep.subr.mxu0 0.0
    %1506 = vmatpush1.msra.mxu0 0.0
    %1507 = vmatprep.subr.mxu0 0.0
    %1508 = vmatpush1.msra.mxu0 0.0
    %1509 = vmatprep.subr.mxu0 0.0
    %1510 = vmatpush1.msra.mxu0 0.0
    %1511 = vmatprep.subr.mxu0 0.0
    %1512 = vmatpush1.msra.mxu0 0.0
    %1513 = vmatprep.subr.mxu0 0.0
    %1514 = vmatpush1.msra.mxu0 0.0
    %1515 = vmatprep.subr.mxu0 0.0
    %1516 = vmatpush1.msra.mxu0 0.0
    %1517 = vmatprep.subr.mxu0 0.0
    %1518 = vmatpush1.msra.mxu0 0.0
    %1519 = vmatprep.subr.mxu0 0.0
    %1520 = vmatpush1.msra.mxu0 0.0
    %1521 = vmatprep.subr.mxu0 0.0
    %1522 = vmatpush1.msra.mxu0 0.0
    %1523 = vmatprep.subr.mxu0 0.0
    %1524 = vmatpush1.msra.mxu0 0.0
    %1525 = vmatprep.subr.mxu0 0.0
    %1526 = vmatpush1.msra.mxu0 0.0
    %1527 = vmatprep.subr.mxu0 0.0
    %1528 = vmatpush1.msra.mxu0 0.0
    %1529 = vmatprep.subr.mxu0 0.0
    %1530 = vmatpush1.msra.mxu0 0.0
    %1531 = vmatprep.subr.mxu0 0.0
    %1532 = vmatpush1.msra.mxu0 0.0
    %1533 = vmatprep.mubr.f32.mxu0 0.0
    %1534 = vmatmul.mubr.f32.gmra.mrb[0].mxu0 %v1467
    %v1535 = vpop.f32.mrb[0].mxu0
    %v1536 = vadd.f32 0.0, %v1535
    %v1537 = vpop.f32.mrb[0].mxu0
    %1538 = vdwg.mxu0
    %v1539 = vadd.f32 %v1462, %v1536
    %vm1540 = vcmp.ge.f32.partialorder %v1539, 0.0
    %v1541 = vmul.f32 %v1539, 0.01
    %v1542 = vsel %vm1540, %v1539, %v1541
    %s1543 = scalar_lea.vmem %s8, 32
    %v1544 = vld [vmem:[%s1543] sm:$0xff]
    %v1545 = vld [vmem:[%s1543 + $0x8] sm:$0xff]
    %v1546 = vld [vmem:[%s1543 + $0x10] sm:$0xff]
    %v1547 = vld [vmem:[%s1543 + $0x18] sm:$0xff]
    %s1548 = scalar_lea.vmem %s9, 1
    %v1549 = vld [vmem:[%s1548] sm:$0x1]
    %v1551 = vsel %vm1084, %v1542, 0
    %1553 = vmatprep.subr.mxu0 0.0
    %1554 = vmatpush1.msra.mxu0 %v1544
    %1555 = vmatprep.subr.mxu0 0.0
    %1556 = vmatpush1.msra.mxu0 %v1545
    %1557 = vmatprep.subr.mxu0 0.0
    %1558 = vmatpush1.msra.mxu0 %v1546
    %1559 = vmatprep.subr.mxu0 0.0
    %1560 = vmatpush1.msra.mxu0 %v1547
    %1561 = vmatprep.subr.mxu0 0.0
    %1562 = vmatpush1.msra.mxu0 0.0
    %1563 = vmatprep.subr.mxu0 0.0
    %1564 = vmatpush1.msra.mxu0 0.0
    %1565 = vmatprep.subr.mxu0 0.0
    %1566 = vmatpush1.msra.mxu0 0.0
    %1567 = vmatprep.subr.mxu0 0.0
    %1568 = vmatpush1.msra.mxu0 0.0
    %1569 = vmatprep.subr.mxu0 0.0
    %1570 = vmatpush1.msra.mxu0 0.0
    %1571 = vmatprep.subr.mxu0 0.0
    %1572 = vmatpush1.msra.mxu0 0.0
    %1573 = vmatprep.subr.mxu0 0.0
    %1574 = vmatpush1.msra.mxu0 0.0
    %1575 = vmatprep.subr.mxu0 0.0
    %1576 = vmatpush1.msra.mxu0 0.0
    %1577 = vmatprep.subr.mxu0 0.0
    %1578 = vmatpush1.msra.mxu0 0.0
    %1579 = vmatprep.subr.mxu0 0.0
    %1580 = vmatpush1.msra.mxu0 0.0
    %1581 = vmatprep.subr.mxu0 0.0
    %1582 = vmatpush1.msra.mxu0 0.0
    %1583 = vmatprep.subr.mxu0 0.0
    %1584 = vmatpush1.msra.mxu0 0.0
    %1585 = vmatprep.subr.mxu0 0.0
    %1586 = vmatpush1.msra.mxu0 0.0
    %1587 = vmatprep.subr.mxu0 0.0
    %1588 = vmatpush1.msra.mxu0 0.0
    %1589 = vmatprep.subr.mxu0 0.0
    %1590 = vmatpush1.msra.mxu0 0.0
    %1591 = vmatprep.subr.mxu0 0.0
    %1592 = vmatpush1.msra.mxu0 0.0
    %1593 = vmatprep.subr.mxu0 0.0
    %1594 = vmatpush1.msra.mxu0 0.0
    %1595 = vmatprep.subr.mxu0 0.0
    %1596 = vmatpush1.msra.mxu0 0.0
    %1597 = vmatprep.subr.mxu0 0.0
    %1598 = vmatpush1.msra.mxu0 0.0
    %1599 = vmatprep.subr.mxu0 0.0
    %1600 = vmatpush1.msra.mxu0 0.0
    %1601 = vmatprep.subr.mxu0 0.0
    %1602 = vmatpush1.msra.mxu0 0.0
    %1603 = vmatprep.subr.mxu0 0.0
    %1604 = vmatpush1.msra.mxu0 0.0
    %1605 = vmatprep.subr.mxu0 0.0
    %1606 = vmatpush1.msra.mxu0 0.0
    %1607 = vmatprep.subr.mxu0 0.0
    %1608 = vmatpush1.msra.mxu0 0.0
    %1609 = vmatprep.subr.mxu0 0.0
    %1610 = vmatpush1.msra.mxu0 0.0
    %1611 = vmatprep.subr.mxu0 0.0
    %1612 = vmatpush1.msra.mxu0 0.0
    %1613 = vmatprep.subr.mxu0 0.0
    %1614 = vmatpush1.msra.mxu0 0.0
    %1615 = vmatprep.subr.mxu0 0.0
    %1616 = vmatpush1.msra.mxu0 0.0
    %1617 = vmatprep.mubr.f32.mxu0 0.0
    %1618 = vmatmul.mubr.f32.gmra.mrb[0].mxu0 %v1551
    %v1619 = vpop.f32.mrb[0].mxu0
    %v1620 = vadd.f32 %v1549, %v1619
    %v1621 = vpop.f32.mrb[0].mxu0
    %1622 = vdwg.mxu0
    %vm1623 = vcmp.ge.f32.partialorder %v1620, 0.0
    %v1624 = vmul.f32 %v1620, 0.01
    %v1625 = vsel %vm1623, %v1620, %v1624
    %s1626 = scalar_lea.vmem %s10, 16
    %v1627 = vld [vmem:[%s1626] sm:$0xff]
    %v1628 = vld [vmem:[%s1626 + $0x8] sm:$0xff]
    %s1629 = scalar_lea.vmem %s11, 1
    %v1630 = vld [vmem:[%s1629] sm:$0x1]
    %v1632 = vsel %vm847, %v1625, 0
    %1634 = vmatprep.subr.mxu0 0.0
    %1635 = vmatpush1.msra.mxu0 %v1627
    %1636 = vmatprep.subr.mxu0 0.0
    %1637 = vmatpush1.msra.mxu0 %v1628
    %1638 = vmatprep.subr.mxu0 0.0
    %1639 = vmatpush1.msra.mxu0 0.0
    %1640 = vmatprep.subr.mxu0 0.0
    %1641 = vmatpush1.msra.mxu0 0.0
    %1642 = vmatprep.subr.mxu0 0.0
    %1643 = vmatpush1.msra.mxu0 0.0
    %1644 = vmatprep.subr.mxu0 0.0
    %1645 = vmatpush1.msra.mxu0 0.0
    %1646 = vmatprep.subr.mxu0 0.0
    %1647 = vmatpush1.msra.mxu0 0.0
    %1648 = vmatprep.subr.mxu0 0.0
    %1649 = vmatpush1.msra.mxu0 0.0
    %1650 = vmatprep.subr.mxu0 0.0
    %1651 = vmatpush1.msra.mxu0 0.0
    %1652 = vmatprep.subr.mxu0 0.0
    %1653 = vmatpush1.msra.mxu0 0.0
    %1654 = vmatprep.subr.mxu0 0.0
    %1655 = vmatpush1.msra.mxu0 0.0
    %1656 = vmatprep.subr.mxu0 0.0
    %1657 = vmatpush1.msra.mxu0 0.0
    %1658 = vmatprep.subr.mxu0 0.0
    %1659 = vmatpush1.msra.mxu0 0.0
    %1660 = vmatprep.subr.mxu0 0.0
    %1661 = vmatpush1.msra.mxu0 0.0
    %1662 = vmatprep.subr.mxu0 0.0
    %1663 = vmatpush1.msra.mxu0 0.0
    %1664 = vmatprep.subr.mxu0 0.0
    %1665 = vmatpush1.msra.mxu0 0.0
    %1666 = vmatprep.subr.mxu0 0.0
    %1667 = vmatpush1.msra.mxu0 0.0
    %1668 = vmatprep.subr.mxu0 0.0
    %1669 = vmatpush1.msra.mxu0 0.0
    %1670 = vmatprep.subr.mxu0 0.0
    %1671 = vmatpush1.msra.mxu0 0.0
    %1672 = vmatprep.subr.mxu0 0.0
    %1673 = vmatpush1.msra.mxu0 0.0
    %1674 = vmatprep.subr.mxu0 0.0
    %1675 = vmatpush1.msra.mxu0 0.0
    %1676 = vmatprep.subr.mxu0 0.0
    %1677 = vmatpush1.msra.mxu0 0.0
    %1678 = vmatprep.subr.mxu0 0.0
    %1679 = vmatpush1.msra.mxu0 0.0
    %1680 = vmatprep.subr.mxu0 0.0
    %1681 = vmatpush1.msra.mxu0 0.0
    %1682 = vmatprep.subr.mxu0 0.0
    %1683 = vmatpush1.msra.mxu0 0.0
    %1684 = vmatprep.subr.mxu0 0.0
    %1685 = vmatpush1.msra.mxu0 0.0
    %1686 = vmatprep.subr.mxu0 0.0
    %1687 = vmatpush1.msra.mxu0 0.0
    %1688 = vmatprep.subr.mxu0 0.0
    %1689 = vmatpush1.msra.mxu0 0.0
    %1690 = vmatprep.subr.mxu0 0.0
    %1691 = vmatpush1.msra.mxu0 0.0
    %1692 = vmatprep.subr.mxu0 0.0
    %1693 = vmatpush1.msra.mxu0 0.0
    %1694 = vmatprep.subr.mxu0 0.0
    %1695 = vmatpush1.msra.mxu0 0.0
    %1696 = vmatprep.subr.mxu0 0.0
    %1697 = vmatpush1.msra.mxu0 0.0
    %1698 = vmatprep.mubr.f32.mxu0 0.0
    %1699 = vmatmul.mubr.f32.gmra.mrb[0].mxu0 %v1632
    %v1700 = vpop.f32.mrb[0].mxu0
    %v1701 = vadd.f32 %v1630, %v1700
    %v1702 = vpop.f32.mrb[0].mxu0
    %1703 = vdwg.mxu0
    %1704 = vmatprep.subr.mxu0 0.0
    %1705 = vmatpush1.xpose.msra.mxu0 %v768
    %1706 = vmatprep.subr.mxu0 0.0
    %1707 = vmatpush1.xpose.msra.mxu0 %v772
    %1708 = vmatprep.subr.mxu0 0.0
    %1709 = vmatpush1.xpose.msra.mxu0 0.0
    %1710 = vmatprep.subr.mxu0 0.0
    %1711 = vmatpush1.xpose.msra.mxu0 0.0
    %1712 = vmatprep.subr.mxu0 0.0
    %1713 = vmatpush1.xpose.msra.mxu0 0.0
    %1714 = vmatprep.subr.mxu0 0.0
    %1715 = vmatpush1.xpose.msra.mxu0 0.0
    %1716 = vmatprep.subr.mxu0 0.0
    %1717 = vmatpush1.xpose.msra.mxu0 0.0
    %1718 = vmatprep.subr.mxu0 0.0
    %1719 = vmatpush1.xpose.msra.mxu0 0.0
    %1720 = vmatprep.subr.mxu0 0.0
    %1721 = vmatpush1.xpose.msra.mxu0 0.0
    %1722 = vmatprep.subr.mxu0 0.0
    %1723 = vmatpush1.xpose.msra.mxu0 0.0
    %1724 = vmatprep.subr.mxu0 0.0
    %1725 = vmatpush1.xpose.msra.mxu0 0.0
    %1726 = vmatprep.subr.mxu0 0.0
    %1727 = vmatpush1.xpose.msra.mxu0 0.0
    %1728 = vmatprep.subr.mxu0 0.0
    %1729 = vmatpush1.xpose.msra.mxu0 0.0
    %1730 = vmatprep.subr.mxu0 0.0
    %1731 = vmatpush1.xpose.msra.mxu0 0.0
    %1732 = vmatprep.subr.mxu0 0.0
    %1733 = vmatpush1.xpose.msra.mxu0 0.0
    %1734 = vmatprep.subr.mxu0 0.0
    %1735 = vmatpush1.xpose.msra.mxu0 0.0
    %1736 = vmatprep.subr.mxu0 0.0
    %1737 = vmatpush1.xpose.msra.mxu0 0.0
    %1738 = vmatprep.subr.mxu0 0.0
    %1739 = vmatpush1.xpose.msra.mxu0 0.0
    %1740 = vmatprep.subr.mxu0 0.0
    %1741 = vmatpush1.xpose.msra.mxu0 0.0
    %1742 = vmatprep.subr.mxu0 0.0
    %1743 = vmatpush1.xpose.msra.mxu0 0.0
    %1744 = vmatprep.subr.mxu0 0.0
    %1745 = vmatpush1.xpose.msra.mxu0 0.0
    %1746 = vmatprep.subr.mxu0 0.0
    %1747 = vmatpush1.xpose.msra.mxu0 0.0
    %1748 = vmatprep.subr.mxu0 0.0
    %1749 = vmatpush1.xpose.msra.mxu0 0.0
    %1750 = vmatprep.subr.mxu0 0.0
    %1751 = vmatpush1.xpose.msra.mxu0 0.0
    %1752 = vmatprep.subr.mxu0 0.0
    %1753 = vmatpush1.xpose.msra.mxu0 0.0
    %1754 = vmatprep.subr.mxu0 0.0
    %1755 = vmatpush1.xpose.msra.mxu0 0.0
    %1756 = vmatprep.subr.mxu0 0.0
    %1757 = vmatpush1.xpose.msra.mxu0 0.0
    %1758 = vmatprep.subr.mxu0 0.0
    %1759 = vmatpush1.xpose.msra.mxu0 0.0
    %1760 = vmatprep.subr.mxu0 0.0
    %1761 = vmatpush1.xpose.msra.mxu0 0.0
    %1762 = vmatprep.subr.mxu0 0.0
    %1763 = vmatpush1.xpose.msra.mxu0 0.0
    %1764 = vmatprep.subr.mxu0 0.0
    %1765 = vmatpush1.xpose.msra.mxu0 0.0
    %1766 = vmatprep.subr.mxu0 0.0
    %1767 = vmatpush1.xpose.msra.mxu0 0.0
    %1768 = vmatprep.mubr.f32.mxu0 0.0
    %1769 = vmatmul.mubr.f32.gmra.mrb[0].mxu0 %v44
    %v1770 = vpop.f32.mrb[0].mxu0
    %v1771 = vadd.f32 0.0, %v1770
    %v1772 = vpop.f32.mrb[0].mxu0
    %1773 = vdwg.mxu0
    %s1774 = scalar_lea.vmem %s7, 2
    %v1775 = vld [vmem:[%s1774] sm:$0x1]
    %s1776 = scalar_lea.vmem %s6, 96
    %v1777 = vld [vmem:[%s1776] sm:$0xff]
    %v1778 = vld [vmem:[%s1776 + $0x8] sm:$0xff]
    %v1780 = vsel %vm847, %v1771, 0
    %1782 = vmatprep.subr.mxu0 0.0
    %1783 = vmatpush1.msra.mxu0 %v1777
    %1784 = vmatprep.subr.mxu0 0.0
    %1785 = vmatpush1.msra.mxu0 %v1778
    %1786 = vmatprep.subr.mxu0 0.0
    %1787 = vmatpush1.msra.mxu0 0.0
    %1788 = vmatprep.subr.mxu0 0.0
    %1789 = vmatpush1.msra.mxu0 0.0
    %1790 = vmatprep.subr.mxu0 0.0
    %1791 = vmatpush1.msra.mxu0 0.0
    %1792 = vmatprep.subr.mxu0 0.0
    %1793 = vmatpush1.msra.mxu0 0.0
    %1794 = vmatprep.subr.mxu0 0.0
    %1795 = vmatpush1.msra.mxu0 0.0
    %1796 = vmatprep.subr.mxu0 0.0
    %1797 = vmatpush1.msra.mxu0 0.0
    %1798 = vmatprep.subr.mxu0 0.0
    %1799 = vmatpush1.msra.mxu0 0.0
    %1800 = vmatprep.subr.mxu0 0.0
    %1801 = vmatpush1.msra.mxu0 0.0
    %1802 = vmatprep.subr.mxu0 0.0
    %1803 = vmatpush1.msra.mxu0 0.0
    %1804 = vmatprep.subr.mxu0 0.0
    %1805 = vmatpush1.msra.mxu0 0.0
    %1806 = vmatprep.subr.mxu0 0.0
    %1807 = vmatpush1.msra.mxu0 0.0
    %1808 = vmatprep.subr.mxu0 0.0
    %1809 = vmatpush1.msra.mxu0 0.0
    %1810 = vmatprep.subr.mxu0 0.0
    %1811 = vmatpush1.msra.mxu0 0.0
    %1812 = vmatprep.subr.mxu0 0.0
    %1813 = vmatpush1.msra.mxu0 0.0
    %1814 = vmatprep.subr.mxu0 0.0
    %1815 = vmatpush1.msra.mxu0 0.0
    %1816 = vmatprep.subr.mxu0 0.0
    %1817 = vmatpush1.msra.mxu0 0.0
    %1818 = vmatprep.subr.mxu0 0.0
    %1819 = vmatpush1.msra.mxu0 0.0
    %1820 = vmatprep.subr.mxu0 0.0
    %1821 = vmatpush1.msra.mxu0 0.0
    %1822 = vmatprep.subr.mxu0 0.0
    %1823 = vmatpush1.msra.mxu0 0.0
    %1824 = vmatprep.subr.mxu0 0.0
    %1825 = vmatpush1.msra.mxu0 0.0
    %1826 = vmatprep.subr.mxu0 0.0
    %1827 = vmatpush1.msra.mxu0 0.0
    %1828 = vmatprep.subr.mxu0 0.0
    %1829 = vmatpush1.msra.mxu0 0.0
    %1830 = vmatprep.subr.mxu0 0.0
    %1831 = vmatpush1.msra.mxu0 0.0
    %1832 = vmatprep.subr.mxu0 0.0
    %1833 = vmatpush1.msra.mxu0 0.0
    %1834 = vmatprep.subr.mxu0 0.0
    %1835 = vmatpush1.msra.mxu0 0.0
    %1836 = vmatprep.subr.mxu0 0.0
    %1837 = vmatpush1.msra.mxu0 0.0
    %1838 = vmatprep.subr.mxu0 0.0
    %1839 = vmatpush1.msra.mxu0 0.0
    %1840 = vmatprep.subr.mxu0 0.0
    %1841 = vmatpush1.msra.mxu0 0.0
    %1842 = vmatprep.subr.mxu0 0.0
    %1843 = vmatpush1.msra.mxu0 0.0
    %1844 = vmatprep.subr.mxu0 0.0
    %1845 = vmatpush1.msra.mxu0 0.0
    %1846 = vmatprep.mubr.f32.mxu0 0.0
    %1847 = vmatmul.mubr.f32.gmra.mrb[0].mxu0 %v1780
    %v1848 = vpop.f32.mrb[0].mxu0
    %v1849 = vadd.f32 0.0, %v1848
    %v1850 = vpop.f32.mrb[0].mxu0
    %1851 = vdwg.mxu0
    %v1852 = vadd.f32 %v1775, %v1849
    %s1853 = scalar_lea.vmem %s6, 112
    %v1854 = vld [vmem:[%s1853] sm:$0xff]
    %v1855 = vld [vmem:[%s1853 + $0x8] sm:$0xff]
    %v1856 = vrot.slane %v1771, 1
    %v1857 = vsel %vm847, %v1856, 0
    %1859 = vmatprep.subr.mxu0 0.0
    %1860 = vmatpush1.msra.mxu0 %v1854
    %1861 = vmatprep.subr.mxu0 0.0
    %1862 = vmatpush1.msra.mxu0 %v1855
    %1863 = vmatprep.subr.mxu0 0.0
    %1864 = vmatpush1.msra.mxu0 0.0
    %1865 = vmatprep.subr.mxu0 0.0
    %1866 = vmatpush1.msra.mxu0 0.0
    %1867 = vmatprep.subr.mxu0 0.0
    %1868 = vmatpush1.msra.mxu0 0.0
    %1869 = vmatprep.subr.mxu0 0.0
    %1870 = vmatpush1.msra.mxu0 0.0
    %1871 = vmatprep.subr.mxu0 0.0
    %1872 = vmatpush1.msra.mxu0 0.0
    %1873 = vmatprep.subr.mxu0 0.0
    %1874 = vmatpush1.msra.mxu0 0.0
    %1875 = vmatprep.subr.mxu0 0.0
    %1876 = vmatpush1.msra.mxu0 0.0
    %1877 = vmatprep.subr.mxu0 0.0
    %1878 = vmatpush1.msra.mxu0 0.0
    %1879 = vmatprep.subr.mxu0 0.0
    %1880 = vmatpush1.msra.mxu0 0.0
    %1881 = vmatprep.subr.mxu0 0.0
    %1882 = vmatpush1.msra.mxu0 0.0
    %1883 = vmatprep.subr.mxu0 0.0
    %1884 = vmatpush1.msra.mxu0 0.0
    %1885 = vmatprep.subr.mxu0 0.0
    %1886 = vmatpush1.msra.mxu0 0.0
    %1887 = vmatprep.subr.mxu0 0.0
    %1888 = vmatpush1.msra.mxu0 0.0
    %1889 = vmatprep.subr.mxu0 0.0
    %1890 = vmatpush1.msra.mxu0 0.0
    %1891 = vmatprep.subr.mxu0 0.0
    %1892 = vmatpush1.msra.mxu0 0.0
    %1893 = vmatprep.subr.mxu0 0.0
    %1894 = vmatpush1.msra.mxu0 0.0
    %1895 = vmatprep.subr.mxu0 0.0
    %1896 = vmatpush1.msra.mxu0 0.0
    %1897 = vmatprep.subr.mxu0 0.0
    %1898 = vmatpush1.msra.mxu0 0.0
    %1899 = vmatprep.subr.mxu0 0.0
    %1900 = vmatpush1.msra.mxu0 0.0
    %1901 = vmatprep.subr.mxu0 0.0
    %1902 = vmatpush1.msra.mxu0 0.0
    %1903 = vmatprep.subr.mxu0 0.0
    %1904 = vmatpush1.msra.mxu0 0.0
    %1905 = vmatprep.subr.mxu0 0.0
    %1906 = vmatpush1.msra.mxu0 0.0
    %1907 = vmatprep.subr.mxu0 0.0
    %1908 = vmatpush1.msra.mxu0 0.0
    %1909 = vmatprep.subr.mxu0 0.0
    %1910 = vmatpush1.msra.mxu0 0.0
    %1911 = vmatprep.subr.mxu0 0.0
    %1912 = vmatpush1.msra.mxu0 0.0
    %1913 = vmatprep.subr.mxu0 0.0
    %1914 = vmatpush1.msra.mxu0 0.0
    %1915 = vmatprep.subr.mxu0 0.0
    %1916 = vmatpush1.msra.mxu0 0.0
    %1917 = vmatprep.subr.mxu0 0.0
    %1918 = vmatpush1.msra.mxu0 0.0
    %1919 = vmatprep.subr.mxu0 0.0
    %1920 = vmatpush1.msra.mxu0 0.0
    %1921 = vmatprep.subr.mxu0 0.0
    %1922 = vmatpush1.msra.mxu0 0.0
    %1923 = vmatprep.mubr.f32.mxu0 0.0
    %1924 = vmatmul.mubr.f32.gmra.mrb[0].mxu0 %v1857
    %v1925 = vpop.f32.mrb[0].mxu0
    %v1926 = vadd.f32 0.0, %v1925
    %v1927 = vpop.f32.mrb[0].mxu0
    %1928 = vdwg.mxu0
    %v1929 = vadd.f32 %v1852, %v1926
    %s1930 = scalar_lea.vmem %s6, 128
    %v1931 = vld [vmem:[%s1930] sm:$0xff]
    %v1932 = vld [vmem:[%s1930 + $0x8] sm:$0xff]
    %v1933 = vrot.slane %v1771, 2
    %v1934 = vsel %vm847, %v1933, 0
    %1936 = vmatprep.subr.mxu0 0.0
    %1937 = vmatpush1.msra.mxu0 %v1931
    %1938 = vmatprep.subr.mxu0 0.0
    %1939 = vmatpush1.msra.mxu0 %v1932
    %1940 = vmatprep.subr.mxu0 0.0
    %1941 = vmatpush1.msra.mxu0 0.0
    %1942 = vmatprep.subr.mxu0 0.0
    %1943 = vmatpush1.msra.mxu0 0.0
    %1944 = vmatprep.subr.mxu0 0.0
    %1945 = vmatpush1.msra.mxu0 0.0
    %1946 = vmatprep.subr.mxu0 0.0
    %1947 = vmatpush1.msra.mxu0 0.0
    %1948 = vmatprep.subr.mxu0 0.0
    %1949 = vmatpush1.msra.mxu0 0.0
    %1950 = vmatprep.subr.mxu0 0.0
    %1951 = vmatpush1.msra.mxu0 0.0
    %1952 = vmatprep.subr.mxu0 0.0
    %1953 = vmatpush1.msra.mxu0 0.0
    %1954 = vmatprep.subr.mxu0 0.0
    %1955 = vmatpush1.msra.mxu0 0.0
    %1956 = vmatprep.subr.mxu0 0.0
    %1957 = vmatpush1.msra.mxu0 0.0
    %1958 = vmatprep.subr.mxu0 0.0
    %1959 = vmatpush1.msra.mxu0 0.0
    %1960 = vmatprep.subr.mxu0 0.0
    %1961 = vmatpush1.msra.mxu0 0.0
    %1962 = vmatprep.subr.mxu0 0.0
    %1963 = vmatpush1.msra.mxu0 0.0
    %1964 = vmatprep.subr.mxu0 0.0
    %1965 = vmatpush1.msra.mxu0 0.0
    %1966 = vmatprep.subr.mxu0 0.0
    %1967 = vmatpush1.msra.mxu0 0.0
    %1968 = vmatprep.subr.mxu0 0.0
    %1969 = vmatpush1.msra.mxu0 0.0
    %1970 = vmatprep.subr.mxu0 0.0
    %1971 = vmatpush1.msra.mxu0 0.0
    %1972 = vmatprep.subr.mxu0 0.0
    %1973 = vmatpush1.msra.mxu0 0.0
    %1974 = vmatprep.subr.mxu0 0.0
    %1975 = vmatpush1.msra.mxu0 0.0
    %1976 = vmatprep.subr.mxu0 0.0
    %1977 = vmatpush1.msra.mxu0 0.0
    %1978 = vmatprep.subr.mxu0 0.0
    %1979 = vmatpush1.msra.mxu0 0.0
    %1980 = vmatprep.subr.mxu0 0.0
    %1981 = vmatpush1.msra.mxu0 0.0
    %1982 = vmatprep.subr.mxu0 0.0
    %1983 = vmatpush1.msra.mxu0 0.0
    %1984 = vmatprep.subr.mxu0 0.0
    %1985 = vmatpush1.msra.mxu0 0.0
    %1986 = vmatprep.subr.mxu0 0.0
    %1987 = vmatpush1.msra.mxu0 0.0
    %1988 = vmatprep.subr.mxu0 0.0
    %1989 = vmatpush1.msra.mxu0 0.0
    %1990 = vmatprep.subr.mxu0 0.0
    %1991 = vmatpush1.msra.mxu0 0.0
    %1992 = vmatprep.subr.mxu0 0.0
    %1993 = vmatpush1.msra.mxu0 0.0
    %1994 = vmatprep.subr.mxu0 0.0
    %1995 = vmatpush1.msra.mxu0 0.0
    %1996 = vmatprep.subr.mxu0 0.0
    %1997 = vmatpush1.msra.mxu0 0.0
    %1998 = vmatprep.subr.mxu0 0.0
    %1999 = vmatpush1.msra.mxu0 0.0
    %2000 = vmatprep.mubr.f32.mxu0 0.0
    %2001 = vmatmul.mubr.f32.gmra.mrb[0].mxu0 %v1934
    %v2002 = vpop.f32.mrb[0].mxu0
    %v2003 = vadd.f32 0.0, %v2002
    %v2004 = vpop.f32.mrb[0].mxu0
    %2005 = vdwg.mxu0
    %v2006 = vadd.f32 %v1929, %v2003
    %vm2007 = vcmp.ge.f32.partialorder %v2006, 0.0
    %v2008 = vmul.f32 %v2006, 0.01
    %v2009 = vsel %vm2007, %v2006, %v2008
    %s2010 = scalar_lea.vmem %s8, 64
    %v2011 = vld [vmem:[%s2010] sm:$0xff]
    %v2012 = vld [vmem:[%s2010 + $0x8] sm:$0xff]
    %v2013 = vld [vmem:[%s2010 + $0x10] sm:$0xff]
    %v2014 = vld [vmem:[%s2010 + $0x18] sm:$0xff]
    %s2015 = scalar_lea.vmem %s9, 2
    %v2016 = vld [vmem:[%s2015] sm:$0x1]
    %v2018 = vsel %vm1084, %v2009, 0
    %2020 = vmatprep.subr.mxu0 0.0
    %2021 = vmatpush1.msra.mxu0 %v2011
    %2022 = vmatprep.subr.mxu0 0.0
    %2023 = vmatpush1.msra.mxu0 %v2012
    %2024 = vmatprep.subr.mxu0 0.0
    %2025 = vmatpush1.msra.mxu0 %v2013
    %2026 = vmatprep.subr.mxu0 0.0
    %2027 = vmatpush1.msra.mxu0 %v2014
    %2028 = vmatprep.subr.mxu0 0.0
    %2029 = vmatpush1.msra.mxu0 0.0
    %2030 = vmatprep.subr.mxu0 0.0
    %2031 = vmatpush1.msra.mxu0 0.0
    %2032 = vmatprep.subr.mxu0 0.0
    %2033 = vmatpush1.msra.mxu0 0.0
    %2034 = vmatprep.subr.mxu0 0.0
    %2035 = vmatpush1.msra.mxu0 0.0
    %2036 = vmatprep.subr.mxu0 0.0
    %2037 = vmatpush1.msra.mxu0 0.0
    %2038 = vmatprep.subr.mxu0 0.0
    %2039 = vmatpush1.msra.mxu0 0.0
    %2040 = vmatprep.subr.mxu0 0.0
    %2041 = vmatpush1.msra.mxu0 0.0
    %2042 = vmatprep.subr.mxu0 0.0
    %2043 = vmatpush1.msra.mxu0 0.0
    %2044 = vmatprep.subr.mxu0 0.0
    %2045 = vmatpush1.msra.mxu0 0.0
    %2046 = vmatprep.subr.mxu0 0.0
    %2047 = vmatpush1.msra.mxu0 0.0
    %2048 = vmatprep.subr.mxu0 0.0
    %2049 = vmatpush1.msra.mxu0 0.0
    %2050 = vmatprep.subr.mxu0 0.0
    %2051 = vmatpush1.msra.mxu0 0.0
    %2052 = vmatprep.subr.mxu0 0.0
    %2053 = vmatpush1.msra.mxu0 0.0
    %2054 = vmatprep.subr.mxu0 0.0
    %2055 = vmatpush1.msra.mxu0 0.0
    %2056 = vmatprep.subr.mxu0 0.0
    %2057 = vmatpush1.msra.mxu0 0.0
    %2058 = vmatprep.subr.mxu0 0.0
    %2059 = vmatpush1.msra.mxu0 0.0
    %2060 = vmatprep.subr.mxu0 0.0
    %2061 = vmatpush1.msra.mxu0 0.0
    %2062 = vmatprep.subr.mxu0 0.0
    %2063 = vmatpush1.msra.mxu0 0.0
    %2064 = vmatprep.subr.mxu0 0.0
    %2065 = vmatpush1.msra.mxu0 0.0
    %2066 = vmatprep.subr.mxu0 0.0
    %2067 = vmatpush1.msra.mxu0 0.0
    %2068 = vmatprep.subr.mxu0 0.0
    %2069 = vmatpush1.msra.mxu0 0.0
    %2070 = vmatprep.subr.mxu0 0.0
    %2071 = vmatpush1.msra.mxu0 0.0
    %2072 = vmatprep.subr.mxu0 0.0
    %2073 = vmatpush1.msra.mxu0 0.0
    %2074 = vmatprep.subr.mxu0 0.0
    %2075 = vmatpush1.msra.mxu0 0.0
    %2076 = vmatprep.subr.mxu0 0.0
    %2077 = vmatpush1.msra.mxu0 0.0
    %2078 = vmatprep.subr.mxu0 0.0
    %2079 = vmatpush1.msra.mxu0 0.0
    %2080 = vmatprep.subr.mxu0 0.0
    %2081 = vmatpush1.msra.mxu0 0.0
    %2082 = vmatprep.subr.mxu0 0.0
    %2083 = vmatpush1.msra.mxu0 0.0
    %2084 = vmatprep.mubr.f32.mxu0 0.0
    %2085 = vmatmul.mubr.f32.gmra.mrb[0].mxu0 %v2018
    %v2086 = vpop.f32.mrb[0].mxu0
    %v2087 = vadd.f32 %v2016, %v2086
    %v2088 = vpop.f32.mrb[0].mxu0
    %2089 = vdwg.mxu0
    %vm2090 = vcmp.ge.f32.partialorder %v2087, 0.0
    %v2091 = vmul.f32 %v2087, 0.01
    %v2092 = vsel %vm2090, %v2087, %v2091
    %s2093 = scalar_lea.vmem %s10, 32
    %v2094 = vld [vmem:[%s2093] sm:$0xff]
    %v2095 = vld [vmem:[%s2093 + $0x8] sm:$0xff]
    %s2096 = scalar_lea.vmem %s11, 2
    %v2097 = vld [vmem:[%s2096] sm:$0x1]
    %v2099 = vsel %vm847, %v2092, 0
    %2101 = vmatprep.subr.mxu0 0.0
    %2102 = vmatpush1.msra.mxu0 %v2094
    %2103 = vmatprep.subr.mxu0 0.0
    %2104 = vmatpush1.msra.mxu0 %v2095
    %2105 = vmatprep.subr.mxu0 0.0
    %2106 = vmatpush1.msra.mxu0 0.0
    %2107 = vmatprep.subr.mxu0 0.0
    %2108 = vmatpush1.msra.mxu0 0.0
    %2109 = vmatprep.subr.mxu0 0.0
    %2110 = vmatpush1.msra.mxu0 0.0
    %2111 = vmatprep.subr.mxu0 0.0
    %2112 = vmatpush1.msra.mxu0 0.0
    %2113 = vmatprep.subr.mxu0 0.0
    %2114 = vmatpush1.msra.mxu0 0.0
    %2115 = vmatprep.subr.mxu0 0.0
    %2116 = vmatpush1.msra.mxu0 0.0
    %2117 = vmatprep.subr.mxu0 0.0
    %2118 = vmatpush1.msra.mxu0 0.0
    %2119 = vmatprep.subr.mxu0 0.0
    %2120 = vmatpush1.msra.mxu0 0.0
    %2121 = vmatprep.subr.mxu0 0.0
    %2122 = vmatpush1.msra.mxu0 0.0
    %2123 = vmatprep.subr.mxu0 0.0
    %2124 = vmatpush1.msra.mxu0 0.0
    %2125 = vmatprep.subr.mxu0 0.0
    %2126 = vmatpush1.msra.mxu0 0.0
    %2127 = vmatprep.subr.mxu0 0.0
    %2128 = vmatpush1.msra.mxu0 0.0
    %2129 = vmatprep.subr.mxu0 0.0
    %2130 = vmatpush1.msra.mxu0 0.0
    %2131 = vmatprep.subr.mxu0 0.0
    %2132 = vmatpush1.msra.mxu0 0.0
    %2133 = vmatprep.subr.mxu0 0.0
    %2134 = vmatpush1.msra.mxu0 0.0
    %2135 = vmatprep.subr.mxu0 0.0
    %2136 = vmatpush1.msra.mxu0 0.0
    %2137 = vmatprep.subr.mxu0 0.0
    %2138 = vmatpush1.msra.mxu0 0.0
    %2139 = vmatprep.subr.mxu0 0.0
    %2140 = vmatpush1.msra.mxu0 0.0
    %2141 = vmatprep.subr.mxu0 0.0
    %2142 = vmatpush1.msra.mxu0 0.0
    %2143 = vmatprep.subr.mxu0 0.0
    %2144 = vmatpush1.msra.mxu0 0.0
    %2145 = vmatprep.subr.mxu0 0.0
    %2146 = vmatpush1.msra.mxu0 0.0
    %2147 = vmatprep.subr.mxu0 0.0
    %2148 = vmatpush1.msra.mxu0 0.0
    %2149 = vmatprep.subr.mxu0 0.0
    %2150 = vmatpush1.msra.mxu0 0.0
    %2151 = vmatprep.subr.mxu0 0.0
    %2152 = vmatpush1.msra.mxu0 0.0
    %2153 = vmatprep.subr.mxu0 0.0
    %2154 = vmatpush1.msra.mxu0 0.0
    %2155 = vmatprep.subr.mxu0 0.0
    %2156 = vmatpush1.msra.mxu0 0.0
    %2157 = vmatprep.subr.mxu0 0.0
    %2158 = vmatpush1.msra.mxu0 0.0
    %2159 = vmatprep.subr.mxu0 0.0
    %2160 = vmatpush1.msra.mxu0 0.0
    %2161 = vmatprep.subr.mxu0 0.0
    %2162 = vmatpush1.msra.mxu0 0.0
    %2163 = vmatprep.subr.mxu0 0.0
    %2164 = vmatpush1.msra.mxu0 0.0
    %2165 = vmatprep.mubr.f32.mxu0 0.0
    %2166 = vmatmul.mubr.f32.gmra.mrb[0].mxu0 %v2099
    %v2167 = vpop.f32.mrb[0].mxu0
    %v2168 = vadd.f32 %v2097, %v2167
    %v2169 = vpop.f32.mrb[0].mxu0
    %2170 = vdwg.mxu0
    %2171 = vmatprep.subr.mxu0 0.0
    %2172 = vmatpush1.xpose.msra.mxu0 %v769
    %2173 = vmatprep.subr.mxu0 0.0
    %2174 = vmatpush1.xpose.msra.mxu0 %v773
    %2175 = vmatprep.subr.mxu0 0.0
    %2176 = vmatpush1.xpose.msra.mxu0 0.0
    %2177 = vmatprep.subr.mxu0 0.0
    %2178 = vmatpush1.xpose.msra.mxu0 0.0
    %2179 = vmatprep.subr.mxu0 0.0
    %2180 = vmatpush1.xpose.msra.mxu0 0.0
    %2181 = vmatprep.subr.mxu0 0.0
    %2182 = vmatpush1.xpose.msra.mxu0 0.0
    %2183 = vmatprep.subr.mxu0 0.0
    %2184 = vmatpush1.xpose.msra.mxu0 0.0
    %2185 = vmatprep.subr.mxu0 0.0
    %2186 = vmatpush1.xpose.msra.mxu0 0.0
    %2187 = vmatprep.subr.mxu0 0.0
    %2188 = vmatpush1.xpose.msra.mxu0 0.0
    %2189 = vmatprep.subr.mxu0 0.0
    %2190 = vmatpush1.xpose.msra.mxu0 0.0
    %2191 = vmatprep.subr.mxu0 0.0
    %2192 = vmatpush1.xpose.msra.mxu0 0.0
    %2193 = vmatprep.subr.mxu0 0.0
    %2194 = vmatpush1.xpose.msra.mxu0 0.0
    %2195 = vmatprep.subr.mxu0 0.0
    %2196 = vmatpush1.xpose.msra.mxu0 0.0
    %2197 = vmatprep.subr.mxu0 0.0
    %2198 = vmatpush1.xpose.msra.mxu0 0.0
    %2199 = vmatprep.subr.mxu0 0.0
    %2200 = vmatpush1.xpose.msra.mxu0 0.0
    %2201 = vmatprep.subr.mxu0 0.0
    %2202 = vmatpush1.xpose.msra.mxu0 0.0
    %2203 = vmatprep.subr.mxu0 0.0
    %2204 = vmatpush1.xpose.msra.mxu0 0.0
    %2205 = vmatprep.subr.mxu0 0.0
    %2206 = vmatpush1.xpose.msra.mxu0 0.0
    %2207 = vmatprep.subr.mxu0 0.0
    %2208 = vmatpush1.xpose.msra.mxu0 0.0
    %2209 = vmatprep.subr.mxu0 0.0
    %2210 = vmatpush1.xpose.msra.mxu0 0.0
    %2211 = vmatprep.subr.mxu0 0.0
    %2212 = vmatpush1.xpose.msra.mxu0 0.0
    %2213 = vmatprep.subr.mxu0 0.0
    %2214 = vmatpush1.xpose.msra.mxu0 0.0
    %2215 = vmatprep.subr.mxu0 0.0
    %2216 = vmatpush1.xpose.msra.mxu0 0.0
    %2217 = vmatprep.subr.mxu0 0.0
    %2218 = vmatpush1.xpose.msra.mxu0 0.0
    %2219 = vmatprep.subr.mxu0 0.0
    %2220 = vmatpush1.xpose.msra.mxu0 0.0
    %2221 = vmatprep.subr.mxu0 0.0
    %2222 = vmatpush1.xpose.msra.mxu0 0.0
    %2223 = vmatprep.subr.mxu0 0.0
    %2224 = vmatpush1.xpose.msra.mxu0 0.0
    %2225 = vmatprep.subr.mxu0 0.0
    %2226 = vmatpush1.xpose.msra.mxu0 0.0
    %2227 = vmatprep.subr.mxu0 0.0
    %2228 = vmatpush1.xpose.msra.mxu0 0.0
    %2229 = vmatprep.subr.mxu0 0.0
    %2230 = vmatpush1.xpose.msra.mxu0 0.0
    %2231 = vmatprep.subr.mxu0 0.0
    %2232 = vmatpush1.xpose.msra.mxu0 0.0
    %2233 = vmatprep.subr.mxu0 0.0
    %2234 = vmatpush1.xpose.msra.mxu0 0.0
    %2235 = vmatprep.mubr.f32.mxu0 0.0
    %2236 = vmatmul.mubr.f32.gmra.mrb[0].mxu0 %v45
    %v2237 = vpop.f32.mrb[0].mxu0
    %v2238 = vadd.f32 0.0, %v2237
    %v2239 = vpop.f32.mrb[0].mxu0
    %2240 = vdwg.mxu0
    %s2241 = scalar_lea.vmem %s7, 3
    %v2242 = vld [vmem:[%s2241] sm:$0x1]
    %s2243 = scalar_lea.vmem %s6, 144
    %v2244 = vld [vmem:[%s2243] sm:$0xff]
    %v2245 = vld [vmem:[%s2243 + $0x8] sm:$0xff]
    %v2247 = vsel %vm847, %v2238, 0
    %2249 = vmatprep.subr.mxu0 0.0
    %2250 = vmatpush1.msra.mxu0 %v2244
    %2251 = vmatprep.subr.mxu0 0.0
    %2252 = vmatpush1.msra.mxu0 %v2245
    %2253 = vmatprep.subr.mxu0 0.0
    %2254 = vmatpush1.msra.mxu0 0.0
    %2255 = vmatprep.subr.mxu0 0.0
    %2256 = vmatpush1.msra.mxu0 0.0
    %2257 = vmatprep.subr.mxu0 0.0
    %2258 = vmatpush1.msra.mxu0 0.0
    %2259 = vmatprep.subr.mxu0 0.0
    %2260 = vmatpush1.msra.mxu0 0.0
    %2261 = vmatprep.subr.mxu0 0.0
    %2262 = vmatpush1.msra.mxu0 0.0
    %2263 = vmatprep.subr.mxu0 0.0
    %2264 = vmatpush1.msra.mxu0 0.0
    %2265 = vmatprep.subr.mxu0 0.0
    %2266 = vmatpush1.msra.mxu0 0.0
    %2267 = vmatprep.subr.mxu0 0.0
    %2268 = vmatpush1.msra.mxu0 0.0
    %2269 = vmatprep.subr.mxu0 0.0
    %2270 = vmatpush1.msra.mxu0 0.0
    %2271 = vmatprep.subr.mxu0 0.0
    %2272 = vmatpush1.msra.mxu0 0.0
    %2273 = vmatprep.subr.mxu0 0.0
    %2274 = vmatpush1.msra.mxu0 0.0
    %2275 = vmatprep.subr.mxu0 0.0
    %2276 = vmatpush1.msra.mxu0 0.0
    %2277 = vmatprep.subr.mxu0 0.0
    %2278 = vmatpush1.msra.mxu0 0.0
    %2279 = vmatprep.subr.mxu0 0.0
    %2280 = vmatpush1.msra.mxu0 0.0
    %2281 = vmatprep.subr.mxu0 0.0
    %2282 = vmatpush1.msra.mxu0 0.0
    %2283 = vmatprep.subr.mxu0 0.0
    %2284 = vmatpush1.msra.mxu0 0.0
    %2285 = vmatprep.subr.mxu0 0.0
    %2286 = vmatpush1.msra.mxu0 0.0
    %2287 = vmatprep.subr.mxu0 0.0
    %2288 = vmatpush1.msra.mxu0 0.0
    %2289 = vmatprep.subr.mxu0 0.0
    %2290 = vmatpush1.msra.mxu0 0.0
    %2291 = vmatprep.subr.mxu0 0.0
    %2292 = vmatpush1.msra.mxu0 0.0
    %2293 = vmatprep.subr.mxu0 0.0
    %2294 = vmatpush1.msra.mxu0 0.0
    %2295 = vmatprep.subr.mxu0 0.0
    %2296 = vmatpush1.msra.mxu0 0.0
    %2297 = vmatprep.subr.mxu0 0.0
    %2298 = vmatpush1.msra.mxu0 0.0
    %2299 = vmatprep.subr.mxu0 0.0
    %2300 = vmatpush1.msra.mxu0 0.0
    %2301 = vmatprep.subr.mxu0 0.0
    %2302 = vmatpush1.msra.mxu0 0.0
    %2303 = vmatprep.subr.mxu0 0.0
    %2304 = vmatpush1.msra.mxu0 0.0
    %2305 = vmatprep.subr.mxu0 0.0
    %2306 = vmatpush1.msra.mxu0 0.0
    %2307 = vmatprep.subr.mxu0 0.0
    %2308 = vmatpush1.msra.mxu0 0.0
    %2309 = vmatprep.subr.mxu0 0.0
    %2310 = vmatpush1.msra.mxu0 0.0
    %2311 = vmatprep.subr.mxu0 0.0
    %2312 = vmatpush1.msra.mxu0 0.0
    %2313 = vmatprep.mubr.f32.mxu0 0.0
    %2314 = vmatmul.mubr.f32.gmra.mrb[0].mxu0 %v2247
    %v2315 = vpop.f32.mrb[0].mxu0
    %v2316 = vadd.f32 0.0, %v2315
    %v2317 = vpop.f32.mrb[0].mxu0
    %2318 = vdwg.mxu0
    %v2319 = vadd.f32 %v2242, %v2316
    %s2320 = scalar_lea.vmem %s6, 160
    %v2321 = vld [vmem:[%s2320] sm:$0xff]
    %v2322 = vld [vmem:[%s2320 + $0x8] sm:$0xff]
    %v2323 = vrot.slane %v2238, 1
    %v2324 = vsel %vm847, %v2323, 0
    %2326 = vmatprep.subr.mxu0 0.0
    %2327 = vmatpush1.msra.mxu0 %v2321
    %2328 = vmatprep.subr.mxu0 0.0
    %2329 = vmatpush1.msra.mxu0 %v2322
    %2330 = vmatprep.subr.mxu0 0.0
    %2331 = vmatpush1.msra.mxu0 0.0
    %2332 = vmatprep.subr.mxu0 0.0
    %2333 = vmatpush1.msra.mxu0 0.0
    %2334 = vmatprep.subr.mxu0 0.0
    %2335 = vmatpush1.msra.mxu0 0.0
    %2336 = vmatprep.subr.mxu0 0.0
    %2337 = vmatpush1.msra.mxu0 0.0
    %2338 = vmatprep.subr.mxu0 0.0
    %2339 = vmatpush1.msra.mxu0 0.0
    %2340 = vmatprep.subr.mxu0 0.0
    %2341 = vmatpush1.msra.mxu0 0.0
    %2342 = vmatprep.subr.mxu0 0.0
    %2343 = vmatpush1.msra.mxu0 0.0
    %2344 = vmatprep.subr.mxu0 0.0
    %2345 = vmatpush1.msra.mxu0 0.0
    %2346 = vmatprep.subr.mxu0 0.0
    %2347 = vmatpush1.msra.mxu0 0.0
    %2348 = vmatprep.subr.mxu0 0.0
    %2349 = vmatpush1.msra.mxu0 0.0
    %2350 = vmatprep.subr.mxu0 0.0
    %2351 = vmatpush1.msra.mxu0 0.0
    %2352 = vmatprep.subr.mxu0 0.0
    %2353 = vmatpush1.msra.mxu0 0.0
    %2354 = vmatprep.subr.mxu0 0.0
    %2355 = vmatpush1.msra.mxu0 0.0
    %2356 = vmatprep.subr.mxu0 0.0
    %2357 = vmatpush1.msra.mxu0 0.0
    %2358 = vmatprep.subr.mxu0 0.0
    %2359 = vmatpush1.msra.mxu0 0.0
    %2360 = vmatprep.subr.mxu0 0.0
    %2361 = vmatpush1.msra.mxu0 0.0
    %2362 = vmatprep.subr.mxu0 0.0
    %2363 = vmatpush1.msra.mxu0 0.0
    %2364 = vmatprep.subr.mxu0 0.0
    %2365 = vmatpush1.msra.mxu0 0.0
    %2366 = vmatprep.subr.mxu0 0.0
    %2367 = vmatpush1.msra.mxu0 0.0
    %2368 = vmatprep.subr.mxu0 0.0
    %2369 = vmatpush1.msra.mxu0 0.0
    %2370 = vmatprep.subr.mxu0 0.0
    %2371 = vmatpush1.msra.mxu0 0.0
    %2372 = vmatprep.subr.mxu0 0.0
    %2373 = vmatpush1.msra.mxu0 0.0
    %2374 = vmatprep.subr.mxu0 0.0
    %2375 = vmatpush1.msra.mxu0 0.0
    %2376 = vmatprep.subr.mxu0 0.0
    %2377 = vmatpush1.msra.mxu0 0.0
    %2378 = vmatprep.subr.mxu0 0.0
    %2379 = vmatpush1.msra.mxu0 0.0
    %2380 = vmatprep.subr.mxu0 0.0
    %2381 = vmatpush1.msra.mxu0 0.0
    %2382 = vmatprep.subr.mxu0 0.0
    %2383 = vmatpush1.msra.mxu0 0.0
    %2384 = vmatprep.subr.mxu0 0.0
    %2385 = vmatpush1.msra.mxu0 0.0
    %2386 = vmatprep.subr.mxu0 0.0
    %2387 = vmatpush1.msra.mxu0 0.0
    %2388 = vmatprep.subr.mxu0 0.0
    %2389 = vmatpush1.msra.mxu0 0.0
    %2390 = vmatprep.mubr.f32.mxu0 0.0
    %2391 = vmatmul.mubr.f32.gmra.mrb[0].mxu0 %v2324
    %v2392 = vpop.f32.mrb[0].mxu0
    %v2393 = vadd.f32 0.0, %v2392
    %v2394 = vpop.f32.mrb[0].mxu0
    %2395 = vdwg.mxu0
    %v2396 = vadd.f32 %v2319, %v2393
    %s2397 = scalar_lea.vmem %s6, 176
    %v2398 = vld [vmem:[%s2397] sm:$0xff]
    %v2399 = vld [vmem:[%s2397 + $0x8] sm:$0xff]
    %v2400 = vrot.slane %v2238, 2
    %v2401 = vsel %vm847, %v2400, 0
    %2403 = vmatprep.subr.mxu0 0.0
    %2404 = vmatpush1.msra.mxu0 %v2398
    %2405 = vmatprep.subr.mxu0 0.0
    %2406 = vmatpush1.msra.mxu0 %v2399
    %2407 = vmatprep.subr.mxu0 0.0
    %2408 = vmatpush1.msra.mxu0 0.0
    %2409 = vmatprep.subr.mxu0 0.0
    %2410 = vmatpush1.msra.mxu0 0.0
    %2411 = vmatprep.subr.mxu0 0.0
    %2412 = vmatpush1.msra.mxu0 0.0
    %2413 = vmatprep.subr.mxu0 0.0
    %2414 = vmatpush1.msra.mxu0 0.0
    %2415 = vmatprep.subr.mxu0 0.0
    %2416 = vmatpush1.msra.mxu0 0.0
    %2417 = vmatprep.subr.mxu0 0.0
    %2418 = vmatpush1.msra.mxu0 0.0
    %2419 = vmatprep.subr.mxu0 0.0
    %2420 = vmatpush1.msra.mxu0 0.0
    %2421 = vmatprep.subr.mxu0 0.0
    %2422 = vmatpush1.msra.mxu0 0.0
    %2423 = vmatprep.subr.mxu0 0.0
    %2424 = vmatpush1.msra.mxu0 0.0
    %2425 = vmatprep.subr.mxu0 0.0
    %2426 = vmatpush1.msra.mxu0 0.0
    %2427 = vmatprep.subr.mxu0 0.0
    %2428 = vmatpush1.msra.mxu0 0.0
    %2429 = vmatprep.subr.mxu0 0.0
    %2430 = vmatpush1.msra.mxu0 0.0
    %2431 = vmatprep.subr.mxu0 0.0
    %2432 = vmatpush1.msra.mxu0 0.0
    %2433 = vmatprep.subr.mxu0 0.0
    %2434 = vmatpush1.msra.mxu0 0.0
    %2435 = vmatprep.subr.mxu0 0.0
    %2436 = vmatpush1.msra.mxu0 0.0
    %2437 = vmatprep.subr.mxu0 0.0
    %2438 = vmatpush1.msra.mxu0 0.0
    %2439 = vmatprep.subr.mxu0 0.0
    %2440 = vmatpush1.msra.mxu0 0.0
    %2441 = vmatprep.subr.mxu0 0.0
    %2442 = vmatpush1.msra.mxu0 0.0
    %2443 = vmatprep.subr.mxu0 0.0
    %2444 = vmatpush1.msra.mxu0 0.0
    %2445 = vmatprep.subr.mxu0 0.0
    %2446 = vmatpush1.msra.mxu0 0.0
    %2447 = vmatprep.subr.mxu0 0.0
    %2448 = vmatpush1.msra.mxu0 0.0
    %2449 = vmatprep.subr.mxu0 0.0
    %2450 = vmatpush1.msra.mxu0 0.0
    %2451 = vmatprep.subr.mxu0 0.0
    %2452 = vmatpush1.msra.mxu0 0.0
    %2453 = vmatprep.subr.mxu0 0.0
    %2454 = vmatpush1.msra.mxu0 0.0
    %2455 = vmatprep.subr.mxu0 0.0
    %2456 = vmatpush1.msra.mxu0 0.0
    %2457 = vmatprep.subr.mxu0 0.0
    %2458 = vmatpush1.msra.mxu0 0.0
    %2459 = vmatprep.subr.mxu0 0.0
    %2460 = vmatpush1.msra.mxu0 0.0
    %2461 = vmatprep.subr.mxu0 0.0
    %2462 = vmatpush1.msra.mxu0 0.0
    %2463 = vmatprep.subr.mxu0 0.0
    %2464 = vmatpush1.msra.mxu0 0.0
    %2465 = vmatprep.subr.mxu0 0.0
    %2466 = vmatpush1.msra.mxu0 0.0
    %2467 = vmatprep.mubr.f32.mxu0 0.0
    %2468 = vmatmul.mubr.f32.gmra.mrb[0].mxu0 %v2401
    %v2469 = vpop.f32.mrb[0].mxu0
    %v2470 = vadd.f32 0.0, %v2469
    %v2471 = vpop.f32.mrb[0].mxu0
    %2472 = vdwg.mxu0
    %v2473 = vadd.f32 %v2396, %v2470
    %vm2474 = vcmp.ge.f32.partialorder %v2473, 0.0
    %v2475 = vmul.f32 %v2473, 0.01
    %v2476 = vsel %vm2474, %v2473, %v2475
    %s2477 = scalar_lea.vmem %s8, 96
    %v2478 = vld [vmem:[%s2477] sm:$0xff]
    %v2479 = vld [vmem:[%s2477 + $0x8] sm:$0xff]
    %v2480 = vld [vmem:[%s2477 + $0x10] sm:$0xff]
    %v2481 = vld [vmem:[%s2477 + $0x18] sm:$0xff]
    %s2482 = scalar_lea.vmem %s9, 3
    %v2483 = vld [vmem:[%s2482] sm:$0x1]
    %v2485 = vsel %vm1084, %v2476, 0
    %2487 = vmatprep.subr.mxu0 0.0
    %2488 = vmatpush1.msra.mxu0 %v2478
    %2489 = vmatprep.subr.mxu0 0.0
    %2490 = vmatpush1.msra.mxu0 %v2479
    %2491 = vmatprep.subr.mxu0 0.0
    %2492 = vmatpush1.msra.mxu0 %v2480
    %2493 = vmatprep.subr.mxu0 0.0
    %2494 = vmatpush1.msra.mxu0 %v2481
    %2495 = vmatprep.subr.mxu0 0.0
    %2496 = vmatpush1.msra.mxu0 0.0
    %2497 = vmatprep.subr.mxu0 0.0
    %2498 = vmatpush1.msra.mxu0 0.0
    %2499 = vmatprep.subr.mxu0 0.0
    %2500 = vmatpush1.msra.mxu0 0.0
    %2501 = vmatprep.subr.mxu0 0.0
    %2502 = vmatpush1.msra.mxu0 0.0
    %2503 = vmatprep.subr.mxu0 0.0
    %2504 = vmatpush1.msra.mxu0 0.0
    %2505 = vmatprep.subr.mxu0 0.0
    %2506 = vmatpush1.msra.mxu0 0.0
    %2507 = vmatprep.subr.mxu0 0.0
    %2508 = vmatpush1.msra.mxu0 0.0
    %2509 = vmatprep.subr.mxu0 0.0
    %2510 = vmatpush1.msra.mxu0 0.0
    %2511 = vmatprep.subr.mxu0 0.0
    %2512 = vmatpush1.msra.mxu0 0.0
    %2513 = vmatprep.subr.mxu0 0.0
    %2514 = vmatpush1.msra.mxu0 0.0
    %2515 = vmatprep.subr.mxu0 0.0
    %2516 = vmatpush1.msra.mxu0 0.0
    %2517 = vmatprep.subr.mxu0 0.0
    %2518 = vmatpush1.msra.mxu0 0.0
    %2519 = vmatprep.subr.mxu0 0.0
    %2520 = vmatpush1.msra.mxu0 0.0
    %2521 = vmatprep.subr.mxu0 0.0
    %2522 = vmatpush1.msra.mxu0 0.0
    %2523 = vmatprep.subr.mxu0 0.0
    %2524 = vmatpush1.msra.mxu0 0.0
    %2525 = vmatprep.subr.mxu0 0.0
    %2526 = vmatpush1.msra.mxu0 0.0
    %2527 = vmatprep.subr.mxu0 0.0
    %2528 = vmatpush1.msra.mxu0 0.0
    %2529 = vmatprep.subr.mxu0 0.0
    %2530 = vmatpush1.msra.mxu0 0.0
    %2531 = vmatprep.subr.mxu0 0.0
    %2532 = vmatpush1.msra.mxu0 0.0
    %2533 = vmatprep.subr.mxu0 0.0
    %2534 = vmatpush1.msra.mxu0 0.0
    %2535 = vmatprep.subr.mxu0 0.0
    %2536 = vmatpush1.msra.mxu0 0.0
    %2537 = vmatprep.subr.mxu0 0.0
    %2538 = vmatpush1.msra.mxu0 0.0
    %2539 = vmatprep.subr.mxu0 0.0
    %2540 = vmatpush1.msra.mxu0 0.0
    %2541 = vmatprep.subr.mxu0 0.0
    %2542 = vmatpush1.msra.mxu0 0.0
    %2543 = vmatprep.subr.mxu0 0.0
    %2544 = vmatpush1.msra.mxu0 0.0
    %2545 = vmatprep.subr.mxu0 0.0
    %2546 = vmatpush1.msra.mxu0 0.0
    %2547 = vmatprep.subr.mxu0 0.0
    %2548 = vmatpush1.msra.mxu0 0.0
    %2549 = vmatprep.subr.mxu0 0.0
    %2550 = vmatpush1.msra.mxu0 0.0
    %2551 = vmatprep.mubr.f32.mxu0 0.0
    %2552 = vmatmul.mubr.f32.gmra.mrb[0].mxu0 %v2485
    %v2553 = vpop.f32.mrb[0].mxu0
    %v2554 = vadd.f32 %v2483, %v2553
    %v2555 = vpop.f32.mrb[0].mxu0
    %2556 = vdwg.mxu0
    %vm2557 = vcmp.ge.f32.partialorder %v2554, 0.0
    %v2558 = vmul.f32 %v2554, 0.01
    %v2559 = vsel %vm2557, %v2554, %v2558
    %s2560 = scalar_lea.vmem %s10, 48
    %v2561 = vld [vmem:[%s2560] sm:$0xff]
    %v2562 = vld [vmem:[%s2560 + $0x8] sm:$0xff]
    %s2563 = scalar_lea.vmem %s11, 3
    %v2564 = vld [vmem:[%s2563] sm:$0x1]
    %v2566 = vsel %vm847, %v2559, 0
    %2568 = vmatprep.subr.mxu0 0.0
    %2569 = vmatpush1.msra.mxu0 %v2561
    %2570 = vmatprep.subr.mxu0 0.0
    %2571 = vmatpush1.msra.mxu0 %v2562
    %2572 = vmatprep.subr.mxu0 0.0
    %2573 = vmatpush1.msra.mxu0 0.0
    %2574 = vmatprep.subr.mxu0 0.0
    %2575 = vmatpush1.msra.mxu0 0.0
    %2576 = vmatprep.subr.mxu0 0.0
    %2577 = vmatpush1.msra.mxu0 0.0
    %2578 = vmatprep.subr.mxu0 0.0
    %2579 = vmatpush1.msra.mxu0 0.0
    %2580 = vmatprep.subr.mxu0 0.0
    %2581 = vmatpush1.msra.mxu0 0.0
    %2582 = vmatprep.subr.mxu0 0.0
    %2583 = vmatpush1.msra.mxu0 0.0
    %2584 = vmatprep.subr.mxu0 0.0
    %2585 = vmatpush1.msra.mxu0 0.0
    %2586 = vmatprep.subr.mxu0 0.0
    %2587 = vmatpush1.msra.mxu0 0.0
    %2588 = vmatprep.subr.mxu0 0.0
    %2589 = vmatpush1.msra.mxu0 0.0
    %2590 = vmatprep.subr.mxu0 0.0
    %2591 = vmatpush1.msra.mxu0 0.0
    %2592 = vmatprep.subr.mxu0 0.0
    %2593 = vmatpush1.msra.mxu0 0.0
    %2594 = vmatprep.subr.mxu0 0.0
    %2595 = vmatpush1.msra.mxu0 0.0
    %2596 = vmatprep.subr.mxu0 0.0
    %2597 = vmatpush1.msra.mxu0 0.0
    %2598 = vmatprep.subr.mxu0 0.0
    %2599 = vmatpush1.msra.mxu0 0.0
    %2600 = vmatprep.subr.mxu0 0.0
    %2601 = vmatpush1.msra.mxu0 0.0
    %2602 = vmatprep.subr.mxu0 0.0
    %2603 = vmatpush1.msra.mxu0 0.0
    %2604 = vmatprep.subr.mxu0 0.0
    %2605 = vmatpush1.msra.mxu0 0.0
    %2606 = vmatprep.subr.mxu0 0.0
    %2607 = vmatpush1.msra.mxu0 0.0
    %2608 = vmatprep.subr.mxu0 0.0
    %2609 = vmatpush1.msra.mxu0 0.0
    %2610 = vmatprep.subr.mxu0 0.0
    %2611 = vmatpush1.msra.mxu0 0.0
    %2612 = vmatprep.subr.mxu0 0.0
    %2613 = vmatpush1.msra.mxu0 0.0
    %2614 = vmatprep.subr.mxu0 0.0
    %2615 = vmatpush1.msra.mxu0 0.0
    %2616 = vmatprep.subr.mxu0 0.0
    %2617 = vmatpush1.msra.mxu0 0.0
    %2618 = vmatprep.subr.mxu0 0.0
    %2619 = vmatpush1.msra.mxu0 0.0
    %2620 = vmatprep.subr.mxu0 0.0
    %2621 = vmatpush1.msra.mxu0 0.0
    %2622 = vmatprep.subr.mxu0 0.0
    %2623 = vmatpush1.msra.mxu0 0.0
    %2624 = vmatprep.subr.mxu0 0.0
    %2625 = vmatpush1.msra.mxu0 0.0
    %2626 = vmatprep.subr.mxu0 0.0
    %2627 = vmatpush1.msra.mxu0 0.0
    %2628 = vmatprep.subr.mxu0 0.0
    %2629 = vmatpush1.msra.mxu0 0.0
    %2630 = vmatprep.subr.mxu0 0.0
    %2631 = vmatpush1.msra.mxu0 0.0
    %2632 = vmatprep.mubr.f32.mxu0 0.0
    %2633 = vmatmul.mubr.f32.gmra.mrb[0].mxu0 %v2566
    %v2634 = vpop.f32.mrb[0].mxu0
    %v2635 = vadd.f32 %v2564, %v2634
    %v2636 = vpop.f32.mrb[0].mxu0
    %2637 = vdwg.mxu0
    %v2639 = vrot.slane %v1701, 7
    %v2642 = vrot.slane %v2168, 6
    %v2645 = vrot.slane %v2635, 5
    %vm2647 = vcmask 1040384
    %v2648 = vsel %vm2647, %v1234, %v2639
    %vm2649 = vcmask 1041408
    %v2650 = vsel %vm2649, %v2648, %v2642
    %vm2651 = vcmask 1042432
    %v2652 = vsel %vm2651, %v2650, %v2645
    %vm2653 = vcmask 19456
    %2654 = vst.msk [vmem:[#allocation2] sm:$0xf] %vm2653, %v2652
    // Predicated region
    $region50: #{tpu_custom_call.1} parent=1 // pred_check
      _
    $region51: #{tpu_custom_call.1} parent=1 // pred_check_branch
      %2656 = sbr.rel (0) target = $region53
    $region52: #{tpu_custom_call.1} parent=1 // pred_region
      %s2658 = ssub.s32 64, 64
      %2659 = vsyncadd [#allocation3], %s2658
      %s2661 = sshll.u32 [#allocation2], 4
      %s2662 = int_to_ptr.vmem [resolvable:$true] %s2661
      %2664 = dma.vmem_to_hbm [thread:$0]  %s2662, 64, %s12, [#allocation3]
    $region53: #{tpu_custom_call.1} parent=1 // pred_fallthru
      _
    // Predicated region
    $region54: #{tpu_custom_call.1} parent=1 // pred_check
      _
    $region55: #{tpu_custom_call.1} parent=1 // pred_check_branch
      %2666 = sbr.rel (0) target = $region57
    $region56: #{tpu_custom_call.1} parent=1 // pred_region
      %2667 = dma.done [#allocation3], 64
    $region57: #{tpu_custom_call.1} parent=1 // pred_fallthru
      _
    %2668 = vsyncpa [#allocation3], 1

</llo_original>
